<compile_context>
chip_gen: v5e
topology: v5e:2x2
jax: 0.10.0
libtpu: 0.0.40
codegen_flags: <defaults>
</compile_context>

<pallas_src>
import jax
import jax.numpy as jnp
from jax import lax
from jax.experimental import pallas as pl
from jax.experimental.pallas import tpu as pltpu

PAD = 6   # halo required by the largest pool (13x13, pad=6)
OH = 6    # interior row offset in the padded scratch (leading/address dim, no alignment need)
OW = 8    # interior col offset, rounded up from 6 to 8 so the interior store is sublane aligned


def _spp_kernel(x_ref, w_ref, o_ref, xp_ref):
    # x_ref : (1, H, W, C)    bf16  one batch element, channels on lanes
    # w_ref : (4, C, Cout)    bf16  1x1-conv weight split per concat branch, grid-resident
    # o_ref : (1, H*W, Cout)  f32   lane-dense output block (Cout on lanes)
    # xp_ref: (Hp, Wp, C)     bf16  VMEM scratch: -inf padded image
    _, H, W, C = x_ref.shape
    Hp, Wp, _ = xp_ref.shape

    # ---- -inf halo (MaxPool2d's implicit padding); every cell written exactly once ----
    def neg(shape):
        return jnp.full(shape, -jnp.inf, dtype=xp_ref.dtype)

    xp_ref[0:OH, :, :] = neg((OH, Wp, C))                        # top rows
    xp_ref[OH + H:Hp, :, :] = neg((Hp - OH - H, Wp, C))          # bottom rows
    xp_ref[OH:OH + H, 0:OW, :] = neg((H, OW, C))                 # left cols (sublane aligned)
    xp_ref[OH:OH + H, OW + W:Wp, :] = neg((H, Wp - OW - W, C))   # right cols
    xp_ref[OH:OH + H, OW:OW + W, :] = x_ref[0]                   # interior (aligned store)
    xp = xp_ref[...]

    # ---- 5x5 max pool, separable log tree, kept on a halo-4 grid ----
    # vertical (leading/address dim -> free, aligned shifts)
    v2 = jnp.maximum(xp[0:Hp - 1], xp[1:Hp])
    v4 = jnp.maximum(v2[0:Hp - 3], v2[2:Hp - 1])
    v5 = jnp.maximum(v4[0:Hp - 4], xp[4:Hp])                 # (H+8, Wp, C); row a -> out row a-4
    # horizontal (sublane dim)
    h2 = jnp.maximum(v5[:, 0:Wp - 1], v5[:, 1:Wp])
    h4 = jnp.maximum(h2[:, 0:Wp - 3], h2[:, 2:Wp - 1])
    p5 = jnp.maximum(h4[:, 0:Wp - 4], v5[:, 4:Wp])           # (H+8, W+12, C); col b -> out col b-6

    # ---- 9x9 = max of four (+-2,+-2)-shifted 5x5; kept on a halo grid ----
    t9 = jnp.maximum(p5[0:H + 4], p5[4:H + 8])               # (H+4, W+12, C)
    p9 = jnp.maximum(t9[:, 0:W + 8], t9[:, 4:W + 12])        # (H+4, W+8, C); (a,b) -> out (a-2, b-4)

    # ---- 13x13 = max of four (+-2,+-2)-shifted 9x9 ----
    t13 = jnp.maximum(p9[0:H], p9[4:H + 4])                  # (H, W+8, C)
    p13 = jnp.maximum(t13[:, 2:W + 2], t13[:, 6:W + 6])      # (H, W, C)  (already the output crop)

    # centre crops of the 5x5 / 9x9 maps
    p5c = p5[4:4 + H, 6:6 + W]                               # (H, W, C)
    p9c = p9[2:2 + H, 4:4 + W]                               # (H, W, C)

    # ---- fused 1x1 conv: four per-branch MXU matmuls accumulated in f32 ----
    S = H * W
    acc = jnp.dot(x_ref[0].reshape(S, C), w_ref[0], preferred_element_type=jnp.float32)
    acc = acc + jnp.dot(p5c.reshape(S, C), w_ref[1], preferred_element_type=jnp.float32)
    acc = acc + jnp.dot(p9c.reshape(S, C), w_ref[2], preferred_element_type=jnp.float32)
    acc = acc + jnp.dot(p13.reshape(S, C), w_ref[3], preferred_element_type=jnp.float32)
    o_ref[0] = acc.astype(o_ref.dtype)


def spp_block(x_nchw, weight):
    """x_nchw: (N, C, H, W) f32.  weight: (Cout, 4*C, 1, 1) f32 (PyTorch conv weight).
    Returns (N, Cout, H, W) f32 — same semantics as SPPBlock.forward (bf16 operands
    at the 1x1 conv, f32 accumulation: an intentional inference precision choice)."""
    N, C, H, W = x_nchw.shape
    Cout = weight.shape[0]
    assert weight.shape == (Cout, 4 * C, 1, 1)
    S = H * W
    Hp = H + 2 * PAD          # 6 rows of halo on each side
    Wp = W + OW + 8           # 8 cols of halo each side (>= 6 needed; keeps alignment)

    # channels-on-lanes layout; bf16 before pooling is exact (max is monotone)
    x_nhwc = jnp.transpose(x_nchw, (0, 2, 3, 1)).astype(jnp.bfloat16)
    # (Cout, 4C, 1, 1) -> (4, C, Cout): one (C, Cout) weight block per concat branch
    w4 = weight[:, :, 0, 0].reshape(Cout, 4, C).transpose(1, 2, 0).astype(jnp.bfloat16)

    out_flat = pl.pallas_call(
        _spp_kernel,
        out_shape=jax.ShapeDtypeStruct((N, S, Cout), jnp.float32),
        grid_spec=pltpu.PrefetchScalarGridSpec(
            num_scalar_prefetch=0,
            grid=(N,),
            in_specs=[
                pl.BlockSpec((1, H, W, C), lambda n: (n, 0, 0, 0)),
                pl.BlockSpec((4, C, Cout), lambda n: (0, 0, 0)),  # weight stays resident
            ],
            out_specs=pl.BlockSpec((1, S, Cout), lambda n: (n, 0, 0)),
            scratch_shapes=[
                pltpu.VMEM((Hp, Wp, C), jnp.bfloat16),
            ],
        ),
        compiler_params=pltpu.CompilerParams(
            dimension_semantics=("parallel",),
            vmem_limit_bytes=64 * 1024 * 1024,
        ),
    )(x_nhwc, w4)

    # (N, H*W, Cout) -> (N, Cout, H, W)
    return jnp.transpose(out_flat.reshape(N, H, W, Cout), (0, 3, 1, 2))


def _reference(x_nchw, weight, bf16_matmul):
    """Pure-JAX reference (lax.reduce_window + einsum)."""
    def mp(x, k, p):
        return lax.reduce_window(
            x, -jnp.inf, lax.max,
            window_dimensions=(1, 1, k, k),
            window_strides=(1, 1, 1, 1),
            padding=((0, 0), (0, 0), (p, p), (p, p)))
    cat = jnp.concatenate(
        [x_nchw, mp(x_nchw, 5, 2), mp(x_nchw, 9, 4), mp(x_nchw, 13, 6)], axis=1)
    w2d = weight[:, :, 0, 0]  # (Cout, 4C)
    if bf16_matmul:
        cat = cat.astype(jnp.bfloat16)
        w2d = w2d.astype(jnp.bfloat16)
    return jnp.einsum("nchw,oc->nohw", cat, w2d,
                      preferred_element_type=jnp.float32)


if __name__ == "__main__":
    key = jax.random.PRNGKey(0)
    kx, kw = jax.random.split(key)

    N, C, H, W = 2, 4, 16, 16
    Cout = 8

    x = jax.random.normal(kx, (N, C, H, W), dtype=jnp.float32)
    # deterministic 1x1 conv weight, PyTorch layout (Cout, 4*C, 1, 1)
    weight = jax.random.normal(kw, (Cout, 4 * C, 1, 1), dtype=jnp.float32) * 0.1

    out = jax.block_until_ready(spp_block(x, weight))
    assert out.shape == (N, Cout, H, W), out.shape

    # tight check vs a reference with the same bf16-at-the-dot rounding
    ref_bf16 = jax.block_until_ready(_reference(x, weight, bf16_matmul=True))
    assert jnp.allclose(out, ref_bf16, rtol=1e-3, atol=1e-3), "mismatch vs bf16-matched reference"

    # loose sanity check vs the pure-f32 (PyTorch-equivalent) reference
    ref_f32 = jax.block_until_ready(_reference(x, weight, bf16_matmul=False))
    assert jnp.allclose(out, ref_f32, rtol=5e-2, atol=5e-2), "mismatch vs f32 reference"

    print("KERNEL_OK")
</pallas_src>

<mosaic_0001>
module attributes {stable_mosaic.version = 11 : i64} {
  func.func @_spp_kernel(%arg0: i32, %arg1: memref<1x16x16x4xbf16, #tpu.memory_space<vmem>>, %arg2: memref<4x4x8xbf16, #tpu.memory_space<vmem>>, %arg3: memref<1x256x8xf32, #tpu.memory_space<vmem>>, %arg4: memref<28x32x4xbf16, #tpu.memory_space<vmem>>) attributes {dimension_semantics = [#tpu.dimension_semantics<parallel>], iteration_bounds = array<i64: 2>, scalar_prefetch = 0 : i64, scratch_operands = 1 : i64, tpu.core_type = #tpu.core_type<tc>, window_params = [{transform_indices = @transform_0, window_bounds = array<i64: 1, 16, 16, 4>}, {pipeline_mode = #tpu.pipeline_mode<synchronous>, transform_indices = @transform_1, window_bounds = array<i64: 4, 4, 8>}, {transform_indices = @transform_2, window_bounds = array<i64: 1, 256, 8>}]} {
    %cst = arith.constant 0xFF80 : bf16
    %0 = vector.broadcast %cst : bf16 to vector<6x32x4xbf16>
    %c0 = arith.constant 0 : index
    %c0_0 = arith.constant 0 : index
    %c0_1 = arith.constant 0 : index
    %1 = vector.load %arg4[%c0, %c0_0, %c0_1] : memref<28x32x4xbf16, #tpu.memory_space<vmem>>, vector<6x32x4xbf16>
    tpu.vector_store %arg4[%c0, %c0_0, %c0_1], %0 {strides = array<i32>} : memref<28x32x4xbf16, #tpu.memory_space<vmem>>, vector<6x32x4xbf16>,
    %cst_2 = arith.constant 0xFF80 : bf16
    %2 = vector.broadcast %cst_2 : bf16 to vector<6x32x4xbf16>
    %c22 = arith.constant 22 : index
    %c0_3 = arith.constant 0 : index
    %c0_4 = arith.constant 0 : index
    %3 = vector.load %arg4[%c22, %c0_3, %c0_4] : memref<28x32x4xbf16, #tpu.memory_space<vmem>>, vector<6x32x4xbf16>
    tpu.vector_store %arg4[%c22, %c0_3, %c0_4], %2 {strides = array<i32>} : memref<28x32x4xbf16, #tpu.memory_space<vmem>>, vector<6x32x4xbf16>,
    %cst_5 = arith.constant 0xFF80 : bf16
    %4 = vector.broadcast %cst_5 : bf16 to vector<16x8x4xbf16>
    %c6 = arith.constant 6 : index
    %c0_6 = arith.constant 0 : index
    %c0_7 = arith.constant 0 : index
    %5 = vector.load %arg4[%c6, %c0_6, %c0_7] : memref<28x32x4xbf16, #tpu.memory_space<vmem>>, vector<16x8x4xbf16>
    tpu.vector_store %arg4[%c6, %c0_6, %c0_7], %4 {strides = array<i32>} : memref<28x32x4xbf16, #tpu.memory_space<vmem>>, vector<16x8x4xbf16>,
    %cst_8 = arith.constant 0xFF80 : bf16
    %6 = vector.broadcast %cst_8 : bf16 to vector<16x8x4xbf16>
    %c6_9 = arith.constant 6 : index
    %c24 = arith.constant 24 : index
    %c0_10 = arith.constant 0 : index
    %7 = vector.load %arg4[%c6_9, %c24, %c0_10] : memref<28x32x4xbf16, #tpu.memory_space<vmem>>, vector<16x8x4xbf16>
    tpu.vector_store %arg4[%c6_9, %c24, %c0_10], %6 {strides = array<i32>} : memref<28x32x4xbf16, #tpu.memory_space<vmem>>, vector<16x8x4xbf16>,
    %c0_11 = arith.constant 0 : index
    %c0_12 = arith.constant 0 : index
    %c0_13 = arith.constant 0 : index
    %c0_14 = arith.constant 0 : index
    %8 = vector.load %arg1[%c0_11, %c0_12, %c0_13, %c0_14] : memref<1x16x16x4xbf16, #tpu.memory_space<vmem>>, vector<1x16x16x4xbf16>
    %9 = vector.shape_cast %8 : vector<1x16x16x4xbf16> to vector<16x16x4xbf16>
    %c6_15 = arith.constant 6 : index
    %c8 = arith.constant 8 : index
    %c0_16 = arith.constant 0 : index
    %10 = vector.load %arg4[%c6_15, %c8, %c0_16] : memref<28x32x4xbf16, #tpu.memory_space<vmem>>, vector<16x16x4xbf16>
    tpu.vector_store %arg4[%c6_15, %c8, %c0_16], %9 {strides = array<i32>} : memref<28x32x4xbf16, #tpu.memory_space<vmem>>, vector<16x16x4xbf16>,
    %c0_17 = arith.constant 0 : index
    %c0_18 = arith.constant 0 : index
    %c0_19 = arith.constant 0 : index
    %11 = vector.load %arg4[%c0_17, %c0_18, %c0_19] : memref<28x32x4xbf16, #tpu.memory_space<vmem>>, vector<28x32x4xbf16>
    %12 = vector.extract_strided_slice %11 {offsets = [0, 0, 0], sizes = [27, 32, 4], strides = [1, 1, 1]} : vector<28x32x4xbf16> to vector<27x32x4xbf16>
    %13 = vector.extract_strided_slice %11 {offsets = [1, 0, 0], sizes = [27, 32, 4], strides = [1, 1, 1]} : vector<28x32x4xbf16> to vector<27x32x4xbf16>
    %14 = arith.maximumf %12, %13 : vector<27x32x4xbf16>
    %15 = vector.extract_strided_slice %14 {offsets = [0, 0, 0], sizes = [25, 32, 4], strides = [1, 1, 1]} : vector<27x32x4xbf16> to vector<25x32x4xbf16>
    %16 = vector.extract_strided_slice %14 {offsets = [2, 0, 0], sizes = [25, 32, 4], strides = [1, 1, 1]} : vector<27x32x4xbf16> to vector<25x32x4xbf16>
    %17 = arith.maximumf %15, %16 : vector<25x32x4xbf16>
    %18 = vector.extract_strided_slice %17 {offsets = [0, 0, 0], sizes = [24, 32, 4], strides = [1, 1, 1]} : vector<25x32x4xbf16> to vector<24x32x4xbf16>
    %19 = vector.extract_strided_slice %11 {offsets = [4, 0, 0], sizes = [24, 32, 4], strides = [1, 1, 1]} : vector<28x32x4xbf16> to vector<24x32x4xbf16>
    %20 = arith.maximumf %18, %19 : vector<24x32x4xbf16>
    %21 = vector.extract_strided_slice %20 {offsets = [0, 0, 0], sizes = [24, 31, 4], strides = [1, 1, 1]} : vector<24x32x4xbf16> to vector<24x31x4xbf16>
    %22 = vector.extract_strided_slice %20 {offsets = [0, 1, 0], sizes = [24, 31, 4], strides = [1, 1, 1]} : vector<24x32x4xbf16> to vector<24x31x4xbf16>
    %23 = arith.maximumf %21, %22 : vector<24x31x4xbf16>
    %24 = vector.extract_strided_slice %23 {offsets = [0, 0, 0], sizes = [24, 29, 4], strides = [1, 1, 1]} : vector<24x31x4xbf16> to vector<24x29x4xbf16>
    %25 = vector.extract_strided_slice %23 {offsets = [0, 2, 0], sizes = [24, 29, 4], strides = [1, 1, 1]} : vector<24x31x4xbf16> to vector<24x29x4xbf16>
    %26 = arith.maximumf %24, %25 : vector<24x29x4xbf16>
    %27 = vector.extract_strided_slice %26 {offsets = [0, 0, 0], sizes = [24, 28, 4], strides = [1, 1, 1]} : vector<24x29x4xbf16> to vector<24x28x4xbf16>
    %28 = vector.extract_strided_slice %20 {offsets = [0, 4, 0], sizes = [24, 28, 4], strides = [1, 1, 1]} : vector<24x32x4xbf16> to vector<24x28x4xbf16>
    %29 = arith.maximumf %27, %28 : vector<24x28x4xbf16>
    %30 = vector.extract_strided_slice %29 {offsets = [0, 0, 0], sizes = [20, 28, 4], strides = [1, 1, 1]} : vector<24x28x4xbf16> to vector<20x28x4xbf16>
    %31 = vector.extract_strided_slice %29 {offsets = [4, 0, 0], sizes = [20, 28, 4], strides = [1, 1, 1]} : vector<24x28x4xbf16> to vector<20x28x4xbf16>
    %32 = arith.maximumf %30, %31 : vector<20x28x4xbf16>
    %33 = vector.extract_strided_slice %32 {offsets = [0, 0, 0], sizes = [20, 24, 4], strides = [1, 1, 1]} : vector<20x28x4xbf16> to vector<20x24x4xbf16>
    %34 = vector.extract_strided_slice %32 {offsets = [0, 4, 0], sizes = [20, 24, 4], strides = [1, 1, 1]} : vector<20x28x4xbf16> to vector<20x24x4xbf16>
    %35 = arith.maximumf %33, %34 : vector<20x24x4xbf16>
    %36 = vector.extract_strided_slice %35 {offsets = [0, 0, 0], sizes = [16, 24, 4], strides = [1, 1, 1]} : vector<20x24x4xbf16> to vector<16x24x4xbf16>
    %37 = vector.extract_strided_slice %35 {offsets = [4, 0, 0], sizes = [16, 24, 4], strides = [1, 1, 1]} : vector<20x24x4xbf16> to vector<16x24x4xbf16>
    %38 = arith.maximumf %36, %37 : vector<16x24x4xbf16>
    %39 = vector.extract_strided_slice %38 {offsets = [0, 2, 0], sizes = [16, 16, 4], strides = [1, 1, 1]} : vector<16x24x4xbf16> to vector<16x16x4xbf16>
    %40 = vector.extract_strided_slice %38 {offsets = [0, 6, 0], sizes = [16, 16, 4], strides = [1, 1, 1]} : vector<16x24x4xbf16> to vector<16x16x4xbf16>
    %41 = arith.maximumf %39, %40 : vector<16x16x4xbf16>
    %42 = vector.extract_strided_slice %29 {offsets = [4, 6, 0], sizes = [16, 16, 4], strides = [1, 1, 1]} : vector<24x28x4xbf16> to vector<16x16x4xbf16>
    %43 = vector.extract_strided_slice %35 {offsets = [2, 4, 0], sizes = [16, 16, 4], strides = [1, 1, 1]} : vector<20x24x4xbf16> to vector<16x16x4xbf16>
    %c0_20 = arith.constant 0 : index
    %c0_21 = arith.constant 0 : index
    %c0_22 = arith.constant 0 : index
    %c0_23 = arith.constant 0 : index
    %44 = vector.load %arg1[%c0_20, %c0_21, %c0_22, %c0_23] : memref<1x16x16x4xbf16, #tpu.memory_space<vmem>>, vector<1x16x16x4xbf16>
    %45 = vector.shape_cast %44 : vector<1x16x16x4xbf16> to vector<16x16x4xbf16>
    %46 = vector.shape_cast %45 : vector<16x16x4xbf16> to vector<256x4xbf16>
    %c0_24 = arith.constant 0 : index
    %c0_25 = arith.constant 0 : index
    %c0_26 = arith.constant 0 : index
    %47 = vector.load %arg2[%c0_24, %c0_25, %c0_26] : memref<4x4x8xbf16, #tpu.memory_space<vmem>>, vector<1x4x8xbf16>
    %48 = vector.shape_cast %47 : vector<1x4x8xbf16> to vector<4x8xbf16>
    %cst_27 = arith.constant dense<0.000000e+00> : vector<256x8xf32>
    %49 = tpu.matmul %46, %48, %cst_27 {dimension_numbers = #tpu.dot_dimension_numbers<[1], [0], [0], [1], [0, 0, 1, 1], [], []>} : vector<256x4xbf16>, vector<4x8xbf16>, vector<256x8xf32> -> vector<256x8xf32>
    %50 = vector.shape_cast %42 : vector<16x16x4xbf16> to vector<256x4xbf16>
    %c1 = arith.constant 1 : index
    %c0_28 = arith.constant 0 : index
    %c0_29 = arith.constant 0 : index
    %51 = vector.load %arg2[%c1, %c0_28, %c0_29] : memref<4x4x8xbf16, #tpu.memory_space<vmem>>, vector<1x4x8xbf16>
    %52 = vector.shape_cast %51 : vector<1x4x8xbf16> to vector<4x8xbf16>
    %cst_30 = arith.constant dense<0.000000e+00> : vector<256x8xf32>
    %53 = tpu.matmul %50, %52, %cst_30 {dimension_numbers = #tpu.dot_dimension_numbers<[1], [0], [0], [1], [0, 0, 1, 1], [], []>} : vector<256x4xbf16>, vector<4x8xbf16>, vector<256x8xf32> -> vector<256x8xf32>
    %54 = arith.addf %49, %53 : vector<256x8xf32>
    %55 = vector.shape_cast %43 : vector<16x16x4xbf16> to vector<256x4xbf16>
    %c2 = arith.constant 2 : index
    %c0_31 = arith.constant 0 : index
    %c0_32 = arith.constant 0 : index
    %56 = vector.load %arg2[%c2, %c0_31, %c0_32] : memref<4x4x8xbf16, #tpu.memory_space<vmem>>, vector<1x4x8xbf16>
    %57 = vector.shape_cast %56 : vector<1x4x8xbf16> to vector<4x8xbf16>
    %cst_33 = arith.constant dense<0.000000e+00> : vector<256x8xf32>
    %58 = tpu.matmul %55, %57, %cst_33 {dimension_numbers = #tpu.dot_dimension_numbers<[1], [0], [0], [1], [0, 0, 1, 1], [], []>} : vector<256x4xbf16>, vector<4x8xbf16>, vector<256x8xf32> -> vector<256x8xf32>
    %59 = arith.addf %54, %58 : vector<256x8xf32>
    %60 = vector.shape_cast %41 : vector<16x16x4xbf16> to vector<256x4xbf16>
    %c3 = arith.constant 3 : index
    %c0_34 = arith.constant 0 : index
    %c0_35 = arith.constant 0 : index
    %61 = vector.load %arg2[%c3, %c0_34, %c0_35] : memref<4x4x8xbf16, #tpu.memory_space<vmem>>, vector<1x4x8xbf16>
    %62 = vector.shape_cast %61 : vector<1x4x8xbf16> to vector<4x8xbf16>
    %cst_36 = arith.constant dense<0.000000e+00> : vector<256x8xf32>
    %63 = tpu.matmul %60, %62, %cst_36 {dimension_numbers = #tpu.dot_dimension_numbers<[1], [0], [0], [1], [0, 0, 1, 1], [], []>} : vector<256x4xbf16>, vector<4x8xbf16>, vector<256x8xf32> -> vector<256x8xf32>
    %64 = arith.addf %59, %63 : vector<256x8xf32>
    %c0_37 = arith.constant 0 : index
    %c0_38 = arith.constant 0 : index
    %c0_39 = arith.constant 0 : index
    %65 = vector.load %arg3[%c0_37, %c0_38, %c0_39] : memref<1x256x8xf32, #tpu.memory_space<vmem>>, vector<1x256x8xf32>
    %66 = vector.shape_cast %65 : vector<1x256x8xf32> to vector<256x8xf32>
    %67 = vector.shape_cast %64 : vector<256x8xf32> to vector<1x256x8xf32>
    tpu.vector_store %arg3[%c0_37, %c0_38, %c0_39], %67 {strides = array<i32>} : memref<1x256x8xf32, #tpu.memory_space<vmem>>, vector<1x256x8xf32>,
    return
  }
  func.func @transform_0(%arg0: i32) -> (i32, i32, i32, i32) {
    %c0_i32 = arith.constant 0 : i32
    %c0_i32_0 = arith.constant 0 : i32
    %c0_i32_1 = arith.constant 0 : i32
    %c0_i32_2 = arith.constant 0 : i32
    return %arg0, %c0_i32, %c0_i32_0, %c0_i32_1 : i32, i32, i32, i32
  }
  func.func @transform_1(%arg0: i32) -> (i32, i32, i32) {
    %c0_i32 = arith.constant 0 : i32
    %c0_i32_0 = arith.constant 0 : i32
    %c0_i32_1 = arith.constant 0 : i32
    %c0_i32_2 = arith.constant 0 : i32
    return %c0_i32, %c0_i32_0, %c0_i32_1 : i32, i32, i32
  }
  func.func @transform_2(%arg0: i32) -> (i32, i32, i32) {
    %c0_i32 = arith.constant 0 : i32
    %c0_i32_0 = arith.constant 0 : i32
    %c0_i32_1 = arith.constant 0 : i32
    return %arg0, %c0_i32, %c0_i32_0 : i32, i32, i32
  }
}

</mosaic_0001>

<llo_original>
// kernel: tpu_custom_call.1
$region0: #{tpu_custom_call.1}
  #allocation0 [shape = 'u32[]', space=smem, size = 0x4, offset = 0x4, fixed_abs, tag = 'smem constant byte address 0x4 - core index']
  #allocation1 [shape = 'u32[72,128]{1,0:T(1,128)}', space=vmem, size = 0x9000, scoped, tag = 'internal scratch']
  #allocation2 [shape = 'bf16[28,32,4]{2,1,0:T(8,128)(2,1)}', space=vmem, size = 0x38000, scoped, tag = 'scratch operand']
  %s0 = inlined_call_operand.vmem [shape: bf16[2,16,16,4], index: 0, kind: input, shape index: {}]
  %s1 = inlined_call_operand.vmem [shape: bf16[4,4,8], index: 1, kind: input, shape index: {}]
  %s2 = inlined_call_operand.vmem [shape: f32[2,256,8], index: 2, kind: output, shape index: {}]
  %s3 = sld [smem:[#allocation0]]
  $region41: #{tpu_custom_call.1} parent=0
    _
  %s5 = ssub.s32 1, %s3
  %s6 = scalar_select 0, %s5, %s3
  loop: start=0, step=1, limit=4
  $region2: #{tpu_custom_call.1} parent=0 // loop_pre_header
    _
  $region3: #{tpu_custom_call.1} parent=0 // loop_header
    %s8 = sphi 0, %s12
    %p9 = scmp.ge.s32.totalorder %s8, 4
    %s18 = sphi 0, %s20
    %s21 = sphi 0, %s18
    %s22 = sphi 0, %s21
    %s38 = sphi 0, %s22
    %s42 = sphi 0, %s42
    %s44 = sphi 0, %s42
    %s45 = sphi 0, %s44
    %s59 = sphi 0, %s45
    %s65 = sphi 0, %s67
    %s68 = sphi 0, %s65
    %s69 = sphi 0, %s68
    %s85 = sphi 0, %s69
  $region4: #{tpu_custom_call.1} parent=0 // loop_header_branch
    %11 = sbr.rel (%p9) target = $region8
  $region5: #{tpu_custom_call.1} parent=0 // loop_body
    %s13 = ssub.s32 %s8, 1
    %s14 = ssub.s32 %s8, 2
    %s15 = sadd.s32 %s8, 1
    %s16 = ssub.s32 %s8, %s15
    %p17 = scmp.eq.s32.totalorder %s16, 0
    %s19 = sadd.s32 %s18, 1
    %s20 = scalar_select %p17, %s18, %s19
    %p23 = pneg %p17
    %p24 = scmp.eq.s32.totalorder %s8, 1
    %p25 = por %p23, %p24
    %p26 = scmp.ne.s32.totalorder %s18, %s21
    %p27 = scmp.eq.s32.totalorder %s8, 0
    %p28 = por %p26, %p27
    %p29 = scmp.ne.s32.totalorder %s18, %s21
    %p30 = scmp.eq.s32.totalorder %s13, 1
    %p31 = por %p29, %p30
    %p32 = scmp.ne.s32.totalorder %s21, %s22
    %p33 = scmp.eq.s32.totalorder %s13, 0
    %p34 = por %p32, %p33
    %p35 = scmp.ne.s32.totalorder %s21, %s22
    %p36 = scmp.eq.s32.totalorder %s14, 1
    %p37 = por %p35, %p36
    %p39 = scmp.ne.s32.totalorder %s22, %s38
    %p40 = scmp.eq.s32.totalorder %s14, 0
    %p41 = por %p39, %p40
    %s43 = sadd.s32 %s42, 1
    %p46 = scmp.eq.s32.totalorder %s8, 1
    %p47 = scmp.ne.s32.totalorder %s42, %s44
    %p48 = scmp.eq.s32.totalorder %s8, 0
    %p49 = por %p47, %p48
    %p50 = scmp.ne.s32.totalorder %s42, %s44
    %p51 = scmp.eq.s32.totalorder %s13, 1
    %p52 = por %p50, %p51
    %p53 = scmp.ne.s32.totalorder %s44, %s45
    %p54 = scmp.eq.s32.totalorder %s13, 0
    %p55 = por %p53, %p54
    %p56 = scmp.ne.s32.totalorder %s44, %s45
    %p57 = scmp.eq.s32.totalorder %s14, 1
    %p58 = por %p56, %p57
    %p60 = scmp.ne.s32.totalorder %s45, %s59
    %p61 = scmp.eq.s32.totalorder %s14, 0
    %p62 = por %p60, %p61
    %s63 = ssub.s32 %s8, %s15
    %p64 = scmp.eq.s32.totalorder %s63, 0
    %s66 = sadd.s32 %s65, 1
    %s67 = scalar_select %p64, %s65, %s66
    %p70 = pneg %p64
    %p71 = scmp.eq.s32.totalorder %s8, 1
    %p72 = por %p70, %p71
    %p73 = scmp.ne.s32.totalorder %s65, %s68
    %p74 = scmp.eq.s32.totalorder %s8, 0
    %p75 = por %p73, %p74
    %p76 = scmp.ne.s32.totalorder %s65, %s68
    %p77 = scmp.eq.s32.totalorder %s13, 1
    %p78 = por %p76, %p77
    %p79 = scmp.ne.s32.totalorder %s68, %s69
    %p80 = scmp.eq.s32.totalorder %s13, 0
    %p81 = por %p79, %p80
    %p82 = scmp.ne.s32.totalorder %s68, %s69
    %p83 = scmp.eq.s32.totalorder %s14, 1
    %p84 = por %p82, %p83
    %p86 = scmp.ne.s32.totalorder %s69, %s85
    %p87 = scmp.eq.s32.totalorder %s14, 0
    %p88 = por %p86, %p87
    %p89 = scmp.le.s32.totalorder 1, %s8
    %p90 = scmp.lt.s32.totalorder %s8, 3
    %p91 = pnand %p89, %p90
    %p92 = pneg %p91
    // Predicated region
    $region9: #{tpu_custom_call.1} parent=5 // pred_check
      _
    $region10: #{tpu_custom_call.1} parent=5 // pred_check_branch
      %94 = sbr.rel (%p91) target = $region12
    $region11: #{tpu_custom_call.1} parent=5 // pred_region
      %s95 = ssub.s32 %s8, 1
      // Predicated region
      $region13: #{tpu_custom_call.1} parent=11 // pred_check
        %p96 = pneg %p55
      $region14: #{tpu_custom_call.1} parent=11 // pred_check_branch
        %98 = sbr.rel (%p96) target = $region16
      $region15: #{tpu_custom_call.1} parent=11 // pred_region
        _
      $region16: #{tpu_custom_call.1} parent=11 // pred_fallthru
        _
    $region12: #{tpu_custom_call.1} parent=5 // pred_fallthru
      _
    %p99 = scmp.lt.s32.totalorder %s8, 2
    // Predicated region
    $region17: #{tpu_custom_call.1} parent=5 // pred_check
      %p100 = pneg %p99
    $region18: #{tpu_custom_call.1} parent=5 // pred_check_branch
      %102 = sbr.rel (%p100) target = $region20
    $region19: #{tpu_custom_call.1} parent=5 // pred_region
      // Predicated region
      $region21: #{tpu_custom_call.1} parent=19 // pred_check
        %p103 = pneg %p28
      $region22: #{tpu_custom_call.1} parent=19 // pred_check_branch
        %105 = sbr.rel (%p103) target = $region24
      $region23: #{tpu_custom_call.1} parent=19 // pred_region
        %p106 = scmp.lt.s32.totalorder %s8, 1
        %s107 = scalar_select %p106, %s8, 1
        %s108 = smul.addr %s107, 32
        %s109 = smul.addr %s108, 4
        %s110 = scalar_lea.vmem %s0, %s109
      $region24: #{tpu_custom_call.1} parent=19 // pred_fallthru
        _
    $region20: #{tpu_custom_call.1} parent=5 // pred_fallthru
      _
    %p111 = scmp.le.s32.totalorder 1, %s8
    %p112 = scmp.lt.s32.totalorder %s8, 3
    %p113 = pnand %p111, %p112
    %p114 = pneg %p113
    // Predicated region
    $region25: #{tpu_custom_call.1} parent=5 // pred_check
      _
    $region26: #{tpu_custom_call.1} parent=5 // pred_check_branch
      %116 = sbr.rel (%p113) target = $region28
    $region27: #{tpu_custom_call.1} parent=5 // pred_region
      %s117 = ssub.s32 %s8, 1
      %p118 = scmp.lt.s32.totalorder %s13, 1
      %s119 = scalar_select %p118, %s13, 1
      %s120 = smul.addr %s119, 32
      %s121 = smul.addr %s120, 4
      %s122 = scalar_lea.vmem %s0, %s121
      %p123 = pneg %p34
      %p124 = pneg %p31
      %p125 = pneg %p55
      %p126 = pneg %p52
      %p127 = pneg %p81
      %p128 = pneg %p78
      %p129 = scmp.lt.s32.totalorder %s13, 1
      %s130 = scalar_select %p129, %s13, 1
      %s131 = smul.addr %s130, 32
      %s132 = smul.addr %s131, 8
      %s133 = scalar_lea.vmem %s2, %s132
      %p134 = scmp.lt.s32.totalorder %s13, 1
      %s135 = scalar_select %p134, %s13, 1
      %s136 = smul.addr %s135, 32
      %s137 = smul.addr %s136, 4
      %s138 = scalar_lea.vmem %s0, %s137
      %p139 = scmp.lt.s32.totalorder %s13, 1
      %s140 = scalar_select %p139, %s13, 1
      %s141 = smul.addr %s140, 32
      %s142 = smul.addr %s141, 8
      %s143 = scalar_lea.vmem %s2, %s142
      %vm146 = vcmask 27648
      %147 = vst.msk [vmem:[#allocation2] sm:$0xf] %vm146, 4286644096
      %148 = vst.msk [vmem:[#allocation2 + $0x4] sm:$0xf] %vm146, 4286644096
      %149 = vst.msk [vmem:[#allocation2 + $0x8] sm:$0xf] %vm146, 4286644096
      %150 = vst.msk [vmem:[#allocation2 + $0xc] sm:$0xf] %vm146, 4286644096
      %151 = vst.msk [vmem:[#allocation2 + $0x10] sm:$0xf] %vm146, 4286644096
      %152 = vst.msk [vmem:[#allocation2 + $0x14] sm:$0xf] %vm146, 4286644096
      %153 = vst.msk [vmem:[#allocation2 + $0x18] sm:$0xf] %vm146, 4286644096
      %154 = vst.msk [vmem:[#allocation2 + $0x1c] sm:$0xf] %vm146, 4286644096
      %155 = vst.msk [vmem:[#allocation2 + $0x20] sm:$0xf] %vm146, 4286644096
      %156 = vst.msk [vmem:[#allocation2 + $0x24] sm:$0xf] %vm146, 4286644096
      %157 = vst.msk [vmem:[#allocation2 + $0x28] sm:$0xf] %vm146, 4286644096
      %158 = vst.msk [vmem:[#allocation2 + $0x2c] sm:$0xf] %vm146, 4286644096
      %159 = vst.msk [vmem:[#allocation2 + $0x30] sm:$0xf] %vm146, 4286644096
      %160 = vst.msk [vmem:[#allocation2 + $0x34] sm:$0xf] %vm146, 4286644096
      %161 = vst.msk [vmem:[#allocation2 + $0x38] sm:$0xf] %vm146, 4286644096
      %162 = vst.msk [vmem:[#allocation2 + $0x3c] sm:$0xf] %vm146, 4286644096
      %163 = vst.msk [vmem:[#allocation2 + $0x40] sm:$0xf] %vm146, 4286644096
      %164 = vst.msk [vmem:[#allocation2 + $0x44] sm:$0xf] %vm146, 4286644096
      %165 = vst.msk [vmem:[#allocation2 + $0x48] sm:$0xf] %vm146, 4286644096
      %166 = vst.msk [vmem:[#allocation2 + $0x4c] sm:$0xf] %vm146, 4286644096
      %167 = vst.msk [vmem:[#allocation2 + $0x50] sm:$0xf] %vm146, 4286644096
      %168 = vst.msk [vmem:[#allocation2 + $0x54] sm:$0xf] %vm146, 4286644096
      %169 = vst.msk [vmem:[#allocation2 + $0x58] sm:$0xf] %vm146, 4286644096
      %170 = vst.msk [vmem:[#allocation2 + $0x5c] sm:$0xf] %vm146, 4286644096
      %s171 = scalar_lea.vmem [#allocation2], 352
      %172 = vst.msk [vmem:[%s171] sm:$0xf] %vm146, 4286644096
      %173 = vst.msk [vmem:[%s171 + $0x4] sm:$0xf] %vm146, 4286644096
      %174 = vst.msk [vmem:[%s171 + $0x8] sm:$0xf] %vm146, 4286644096
      %175 = vst.msk [vmem:[%s171 + $0xc] sm:$0xf] %vm146, 4286644096
      %176 = vst.msk [vmem:[%s171 + $0x10] sm:$0xf] %vm146, 4286644096
      %177 = vst.msk [vmem:[%s171 + $0x14] sm:$0xf] %vm146, 4286644096
      %178 = vst.msk [vmem:[%s171 + $0x18] sm:$0xf] %vm146, 4286644096
      %179 = vst.msk [vmem:[%s171 + $0x1c] sm:$0xf] %vm146, 4286644096
      %180 = vst.msk [vmem:[%s171 + $0x20] sm:$0xf] %vm146, 4286644096
      %181 = vst.msk [vmem:[%s171 + $0x24] sm:$0xf] %vm146, 4286644096
      %182 = vst.msk [vmem:[%s171 + $0x28] sm:$0xf] %vm146, 4286644096
      %183 = vst.msk [vmem:[%s171 + $0x2c] sm:$0xf] %vm146, 4286644096
      %184 = vst.msk [vmem:[%s171 + $0x30] sm:$0xf] %vm146, 4286644096
      %185 = vst.msk [vmem:[%s171 + $0x34] sm:$0xf] %vm146, 4286644096
      %186 = vst.msk [vmem:[%s171 + $0x38] sm:$0xf] %vm146, 4286644096
      %187 = vst.msk [vmem:[%s171 + $0x3c] sm:$0xf] %vm146, 4286644096
      %188 = vst.msk [vmem:[%s171 + $0x40] sm:$0xf] %vm146, 4286644096
      %189 = vst.msk [vmem:[%s171 + $0x44] sm:$0xf] %vm146, 4286644096
      %190 = vst.msk [vmem:[%s171 + $0x48] sm:$0xf] %vm146, 4286644096
      %191 = vst.msk [vmem:[%s171 + $0x4c] sm:$0xf] %vm146, 4286644096
      %192 = vst.msk [vmem:[%s171 + $0x50] sm:$0xf] %vm146, 4286644096
      %193 = vst.msk [vmem:[%s171 + $0x54] sm:$0xf] %vm146, 4286644096
      %194 = vst.msk [vmem:[%s171 + $0x58] sm:$0xf] %vm146, 4286644096
      %195 = vst.msk [vmem:[%s171 + $0x5c] sm:$0xf] %vm146, 4286644096
      %s196 = scalar_lea.vmem [#allocation2], 96
      %197 = vst.msk [vmem:[%s196] sm:$0xf] %vm146, 4286644096
      %198 = vst.msk [vmem:[%s196 + $0x10] sm:$0xf] %vm146, 4286644096
      %199 = vst.msk [vmem:[%s196 + $0x20] sm:$0xf] %vm146, 4286644096
      %200 = vst.msk [vmem:[%s196 + $0x30] sm:$0xf] %vm146, 4286644096
      %201 = vst.msk [vmem:[%s196 + $0x40] sm:$0xf] %vm146, 4286644096
      %202 = vst.msk [vmem:[%s196 + $0x50] sm:$0xf] %vm146, 4286644096
      %203 = vst.msk [vmem:[%s196 + $0x60] sm:$0xf] %vm146, 4286644096
      %204 = vst.msk [vmem:[%s196 + $0x70] sm:$0xf] %vm146, 4286644096
      %205 = vst.msk [vmem:[%s196 + $0x80] sm:$0xf] %vm146, 4286644096
      %206 = vst.msk [vmem:[%s196 + $0x90] sm:$0xf] %vm146, 4286644096
      %207 = vst.msk [vmem:[%s196 + $0xa0] sm:$0xf] %vm146, 4286644096
      %208 = vst.msk [vmem:[%s196 + $0xb0] sm:$0xf] %vm146, 4286644096
      %209 = vst.msk [vmem:[%s196 + $0xc0] sm:$0xf] %vm146, 4286644096
      %210 = vst.msk [vmem:[%s196 + $0xd0] sm:$0xf] %vm146, 4286644096
      %211 = vst.msk [vmem:[%s196 + $0xe0] sm:$0xf] %vm146, 4286644096
      %212 = vst.msk [vmem:[%s196 + $0xf0] sm:$0xf] %vm146, 4286644096
      %213 = vst.msk [vmem:[%s196 + $0xc] sm:$0xf] %vm146, 4286644096
      %214 = vst.msk [vmem:[%s196 + $0x1c] sm:$0xf] %vm146, 4286644096
      %215 = vst.msk [vmem:[%s196 + $0x2c] sm:$0xf] %vm146, 4286644096
      %216 = vst.msk [vmem:[%s196 + $0x3c] sm:$0xf] %vm146, 4286644096
      %217 = vst.msk [vmem:[%s196 + $0x4c] sm:$0xf] %vm146, 4286644096
      %218 = vst.msk [vmem:[%s196 + $0x5c] sm:$0xf] %vm146, 4286644096
      %219 = vst.msk [vmem:[%s196 + $0x6c] sm:$0xf] %vm146, 4286644096
      %220 = vst.msk [vmem:[%s196 + $0x7c] sm:$0xf] %vm146, 4286644096
      %221 = vst.msk [vmem:[%s196 + $0x8c] sm:$0xf] %vm146, 4286644096
      %222 = vst.msk [vmem:[%s196 + $0x9c] sm:$0xf] %vm146, 4286644096
      %223 = vst.msk [vmem:[%s196 + $0xac] sm:$0xf] %vm146, 4286644096
      %224 = vst.msk [vmem:[%s196 + $0xbc] sm:$0xf] %vm146, 4286644096
      %225 = vst.msk [vmem:[%s196 + $0xcc] sm:$0xf] %vm146, 4286644096
      %226 = vst.msk [vmem:[%s196 + $0xdc] sm:$0xf] %vm146, 4286644096
      %227 = vst.msk [vmem:[%s196 + $0xec] sm:$0xf] %vm146, 4286644096
      %228 = vst.msk [vmem:[%s196 + $0xfc] sm:$0xf] %vm146, 4286644096
      %v229 = vld [vmem:[%s138] sm:$0xf]
      %v230 = vld [vmem:[%s138 + $0x4] sm:$0xf]
      %v231 = vld [vmem:[%s138 + $0x8] sm:$0xf]
      %v232 = vld [vmem:[%s138 + $0xc] sm:$0xf]
      %v233 = vld [vmem:[%s138 + $0x10] sm:$0xf]
      %v234 = vld [vmem:[%s138 + $0x14] sm:$0xf]
      %v235 = vld [vmem:[%s138 + $0x18] sm:$0xf]
      %v236 = vld [vmem:[%s138 + $0x1c] sm:$0xf]
      %v237 = vld [vmem:[%s138 + $0x20] sm:$0xf]
      %v238 = vld [vmem:[%s138 + $0x24] sm:$0xf]
      %v239 = vld [vmem:[%s138 + $0x28] sm:$0xf]
      %v240 = vld [vmem:[%s138 + $0x2c] sm:$0xf]
      %v241 = vld [vmem:[%s138 + $0x30] sm:$0xf]
      %v242 = vld [vmem:[%s138 + $0x34] sm:$0xf]
      %v243 = vld [vmem:[%s138 + $0x38] sm:$0xf]
      %v244 = vld [vmem:[%s138 + $0x3c] sm:$0xf]
      %v245 = vld [vmem:[%s138 + $0x40] sm:$0xf]
      %v246 = vld [vmem:[%s138 + $0x44] sm:$0xf]
      %v247 = vld [vmem:[%s138 + $0x48] sm:$0xf]
      %v248 = vld [vmem:[%s138 + $0x4c] sm:$0xf]
      %v249 = vld [vmem:[%s138 + $0x50] sm:$0xf]
      %v250 = vld [vmem:[%s138 + $0x54] sm:$0xf]
      %v251 = vld [vmem:[%s138 + $0x58] sm:$0xf]
      %v252 = vld [vmem:[%s138 + $0x5c] sm:$0xf]
      %v253 = vld [vmem:[%s138 + $0x60] sm:$0xf]
      %v254 = vld [vmem:[%s138 + $0x64] sm:$0xf]
      %v255 = vld [vmem:[%s138 + $0x68] sm:$0xf]
      %v256 = vld [vmem:[%s138 + $0x6c] sm:$0xf]
      %v257 = vld [vmem:[%s138 + $0x70] sm:$0xf]
      %v258 = vld [vmem:[%s138 + $0x74] sm:$0xf]
      %v259 = vld [vmem:[%s138 + $0x78] sm:$0xf]
      %v260 = vld [vmem:[%s138 + $0x7c] sm:$0xf]
      %261 = vst.msk [vmem:[%s196 + $0x4] sm:$0xf] %vm146, %v229
      %262 = vst.msk [vmem:[%s196 + $0x8] sm:$0xf] %vm146, %v230
      %263 = vst.msk [vmem:[%s196 + $0x14] sm:$0xf] %vm146, %v231
      %264 = vst.msk [vmem:[%s196 + $0x18] sm:$0xf] %vm146, %v232
      %265 = vst.msk [vmem:[%s196 + $0x24] sm:$0xf] %vm146, %v233
      %266 = vst.msk [vmem:[%s196 + $0x28] sm:$0xf] %vm146, %v234
      %267 = vst.msk [vmem:[%s196 + $0x34] sm:$0xf] %vm146, %v235
      %268 = vst.msk [vmem:[%s196 + $0x38] sm:$0xf] %vm146, %v236
      %269 = vst.msk [vmem:[%s196 + $0x44] sm:$0xf] %vm146, %v237
      %270 = vst.msk [vmem:[%s196 + $0x48] sm:$0xf] %vm146, %v238
      %271 = vst.msk [vmem:[%s196 + $0x54] sm:$0xf] %vm146, %v239
      %272 = vst.msk [vmem:[%s196 + $0x58] sm:$0xf] %vm146, %v240
      %273 = vst.msk [vmem:[%s196 + $0x64] sm:$0xf] %vm146, %v241
      %274 = vst.msk [vmem:[%s196 + $0x68] sm:$0xf] %vm146, %v242
      %275 = vst.msk [vmem:[%s196 + $0x74] sm:$0xf] %vm146, %v243
      %276 = vst.msk [vmem:[%s196 + $0x78] sm:$0xf] %vm146, %v244
      %277 = vst.msk [vmem:[%s196 + $0x84] sm:$0xf] %vm146, %v245
      %278 = vst.msk [vmem:[%s196 + $0x88] sm:$0xf] %vm146, %v246
      %279 = vst.msk [vmem:[%s196 + $0x94] sm:$0xf] %vm146, %v247
      %280 = vst.msk [vmem:[%s196 + $0x98] sm:$0xf] %vm146, %v248
      %281 = vst.msk [vmem:[%s196 + $0xa4] sm:$0xf] %vm146, %v249
      %282 = vst.msk [vmem:[%s196 + $0xa8] sm:$0xf] %vm146, %v250
      %283 = vst.msk [vmem:[%s196 + $0xb4] sm:$0xf] %vm146, %v251
      %284 = vst.msk [vmem:[%s196 + $0xb8] sm:$0xf] %vm146, %v252
      %285 = vst.msk [vmem:[%s196 + $0xc4] sm:$0xf] %vm146, %v253
      %286 = vst.msk [vmem:[%s196 + $0xc8] sm:$0xf] %vm146, %v254
      %287 = vst.msk [vmem:[%s196 + $0xd4] sm:$0xf] %vm146, %v255
      %288 = vst.msk [vmem:[%s196 + $0xd8] sm:$0xf] %vm146, %v256
      %289 = vst.msk [vmem:[%s196 + $0xe4] sm:$0xf] %vm146, %v257
      %290 = vst.msk [vmem:[%s196 + $0xe8] sm:$0xf] %vm146, %v258
      %291 = vst.msk [vmem:[%s196 + $0xf4] sm:$0xf] %vm146, %v259
      %292 = vst.msk [vmem:[%s196 + $0xf8] sm:$0xf] %vm146, %v260
      %v293 = vld [vmem:[#allocation2] sm:$0xf]
      %v294 = vld [vmem:[#allocation2 + $0x4] sm:$0xf]
      %v295 = vld [vmem:[#allocation2 + $0x8] sm:$0xf]
      %v296 = vld [vmem:[#allocation2 + $0xc] sm:$0xf]
      %v297 = vld [vmem:[#allocation2 + $0x10] sm:$0xf]
      %v298 = vld [vmem:[#allocation2 + $0x14] sm:$0xf]
      %v299 = vld [vmem:[#allocation2 + $0x18] sm:$0xf]
      %v300 = vld [vmem:[#allocation2 + $0x1c] sm:$0xf]
      %v301 = vld [vmem:[#allocation2 + $0x20] sm:$0xf]
      %v302 = vld [vmem:[#allocation2 + $0x24] sm:$0xf]
      %v303 = vld [vmem:[#allocation2 + $0x28] sm:$0xf]
      %v304 = vld [vmem:[#allocation2 + $0x2c] sm:$0xf]
      %v305 = vld [vmem:[#allocation2 + $0x30] sm:$0xf]
      %v306 = vld [vmem:[#allocation2 + $0x34] sm:$0xf]
      %v307 = vld [vmem:[#allocation2 + $0x38] sm:$0xf]
      %v308 = vld [vmem:[#allocation2 + $0x3c] sm:$0xf]
      %v309 = vld [vmem:[#allocation2 + $0x40] sm:$0xf]
      %v310 = vld [vmem:[#allocation2 + $0x44] sm:$0xf]
      %v311 = vld [vmem:[#allocation2 + $0x48] sm:$0xf]
      %v312 = vld [vmem:[#allocation2 + $0x4c] sm:$0xf]
      %v313 = vld [vmem:[#allocation2 + $0x50] sm:$0xf]
      %v314 = vld [vmem:[#allocation2 + $0x54] sm:$0xf]
      %v315 = vld [vmem:[#allocation2 + $0x58] sm:$0xf]
      %v316 = vld [vmem:[#allocation2 + $0x5c] sm:$0xf]
      %v317 = vld [vmem:[#allocation2 + $0x60] sm:$0xf]
      %v318 = vld [vmem:[#allocation2 + $0x64] sm:$0xf]
      %v319 = vld [vmem:[#allocation2 + $0x68] sm:$0xf]
      %v320 = vld [vmem:[#allocation2 + $0x6c] sm:$0xf]
      %v321 = vld [vmem:[#allocation2 + $0x70] sm:$0xf]
      %v322 = vld [vmem:[#allocation2 + $0x74] sm:$0xf]
      %v323 = vld [vmem:[#allocation2 + $0x78] sm:$0xf]
      %v324 = vld [vmem:[#allocation2 + $0x7c] sm:$0xf]
      %v325 = vld [vmem:[#allocation2 + $0x80] sm:$0xf]
      %v326 = vld [vmem:[#allocation2 + $0x84] sm:$0xf]
      %v327 = vld [vmem:[#allocation2 + $0x88] sm:$0xf]
      %v328 = vld [vmem:[#allocation2 + $0x8c] sm:$0xf]
      %v329 = vld [vmem:[#allocation2 + $0x90] sm:$0xf]
      %v330 = vld [vmem:[#allocation2 + $0x94] sm:$0xf]
      %v331 = vld [vmem:[#allocation2 + $0x98] sm:$0xf]
      %v332 = vld [vmem:[#allocation2 + $0x9c] sm:$0xf]
      %v333 = vld [vmem:[#allocation2 + $0xa0] sm:$0xf]
      %v334 = vld [vmem:[#allocation2 + $0xa4] sm:$0xf]
      %v335 = vld [vmem:[#allocation2 + $0xa8] sm:$0xf]
      %v336 = vld [vmem:[#allocation2 + $0xac] sm:$0xf]
      %v337 = vld [vmem:[#allocation2 + $0xb0] sm:$0xf]
      %v338 = vld [vmem:[#allocation2 + $0xb4] sm:$0xf]
      %v339 = vld [vmem:[#allocation2 + $0xb8] sm:$0xf]
      %v340 = vld [vmem:[#allocation2 + $0xbc] sm:$0xf]
      %v341 = vld [vmem:[#allocation2 + $0xc0] sm:$0xf]
      %v342 = vld [vmem:[#allocation2 + $0xc4] sm:$0xf]
      %v343 = vld [vmem:[#allocation2 + $0xc8] sm:$0xf]
      %v344 = vld [vmem:[#allocation2 + $0xcc] sm:$0xf]
      %v345 = vld [vmem:[#allocation2 + $0xd0] sm:$0xf]
      %v346 = vld [vmem:[#allocation2 + $0xd4] sm:$0xf]
      %v347 = vld [vmem:[#allocation2 + $0xd8] sm:$0xf]
      %v348 = vld [vmem:[#allocation2 + $0xdc] sm:$0xf]
      %v349 = vld [vmem:[#allocation2 + $0xe0] sm:$0xf]
      %v350 = vld [vmem:[#allocation2 + $0xe4] sm:$0xf]
      %v351 = vld [vmem:[#allocation2 + $0xe8] sm:$0xf]
      %v352 = vld [vmem:[#allocation2 + $0xec] sm:$0xf]
      %v353 = vld [vmem:[#allocation2 + $0xf0] sm:$0xf]
      %v354 = vld [vmem:[#allocation2 + $0xf4] sm:$0xf]
      %v355 = vld [vmem:[#allocation2 + $0xf8] sm:$0xf]
      %v356 = vld [vmem:[#allocation2 + $0xfc] sm:$0xf]
      %v357 = vld [vmem:[#allocation2 + $0x100] sm:$0xf]
      %v358 = vld [vmem:[#allocation2 + $0x104] sm:$0xf]
      %v359 = vld [vmem:[#allocation2 + $0x108] sm:$0xf]
      %v360 = vld [vmem:[#allocation2 + $0x10c] sm:$0xf]
      %v361 = vld [vmem:[#allocation2 + $0x110] sm:$0xf]
      %v362 = vld [vmem:[#allocation2 + $0x114] sm:$0xf]
      %v363 = vld [vmem:[#allocation2 + $0x118] sm:$0xf]
      %v364 = vld [vmem:[#allocation2 + $0x11c] sm:$0xf]
      %v365 = vld [vmem:[#allocation2 + $0x120] sm:$0xf]
      %v366 = vld [vmem:[#allocation2 + $0x124] sm:$0xf]
      %v367 = vld [vmem:[#allocation2 + $0x128] sm:$0xf]
      %v368 = vld [vmem:[#allocation2 + $0x12c] sm:$0xf]
      %v369 = vld [vmem:[#allocation2 + $0x130] sm:$0xf]
      %v370 = vld [vmem:[#allocation2 + $0x134] sm:$0xf]
      %v371 = vld [vmem:[#allocation2 + $0x138] sm:$0xf]
      %v372 = vld [vmem:[#allocation2 + $0x13c] sm:$0xf]
      %v373 = vld [vmem:[#allocation2 + $0x140] sm:$0xf]
      %v374 = vld [vmem:[#allocation2 + $0x144] sm:$0xf]
      %v375 = vld [vmem:[#allocation2 + $0x148] sm:$0xf]
      %v376 = vld [vmem:[#allocation2 + $0x14c] sm:$0xf]
      %v377 = vld [vmem:[#allocation2 + $0x150] sm:$0xf]
      %v378 = vld [vmem:[#allocation2 + $0x154] sm:$0xf]
      %v379 = vld [vmem:[#allocation2 + $0x158] sm:$0xf]
      %v380 = vld [vmem:[#allocation2 + $0x15c] sm:$0xf]
      %v381 = vld [vmem:[#allocation2 + $0x160] sm:$0xf]
      %v382 = vld [vmem:[#allocation2 + $0x164] sm:$0xf]
      %v383 = vld [vmem:[#allocation2 + $0x168] sm:$0xf]
      %v384 = vld [vmem:[#allocation2 + $0x16c] sm:$0xf]
      %v385 = vld [vmem:[#allocation2 + $0x170] sm:$0xf]
      %v386 = vld [vmem:[#allocation2 + $0x174] sm:$0xf]
      %v387 = vld [vmem:[#allocation2 + $0x178] sm:$0xf]
      %v388 = vld [vmem:[#allocation2 + $0x17c] sm:$0xf]
      %v389 = vld [vmem:[#allocation2 + $0x180] sm:$0xf]
      %v390 = vld [vmem:[#allocation2 + $0x184] sm:$0xf]
      %v391 = vld [vmem:[#allocation2 + $0x188] sm:$0xf]
      %v392 = vld [vmem:[#allocation2 + $0x18c] sm:$0xf]
      %v393 = vld [vmem:[#allocation2 + $0x190] sm:$0xf]
      %v394 = vld [vmem:[#allocation2 + $0x194] sm:$0xf]
      %v395 = vld [vmem:[#allocation2 + $0x198] sm:$0xf]
      %v396 = vld [vmem:[#allocation2 + $0x19c] sm:$0xf]
      %v397 = vld [vmem:[#allocation2 + $0x1a0] sm:$0xf]
      %v398 = vld [vmem:[#allocation2 + $0x1a4] sm:$0xf]
      %v399 = vld [vmem:[#allocation2 + $0x1a8] sm:$0xf]
      %v400 = vld [vmem:[#allocation2 + $0x1ac] sm:$0xf]
      %v401 = vld [vmem:[#allocation2 + $0x1b0] sm:$0xf]
      %v402 = vld [vmem:[#allocation2 + $0x1b4] sm:$0xf]
      %v403 = vld [vmem:[#allocation2 + $0x1b8] sm:$0xf]
      %v404 = vld [vmem:[#allocation2 + $0x1bc] sm:$0xf]
      %v405 = vunpack.c.l.bf16 %v293
      %v406 = vunpack.c.l.bf16 %v294
      %v407 = vunpack.c.l.bf16 %v295
      %v408 = vunpack.c.l.bf16 %v296
      %v409 = vunpack.c.l.bf16 %v297
      %v410 = vunpack.c.l.bf16 %v298
      %v411 = vunpack.c.l.bf16 %v299
      %v412 = vunpack.c.l.bf16 %v300
      %v413 = vunpack.c.l.bf16 %v301
      %v414 = vunpack.c.l.bf16 %v302
      %v415 = vunpack.c.l.bf16 %v303
      %v416 = vunpack.c.l.bf16 %v304
      %v417 = vunpack.c.l.bf16 %v305
      %v418 = vunpack.c.l.bf16 %v306
      %v419 = vunpack.c.l.bf16 %v307
      %v420 = vunpack.c.l.bf16 %v308
      %v421 = vunpack.c.l.bf16 %v309
      %v422 = vunpack.c.l.bf16 %v310
      %v423 = vunpack.c.l.bf16 %v311
      %v424 = vunpack.c.l.bf16 %v312
      %v425 = vunpack.c.l.bf16 %v313
      %v426 = vunpack.c.l.bf16 %v314
      %v427 = vunpack.c.l.bf16 %v315
      %v428 = vunpack.c.l.bf16 %v316
      %v429 = vunpack.c.l.bf16 %v317
      %v430 = vunpack.c.l.bf16 %v318
      %v431 = vunpack.c.l.bf16 %v319
      %v432 = vunpack.c.l.bf16 %v320
      %v433 = vunpack.c.l.bf16 %v321
      %v434 = vunpack.c.l.bf16 %v322
      %v435 = vunpack.c.l.bf16 %v323
      %v436 = vunpack.c.l.bf16 %v324
      %v437 = vunpack.c.l.bf16 %v325
      %v438 = vunpack.c.l.bf16 %v326
      %v439 = vunpack.c.l.bf16 %v327
      %v440 = vunpack.c.l.bf16 %v328
      %v441 = vunpack.c.l.bf16 %v329
      %v442 = vunpack.c.l.bf16 %v330
      %v443 = vunpack.c.l.bf16 %v331
      %v444 = vunpack.c.l.bf16 %v332
      %v445 = vunpack.c.l.bf16 %v333
      %v446 = vunpack.c.l.bf16 %v334
      %v447 = vunpack.c.l.bf16 %v335
      %v448 = vunpack.c.l.bf16 %v336
      %v449 = vunpack.c.l.bf16 %v337
      %v450 = vunpack.c.l.bf16 %v338
      %v451 = vunpack.c.l.bf16 %v339
      %v452 = vunpack.c.l.bf16 %v340
      %v453 = vunpack.c.l.bf16 %v341
      %v454 = vunpack.c.l.bf16 %v342
      %v455 = vunpack.c.l.bf16 %v343
      %v456 = vunpack.c.l.bf16 %v344
      %v457 = vunpack.c.l.bf16 %v345
      %v458 = vunpack.c.l.bf16 %v346
      %v459 = vunpack.c.l.bf16 %v347
      %v460 = vunpack.c.l.bf16 %v348
      %v461 = vunpack.c.l.bf16 %v349
      %v462 = vunpack.c.l.bf16 %v350
      %v463 = vunpack.c.l.bf16 %v351
      %v464 = vunpack.c.l.bf16 %v352
      %v465 = vunpack.c.l.bf16 %v353
      %v466 = vunpack.c.l.bf16 %v354
      %v467 = vunpack.c.l.bf16 %v355
      %v468 = vunpack.c.l.bf16 %v356
      %v469 = vunpack.c.l.bf16 %v357
      %v470 = vunpack.c.l.bf16 %v358
      %v471 = vunpack.c.l.bf16 %v359
      %v472 = vunpack.c.l.bf16 %v360
      %v473 = vunpack.c.l.bf16 %v361
      %v474 = vunpack.c.l.bf16 %v362
      %v475 = vunpack.c.l.bf16 %v363
      %v476 = vunpack.c.l.bf16 %v364
      %v477 = vunpack.c.l.bf16 %v365
      %v478 = vunpack.c.l.bf16 %v366
      %v479 = vunpack.c.l.bf16 %v367
      %v480 = vunpack.c.l.bf16 %v368
      %v481 = vunpack.c.l.bf16 %v369
      %v482 = vunpack.c.l.bf16 %v370
      %v483 = vunpack.c.l.bf16 %v371
      %v484 = vunpack.c.l.bf16 %v372
      %v485 = vunpack.c.l.bf16 %v373
      %v486 = vunpack.c.l.bf16 %v374
      %v487 = vunpack.c.l.bf16 %v375
      %v488 = vunpack.c.l.bf16 %v376
      %v489 = vunpack.c.l.bf16 %v377
      %v490 = vunpack.c.l.bf16 %v378
      %v491 = vunpack.c.l.bf16 %v379
      %v492 = vunpack.c.l.bf16 %v380
      %v493 = vunpack.c.l.bf16 %v381
      %v494 = vunpack.c.l.bf16 %v382
      %v495 = vunpack.c.l.bf16 %v383
      %v496 = vunpack.c.l.bf16 %v384
      %v497 = vunpack.c.l.bf16 %v385
      %v498 = vunpack.c.l.bf16 %v386
      %v499 = vunpack.c.l.bf16 %v387
      %v500 = vunpack.c.l.bf16 %v388
      %v501 = vunpack.c.l.bf16 %v389
      %v502 = vunpack.c.l.bf16 %v390
      %v503 = vunpack.c.l.bf16 %v391
      %v504 = vunpack.c.l.bf16 %v392
      %v505 = vunpack.c.l.bf16 %v393
      %v506 = vunpack.c.l.bf16 %v394
      %v507 = vunpack.c.l.bf16 %v395
      %v508 = vunpack.c.l.bf16 %v396
      %v509 = vunpack.c.l.bf16 %v397
      %v510 = vunpack.c.l.bf16 %v398
      %v511 = vunpack.c.l.bf16 %v399
      %v512 = vunpack.c.l.bf16 %v400
      %v513 = vmax.f32 %v405, %v409
      %v514 = vmax.f32 %v406, %v410
      %v515 = vmax.f32 %v407, %v411
      %v516 = vmax.f32 %v408, %v412
      %v517 = vmax.f32 %v409, %v413
      %v518 = vmax.f32 %v410, %v414
      %v519 = vmax.f32 %v411, %v415
      %v520 = vmax.f32 %v412, %v416
      %v521 = vmax.f32 %v413, %v417
      %v522 = vmax.f32 %v414, %v418
      %v523 = vmax.f32 %v415, %v419
      %v524 = vmax.f32 %v416, %v420
      %v525 = vmax.f32 %v417, %v421
      %v526 = vmax.f32 %v418, %v422
      %v527 = vmax.f32 %v419, %v423
      %v528 = vmax.f32 %v420, %v424
      %v529 = vmax.f32 %v421, %v425
      %v530 = vmax.f32 %v422, %v426
      %v531 = vmax.f32 %v423, %v427
      %v532 = vmax.f32 %v424, %v428
      %v533 = vmax.f32 %v425, %v429
      %v534 = vmax.f32 %v426, %v430
      %v535 = vmax.f32 %v427, %v431
      %v536 = vmax.f32 %v428, %v432
      %v537 = vmax.f32 %v429, %v433
      %v538 = vmax.f32 %v430, %v434
      %v539 = vmax.f32 %v431, %v435
      %v540 = vmax.f32 %v432, %v436
      %v541 = vmax.f32 %v433, %v437
      %v542 = vmax.f32 %v434, %v438
      %v543 = vmax.f32 %v435, %v439
      %v544 = vmax.f32 %v436, %v440
      %v545 = vmax.f32 %v437, %v441
      %v546 = vmax.f32 %v438, %v442
      %v547 = vmax.f32 %v439, %v443
      %v548 = vmax.f32 %v440, %v444
      %v549 = vmax.f32 %v441, %v445
      %v550 = vmax.f32 %v442, %v446
      %v551 = vmax.f32 %v443, %v447
      %v552 = vmax.f32 %v444, %v448
      %v553 = vmax.f32 %v445, %v449
      %v554 = vmax.f32 %v446, %v450
      %v555 = vmax.f32 %v447, %v451
      %v556 = vmax.f32 %v448, %v452
      %v557 = vmax.f32 %v449, %v453
      %v558 = vmax.f32 %v450, %v454
      %v559 = vmax.f32 %v451, %v455
      %v560 = vmax.f32 %v452, %v456
      %v561 = vmax.f32 %v453, %v457
      %v562 = vmax.f32 %v454, %v458
      %v563 = vmax.f32 %v455, %v459
      %v564 = vmax.f32 %v456, %v460
      %v565 = vmax.f32 %v457, %v461
      %v566 = vmax.f32 %v458, %v462
      %v567 = vmax.f32 %v459, %v463
      %v568 = vmax.f32 %v460, %v464
      %v569 = vmax.f32 %v461, %v465
      %v570 = vmax.f32 %v462, %v466
      %v571 = vmax.f32 %v463, %v467
      %v572 = vmax.f32 %v464, %v468
      %v573 = vmax.f32 %v465, %v469
      %v574 = vmax.f32 %v466, %v470
      %v575 = vmax.f32 %v467, %v471
      %v576 = vmax.f32 %v468, %v472
      %v577 = vmax.f32 %v469, %v473
      %v578 = vmax.f32 %v470, %v474
      %v579 = vmax.f32 %v471, %v475
      %v580 = vmax.f32 %v472, %v476
      %v581 = vmax.f32 %v473, %v477
      %v582 = vmax.f32 %v474, %v478
      %v583 = vmax.f32 %v475, %v479
      %v584 = vmax.f32 %v476, %v480
      %v585 = vmax.f32 %v477, %v481
      %v586 = vmax.f32 %v478, %v482
      %v587 = vmax.f32 %v479, %v483
      %v588 = vmax.f32 %v480, %v484
      %v589 = vmax.f32 %v481, %v485
      %v590 = vmax.f32 %v482, %v486
      %v591 = vmax.f32 %v483, %v487
      %v592 = vmax.f32 %v484, %v488
      %v593 = vmax.f32 %v485, %v489
      %v594 = vmax.f32 %v486, %v490
      %v595 = vmax.f32 %v487, %v491
      %v596 = vmax.f32 %v488, %v492
      %v597 = vmax.f32 %v489, %v493
      %v598 = vmax.f32 %v490, %v494
      %v599 = vmax.f32 %v491, %v495
      %v600 = vmax.f32 %v492, %v496
      %v601 = vmax.f32 %v493, %v497
      %v602 = vmax.f32 %v494, %v498
      %v603 = vmax.f32 %v495, %v499
      %v604 = vmax.f32 %v496, %v500
      %v605 = vmax.f32 %v497, %v501
      %v606 = vmax.f32 %v498, %v502
      %v607 = vmax.f32 %v499, %v503
      %v608 = vmax.f32 %v500, %v504
      %v609 = vmax.f32 %v501, %v505
      %v610 = vmax.f32 %v502, %v506
      %v611 = vmax.f32 %v503, %v507
      %v612 = vmax.f32 %v504, %v508
      %v613 = vmax.f32 %v505, %v509
      %v614 = vmax.f32 %v506, %v510
      %v615 = vmax.f32 %v507, %v511
      %v616 = vmax.f32 %v508, %v512
      %v617 = vpack.c.bf16 %v513, %v513
      %v618 = vpack.c.bf16 %v514, %v514
      %v619 = vpack.c.bf16 %v515, %v515
      %v620 = vpack.c.bf16 %v516, %v516
      %v621 = vpack.c.bf16 %v517, %v517
      %v622 = vpack.c.bf16 %v518, %v518
      %v623 = vpack.c.bf16 %v519, %v519
      %v624 = vpack.c.bf16 %v520, %v520
      %v625 = vpack.c.bf16 %v521, %v521
      %v626 = vpack.c.bf16 %v522, %v522
      %v627 = vpack.c.bf16 %v523, %v523
      %v628 = vpack.c.bf16 %v524, %v524
      %v629 = vpack.c.bf16 %v525, %v525
      %v630 = vpack.c.bf16 %v526, %v526
      %v631 = vpack.c.bf16 %v527, %v527
      %v632 = vpack.c.bf16 %v528, %v528
      %v633 = vpack.c.bf16 %v529, %v529
      %v634 = vpack.c.bf16 %v530, %v530
      %v635 = vpack.c.bf16 %v531, %v531
      %v636 = vpack.c.bf16 %v532, %v532
      %v637 = vpack.c.bf16 %v533, %v533
      %v638 = vpack.c.bf16 %v534, %v534
      %v639 = vpack.c.bf16 %v535, %v535
      %v640 = vpack.c.bf16 %v536, %v536
      %v641 = vpack.c.bf16 %v537, %v537
      %v642 = vpack.c.bf16 %v538, %v538
      %v643 = vpack.c.bf16 %v539, %v539
      %v644 = vpack.c.bf16 %v540, %v540
      %v645 = vpack.c.bf16 %v541, %v541
      %v646 = vpack.c.bf16 %v542, %v542
      %v647 = vpack.c.bf16 %v543, %v543
      %v648 = vpack.c.bf16 %v544, %v544
      %v649 = vpack.c.bf16 %v545, %v545
      %v650 = vpack.c.bf16 %v546, %v546
      %v651 = vpack.c.bf16 %v547, %v547
      %v652 = vpack.c.bf16 %v548, %v548
      %v653 = vpack.c.bf16 %v549, %v549
      %v654 = vpack.c.bf16 %v550, %v550
      %v655 = vpack.c.bf16 %v551, %v551
      %v656 = vpack.c.bf16 %v552, %v552
      %v657 = vpack.c.bf16 %v553, %v553
      %v658 = vpack.c.bf16 %v554, %v554
      %v659 = vpack.c.bf16 %v555, %v555
      %v660 = vpack.c.bf16 %v556, %v556
      %v661 = vpack.c.bf16 %v557, %v557
      %v662 = vpack.c.bf16 %v558, %v558
      %v663 = vpack.c.bf16 %v559, %v559
      %v664 = vpack.c.bf16 %v560, %v560
      %v665 = vpack.c.bf16 %v561, %v561
      %v666 = vpack.c.bf16 %v562, %v562
      %v667 = vpack.c.bf16 %v563, %v563
      %v668 = vpack.c.bf16 %v564, %v564
      %v669 = vpack.c.bf16 %v565, %v565
      %v670 = vpack.c.bf16 %v566, %v566
      %v671 = vpack.c.bf16 %v567, %v567
      %v672 = vpack.c.bf16 %v568, %v568
      %v673 = vpack.c.bf16 %v569, %v569
      %v674 = vpack.c.bf16 %v570, %v570
      %v675 = vpack.c.bf16 %v571, %v571
      %v676 = vpack.c.bf16 %v572, %v572
      %v677 = vpack.c.bf16 %v573, %v573
      %v678 = vpack.c.bf16 %v574, %v574
      %v679 = vpack.c.bf16 %v575, %v575
      %v680 = vpack.c.bf16 %v576, %v576
      %v681 = vpack.c.bf16 %v577, %v577
      %v682 = vpack.c.bf16 %v578, %v578
      %v683 = vpack.c.bf16 %v579, %v579
      %v684 = vpack.c.bf16 %v580, %v580
      %v685 = vpack.c.bf16 %v581, %v581
      %v686 = vpack.c.bf16 %v582, %v582
      %v687 = vpack.c.bf16 %v583, %v583
      %v688 = vpack.c.bf16 %v584, %v584
      %v689 = vpack.c.bf16 %v585, %v585
      %v690 = vpack.c.bf16 %v586, %v586
      %v691 = vpack.c.bf16 %v587, %v587
      %v692 = vpack.c.bf16 %v588, %v588
      %v693 = vpack.c.bf16 %v589, %v589
      %v694 = vpack.c.bf16 %v590, %v590
      %v695 = vpack.c.bf16 %v591, %v591
      %v696 = vpack.c.bf16 %v592, %v592
      %v697 = vpack.c.bf16 %v593, %v593
      %v698 = vpack.c.bf16 %v594, %v594
      %v699 = vpack.c.bf16 %v595, %v595
      %v700 = vpack.c.bf16 %v596, %v596
      %v701 = vpack.c.bf16 %v597, %v597
      %v702 = vpack.c.bf16 %v598, %v598
      %v703 = vpack.c.bf16 %v599, %v599
      %v704 = vpack.c.bf16 %v600, %v600
      %v705 = vpack.c.bf16 %v601, %v601
      %v706 = vpack.c.bf16 %v602, %v602
      %v707 = vpack.c.bf16 %v603, %v603
      %v708 = vpack.c.bf16 %v604, %v604
      %v709 = vpack.c.bf16 %v605, %v605
      %v710 = vpack.c.bf16 %v606, %v606
      %v711 = vpack.c.bf16 %v607, %v607
      %v712 = vpack.c.bf16 %v608, %v608
      %v713 = vpack.c.bf16 %v609, %v609
      %v714 = vpack.c.bf16 %v610, %v610
      %v715 = vpack.c.bf16 %v611, %v611
      %v716 = vpack.c.bf16 %v612, %v612
      %v717 = vpack.c.bf16 %v613, %v613
      %v718 = vpack.c.bf16 %v614, %v614
      %v719 = vpack.c.bf16 %v615, %v615
      %v720 = vpack.c.bf16 %v616, %v616
      %v721 = vunpack.c.l.bf16 %v617
      %v722 = vunpack.c.l.bf16 %v618
      %v723 = vunpack.c.l.bf16 %v619
      %v724 = vunpack.c.l.bf16 %v620
      %v725 = vunpack.c.l.bf16 %v621
      %v726 = vunpack.c.l.bf16 %v622
      %v727 = vunpack.c.l.bf16 %v623
      %v728 = vunpack.c.l.bf16 %v624
      %v729 = vunpack.c.l.bf16 %v625
      %v730 = vunpack.c.l.bf16 %v626
      %v731 = vunpack.c.l.bf16 %v627
      %v732 = vunpack.c.l.bf16 %v628
      %v733 = vunpack.c.l.bf16 %v629
      %v734 = vunpack.c.l.bf16 %v630
      %v735 = vunpack.c.l.bf16 %v631
      %v736 = vunpack.c.l.bf16 %v632
      %v737 = vunpack.c.l.bf16 %v633
      %v738 = vunpack.c.l.bf16 %v634
      %v739 = vunpack.c.l.bf16 %v635
      %v740 = vunpack.c.l.bf16 %v636
      %v741 = vunpack.c.l.bf16 %v637
      %v742 = vunpack.c.l.bf16 %v638
      %v743 = vunpack.c.l.bf16 %v639
      %v744 = vunpack.c.l.bf16 %v640
      %v745 = vunpack.c.l.bf16 %v641
      %v746 = vunpack.c.l.bf16 %v642
      %v747 = vunpack.c.l.bf16 %v643
      %v748 = vunpack.c.l.bf16 %v644
      %v749 = vunpack.c.l.bf16 %v645
      %v750 = vunpack.c.l.bf16 %v646
      %v751 = vunpack.c.l.bf16 %v647
      %v752 = vunpack.c.l.bf16 %v648
      %v753 = vunpack.c.l.bf16 %v649
      %v754 = vunpack.c.l.bf16 %v650
      %v755 = vunpack.c.l.bf16 %v651
      %v756 = vunpack.c.l.bf16 %v652
      %v757 = vunpack.c.l.bf16 %v653
      %v758 = vunpack.c.l.bf16 %v654
      %v759 = vunpack.c.l.bf16 %v655
      %v760 = vunpack.c.l.bf16 %v656
      %v761 = vunpack.c.l.bf16 %v657
      %v762 = vunpack.c.l.bf16 %v658
      %v763 = vunpack.c.l.bf16 %v659
      %v764 = vunpack.c.l.bf16 %v660
      %v765 = vunpack.c.l.bf16 %v661
      %v766 = vunpack.c.l.bf16 %v662
      %v767 = vunpack.c.l.bf16 %v663
      %v768 = vunpack.c.l.bf16 %v664
      %v769 = vunpack.c.l.bf16 %v665
      %v770 = vunpack.c.l.bf16 %v666
      %v771 = vunpack.c.l.bf16 %v667
      %v772 = vunpack.c.l.bf16 %v668
      %v773 = vunpack.c.l.bf16 %v669
      %v774 = vunpack.c.l.bf16 %v670
      %v775 = vunpack.c.l.bf16 %v671
      %v776 = vunpack.c.l.bf16 %v672
      %v777 = vunpack.c.l.bf16 %v673
      %v778 = vunpack.c.l.bf16 %v674
      %v779 = vunpack.c.l.bf16 %v675
      %v780 = vunpack.c.l.bf16 %v676
      %v781 = vunpack.c.l.bf16 %v677
      %v782 = vunpack.c.l.bf16 %v678
      %v783 = vunpack.c.l.bf16 %v679
      %v784 = vunpack.c.l.bf16 %v680
      %v785 = vunpack.c.l.bf16 %v681
      %v786 = vunpack.c.l.bf16 %v682
      %v787 = vunpack.c.l.bf16 %v683
      %v788 = vunpack.c.l.bf16 %v684
      %v789 = vunpack.c.l.bf16 %v685
      %v790 = vunpack.c.l.bf16 %v686
      %v791 = vunpack.c.l.bf16 %v687
      %v792 = vunpack.c.l.bf16 %v688
      %v793 = vunpack.c.l.bf16 %v689
      %v794 = vunpack.c.l.bf16 %v690
      %v795 = vunpack.c.l.bf16 %v691
      %v796 = vunpack.c.l.bf16 %v692
      %v797 = vunpack.c.l.bf16 %v693
      %v798 = vunpack.c.l.bf16 %v694
      %v799 = vunpack.c.l.bf16 %v695
      %v800 = vunpack.c.l.bf16 %v696
      %v801 = vunpack.c.l.bf16 %v697
      %v802 = vunpack.c.l.bf16 %v698
      %v803 = vunpack.c.l.bf16 %v699
      %v804 = vunpack.c.l.bf16 %v700
      %v805 = vunpack.c.l.bf16 %v701
      %v806 = vunpack.c.l.bf16 %v702
      %v807 = vunpack.c.l.bf16 %v703
      %v808 = vunpack.c.l.bf16 %v704
      %v809 = vunpack.c.l.bf16 %v705
      %v810 = vunpack.c.l.bf16 %v706
      %v811 = vunpack.c.l.bf16 %v707
      %v812 = vunpack.c.l.bf16 %v708
      %v813 = vunpack.c.l.bf16 %v709
      %v814 = vunpack.c.l.bf16 %v710
      %v815 = vunpack.c.l.bf16 %v711
      %v816 = vunpack.c.l.bf16 %v712
      %v817 = vunpack.c.l.bf16 %v713
      %v818 = vunpack.c.l.bf16 %v714
      %v819 = vunpack.c.l.bf16 %v715
      %v820 = vunpack.c.l.bf16 %v716
      %v821 = vunpack.c.l.bf16 %v717
      %v822 = vunpack.c.l.bf16 %v718
      %v823 = vunpack.c.l.bf16 %v719
      %v824 = vunpack.c.l.bf16 %v720
      %v825 = vmax.f32 %v721, %v729
      %v826 = vmax.f32 %v722, %v730
      %v827 = vmax.f32 %v723, %v731
      %v828 = vmax.f32 %v724, %v732
      %v829 = vmax.f32 %v725, %v733
      %v830 = vmax.f32 %v726, %v734
      %v831 = vmax.f32 %v727, %v735
      %v832 = vmax.f32 %v728, %v736
      %v833 = vmax.f32 %v729, %v737
      %v834 = vmax.f32 %v730, %v738
      %v835 = vmax.f32 %v731, %v739
      %v836 = vmax.f32 %v732, %v740
      %v837 = vmax.f32 %v733, %v741
      %v838 = vmax.f32 %v734, %v742
      %v839 = vmax.f32 %v735, %v743
      %v840 = vmax.f32 %v736, %v744
      %v841 = vmax.f32 %v737, %v745
      %v842 = vmax.f32 %v738, %v746
      %v843 = vmax.f32 %v739, %v747
      %v844 = vmax.f32 %v740, %v748
      %v845 = vmax.f32 %v741, %v749
      %v846 = vmax.f32 %v742, %v750
      %v847 = vmax.f32 %v743, %v751
      %v848 = vmax.f32 %v744, %v752
      %v849 = vmax.f32 %v745, %v753
      %v850 = vmax.f32 %v746, %v754
      %v851 = vmax.f32 %v747, %v755
      %v852 = vmax.f32 %v748, %v756
      %v853 = vmax.f32 %v749, %v757
      %v854 = vmax.f32 %v750, %v758
      %v855 = vmax.f32 %v751, %v759
      %v856 = vmax.f32 %v752, %v760
      %v857 = vmax.f32 %v753, %v761
      %v858 = vmax.f32 %v754, %v762
      %v859 = vmax.f32 %v755, %v763
      %v860 = vmax.f32 %v756, %v764
      %v861 = vmax.f32 %v757, %v765
      %v862 = vmax.f32 %v758, %v766
      %v863 = vmax.f32 %v759, %v767
      %v864 = vmax.f32 %v760, %v768
      %v865 = vmax.f32 %v761, %v769
      %v866 = vmax.f32 %v762, %v770
      %v867 = vmax.f32 %v763, %v771
      %v868 = vmax.f32 %v764, %v772
      %v869 = vmax.f32 %v765, %v773
      %v870 = vmax.f32 %v766, %v774
      %v871 = vmax.f32 %v767, %v775
      %v872 = vmax.f32 %v768, %v776
      %v873 = vmax.f32 %v769, %v777
      %v874 = vmax.f32 %v770, %v778
      %v875 = vmax.f32 %v771, %v779
      %v876 = vmax.f32 %v772, %v780
      %v877 = vmax.f32 %v773, %v781
      %v878 = vmax.f32 %v774, %v782
      %v879 = vmax.f32 %v775, %v783
      %v880 = vmax.f32 %v776, %v784
      %v881 = vmax.f32 %v777, %v785
      %v882 = vmax.f32 %v778, %v786
      %v883 = vmax.f32 %v779, %v787
      %v884 = vmax.f32 %v780, %v788
      %v885 = vmax.f32 %v781, %v789
      %v886 = vmax.f32 %v782, %v790
      %v887 = vmax.f32 %v783, %v791
      %v888 = vmax.f32 %v784, %v792
      %v889 = vmax.f32 %v785, %v793
      %v890 = vmax.f32 %v786, %v794
      %v891 = vmax.f32 %v787, %v795
      %v892 = vmax.f32 %v788, %v796
      %v893 = vmax.f32 %v789, %v797
      %v894 = vmax.f32 %v790, %v798
      %v895 = vmax.f32 %v791, %v799
      %v896 = vmax.f32 %v792, %v800
      %v897 = vmax.f32 %v793, %v801
      %v898 = vmax.f32 %v794, %v802
      %v899 = vmax.f32 %v795, %v803
      %v900 = vmax.f32 %v796, %v804
      %v901 = vmax.f32 %v797, %v805
      %v902 = vmax.f32 %v798, %v806
      %v903 = vmax.f32 %v799, %v807
      %v904 = vmax.f32 %v800, %v808
      %v905 = vmax.f32 %v801, %v809
      %v906 = vmax.f32 %v802, %v810
      %v907 = vmax.f32 %v803, %v811
      %v908 = vmax.f32 %v804, %v812
      %v909 = vmax.f32 %v805, %v813
      %v910 = vmax.f32 %v806, %v814
      %v911 = vmax.f32 %v807, %v815
      %v912 = vmax.f32 %v808, %v816
      %v913 = vmax.f32 %v809, %v817
      %v914 = vmax.f32 %v810, %v818
      %v915 = vmax.f32 %v811, %v819
      %v916 = vmax.f32 %v812, %v820
      %v917 = vmax.f32 %v813, %v821
      %v918 = vmax.f32 %v814, %v822
      %v919 = vmax.f32 %v815, %v823
      %v920 = vmax.f32 %v816, %v824
      %v921 = vpack.c.bf16 %v825, %v825
      %v922 = vpack.c.bf16 %v826, %v826
      %v923 = vpack.c.bf16 %v827, %v827
      %v924 = vpack.c.bf16 %v828, %v828
      %v925 = vpack.c.bf16 %v829, %v829
      %v926 = vpack.c.bf16 %v830, %v830
      %v927 = vpack.c.bf16 %v831, %v831
      %v928 = vpack.c.bf16 %v832, %v832
      %v929 = vpack.c.bf16 %v833, %v833
      %v930 = vpack.c.bf16 %v834, %v834
      %v931 = vpack.c.bf16 %v835, %v835
      %v932 = vpack.c.bf16 %v836, %v836
      %v933 = vpack.c.bf16 %v837, %v837
      %v934 = vpack.c.bf16 %v838, %v838
      %v935 = vpack.c.bf16 %v839, %v839
      %v936 = vpack.c.bf16 %v840, %v840
      %v937 = vpack.c.bf16 %v841, %v841
      %v938 = vpack.c.bf16 %v842, %v842
      %v939 = vpack.c.bf16 %v843, %v843
      %v940 = vpack.c.bf16 %v844, %v844
      %v941 = vpack.c.bf16 %v845, %v845
      %v942 = vpack.c.bf16 %v846, %v846
      %v943 = vpack.c.bf16 %v847, %v847
      %v944 = vpack.c.bf16 %v848, %v848
      %v945 = vpack.c.bf16 %v849, %v849
      %v946 = vpack.c.bf16 %v850, %v850
      %v947 = vpack.c.bf16 %v851, %v851
      %v948 = vpack.c.bf16 %v852, %v852
      %v949 = vpack.c.bf16 %v853, %v853
      %v950 = vpack.c.bf16 %v854, %v854
      %v951 = vpack.c.bf16 %v855, %v855
      %v952 = vpack.c.bf16 %v856, %v856
      %v953 = vpack.c.bf16 %v857, %v857
      %v954 = vpack.c.bf16 %v858, %v858
      %v955 = vpack.c.bf16 %v859, %v859
      %v956 = vpack.c.bf16 %v860, %v860
      %v957 = vpack.c.bf16 %v861, %v861
      %v958 = vpack.c.bf16 %v862, %v862
      %v959 = vpack.c.bf16 %v863, %v863
      %v960 = vpack.c.bf16 %v864, %v864
      %v961 = vpack.c.bf16 %v865, %v865
      %v962 = vpack.c.bf16 %v866, %v866
      %v963 = vpack.c.bf16 %v867, %v867
      %v964 = vpack.c.bf16 %v868, %v868
      %v965 = vpack.c.bf16 %v869, %v869
      %v966 = vpack.c.bf16 %v870, %v870
      %v967 = vpack.c.bf16 %v871, %v871
      %v968 = vpack.c.bf16 %v872, %v872
      %v969 = vpack.c.bf16 %v873, %v873
      %v970 = vpack.c.bf16 %v874, %v874
      %v971 = vpack.c.bf16 %v875, %v875
      %v972 = vpack.c.bf16 %v876, %v876
      %v973 = vpack.c.bf16 %v877, %v877
      %v974 = vpack.c.bf16 %v878, %v878
      %v975 = vpack.c.bf16 %v879, %v879
      %v976 = vpack.c.bf16 %v880, %v880
      %v977 = vpack.c.bf16 %v881, %v881
      %v978 = vpack.c.bf16 %v882, %v882
      %v979 = vpack.c.bf16 %v883, %v883
      %v980 = vpack.c.bf16 %v884, %v884
      %v981 = vpack.c.bf16 %v885, %v885
      %v982 = vpack.c.bf16 %v886, %v886
      %v983 = vpack.c.bf16 %v887, %v887
      %v984 = vpack.c.bf16 %v888, %v888
      %v985 = vpack.c.bf16 %v889, %v889
      %v986 = vpack.c.bf16 %v890, %v890
      %v987 = vpack.c.bf16 %v891, %v891
      %v988 = vpack.c.bf16 %v892, %v892
      %v989 = vpack.c.bf16 %v893, %v893
      %v990 = vpack.c.bf16 %v894, %v894
      %v991 = vpack.c.bf16 %v895, %v895
      %v992 = vpack.c.bf16 %v896, %v896
      %v993 = vpack.c.bf16 %v897, %v897
      %v994 = vpack.c.bf16 %v898, %v898
      %v995 = vpack.c.bf16 %v899, %v899
      %v996 = vpack.c.bf16 %v900, %v900
      %v997 = vpack.c.bf16 %v901, %v901
      %v998 = vpack.c.bf16 %v902, %v902
      %v999 = vpack.c.bf16 %v903, %v903
      %v1000 = vpack.c.bf16 %v904, %v904
      %v1001 = vpack.c.bf16 %v905, %v905
      %v1002 = vpack.c.bf16 %v906, %v906
      %v1003 = vpack.c.bf16 %v907, %v907
      %v1004 = vpack.c.bf16 %v908, %v908
      %v1005 = vpack.c.bf16 %v909, %v909
      %v1006 = vpack.c.bf16 %v910, %v910
      %v1007 = vpack.c.bf16 %v911, %v911
      %v1008 = vpack.c.bf16 %v912, %v912
      %v1009 = vpack.c.bf16 %v913, %v913
      %v1010 = vpack.c.bf16 %v914, %v914
      %v1011 = vpack.c.bf16 %v915, %v915
      %v1012 = vpack.c.bf16 %v916, %v916
      %v1013 = vpack.c.bf16 %v917, %v917
      %v1014 = vpack.c.bf16 %v918, %v918
      %v1015 = vpack.c.bf16 %v919, %v919
      %v1016 = vpack.c.bf16 %v920, %v920
      %v1017 = vunpack.c.l.bf16 %v921
      %v1018 = vunpack.c.l.bf16 %v922
      %v1019 = vunpack.c.l.bf16 %v923
      %v1020 = vunpack.c.l.bf16 %v924
      %v1021 = vunpack.c.l.bf16 %v925
      %v1022 = vunpack.c.l.bf16 %v926
      %v1023 = vunpack.c.l.bf16 %v927
      %v1024 = vunpack.c.l.bf16 %v928
      %v1025 = vunpack.c.l.bf16 %v929
      %v1026 = vunpack.c.l.bf16 %v930
      %v1027 = vunpack.c.l.bf16 %v931
      %v1028 = vunpack.c.l.bf16 %v932
      %v1029 = vunpack.c.l.bf16 %v933
      %v1030 = vunpack.c.l.bf16 %v934
      %v1031 = vunpack.c.l.bf16 %v935
      %v1032 = vunpack.c.l.bf16 %v936
      %v1033 = vunpack.c.l.bf16 %v937
      %v1034 = vunpack.c.l.bf16 %v938
      %v1035 = vunpack.c.l.bf16 %v939
      %v1036 = vunpack.c.l.bf16 %v940
      %v1037 = vunpack.c.l.bf16 %v941
      %v1038 = vunpack.c.l.bf16 %v942
      %v1039 = vunpack.c.l.bf16 %v943
      %v1040 = vunpack.c.l.bf16 %v944
      %v1041 = vunpack.c.l.bf16 %v945
      %v1042 = vunpack.c.l.bf16 %v946
      %v1043 = vunpack.c.l.bf16 %v947
      %v1044 = vunpack.c.l.bf16 %v948
      %v1045 = vunpack.c.l.bf16 %v949
      %v1046 = vunpack.c.l.bf16 %v950
      %v1047 = vunpack.c.l.bf16 %v951
      %v1048 = vunpack.c.l.bf16 %v952
      %v1049 = vunpack.c.l.bf16 %v953
      %v1050 = vunpack.c.l.bf16 %v954
      %v1051 = vunpack.c.l.bf16 %v955
      %v1052 = vunpack.c.l.bf16 %v956
      %v1053 = vunpack.c.l.bf16 %v957
      %v1054 = vunpack.c.l.bf16 %v958
      %v1055 = vunpack.c.l.bf16 %v959
      %v1056 = vunpack.c.l.bf16 %v960
      %v1057 = vunpack.c.l.bf16 %v961
      %v1058 = vunpack.c.l.bf16 %v962
      %v1059 = vunpack.c.l.bf16 %v963
      %v1060 = vunpack.c.l.bf16 %v964
      %v1061 = vunpack.c.l.bf16 %v965
      %v1062 = vunpack.c.l.bf16 %v966
      %v1063 = vunpack.c.l.bf16 %v967
      %v1064 = vunpack.c.l.bf16 %v968
      %v1065 = vunpack.c.l.bf16 %v969
      %v1066 = vunpack.c.l.bf16 %v970
      %v1067 = vunpack.c.l.bf16 %v971
      %v1068 = vunpack.c.l.bf16 %v972
      %v1069 = vunpack.c.l.bf16 %v973
      %v1070 = vunpack.c.l.bf16 %v974
      %v1071 = vunpack.c.l.bf16 %v975
      %v1072 = vunpack.c.l.bf16 %v976
      %v1073 = vunpack.c.l.bf16 %v977
      %v1074 = vunpack.c.l.bf16 %v978
      %v1075 = vunpack.c.l.bf16 %v979
      %v1076 = vunpack.c.l.bf16 %v980
      %v1077 = vunpack.c.l.bf16 %v981
      %v1078 = vunpack.c.l.bf16 %v982
      %v1079 = vunpack.c.l.bf16 %v983
      %v1080 = vunpack.c.l.bf16 %v984
      %v1081 = vunpack.c.l.bf16 %v985
      %v1082 = vunpack.c.l.bf16 %v986
      %v1083 = vunpack.c.l.bf16 %v987
      %v1084 = vunpack.c.l.bf16 %v988
      %v1085 = vunpack.c.l.bf16 %v989
      %v1086 = vunpack.c.l.bf16 %v990
      %v1087 = vunpack.c.l.bf16 %v991
      %v1088 = vunpack.c.l.bf16 %v992
      %v1089 = vunpack.c.l.bf16 %v993
      %v1090 = vunpack.c.l.bf16 %v994
      %v1091 = vunpack.c.l.bf16 %v995
      %v1092 = vunpack.c.l.bf16 %v996
      %v1093 = vunpack.c.l.bf16 %v997
      %v1094 = vunpack.c.l.bf16 %v998
      %v1095 = vunpack.c.l.bf16 %v999
      %v1096 = vunpack.c.l.bf16 %v1000
      %v1097 = vunpack.c.l.bf16 %v1001
      %v1098 = vunpack.c.l.bf16 %v1002
      %v1099 = vunpack.c.l.bf16 %v1003
      %v1100 = vunpack.c.l.bf16 %v1004
      %v1101 = vunpack.c.l.bf16 %v1005
      %v1102 = vunpack.c.l.bf16 %v1006
      %v1103 = vunpack.c.l.bf16 %v1007
      %v1104 = vunpack.c.l.bf16 %v1008
      %v1105 = vunpack.c.l.bf16 %v1009
      %v1106 = vunpack.c.l.bf16 %v1010
      %v1107 = vunpack.c.l.bf16 %v1011
      %v1108 = vunpack.c.l.bf16 %v1012
      %v1109 = vunpack.c.l.bf16 %v1013
      %v1110 = vunpack.c.l.bf16 %v1014
      %v1111 = vunpack.c.l.bf16 %v1015
      %v1112 = vunpack.c.l.bf16 %v1016
      %v1113 = vunpack.c.l.bf16 %v401
      %v1114 = vunpack.c.l.bf16 %v402
      %v1115 = vunpack.c.l.bf16 %v403
      %v1116 = vunpack.c.l.bf16 %v404
      %v1117 = vmax.f32 %v1017, %v421
      %v1118 = vmax.f32 %v1018, %v422
      %v1119 = vmax.f32 %v1019, %v423
      %v1120 = vmax.f32 %v1020, %v424
      %v1121 = vmax.f32 %v1021, %v425
      %v1122 = vmax.f32 %v1022, %v426
      %v1123 = vmax.f32 %v1023, %v427
      %v1124 = vmax.f32 %v1024, %v428
      %v1125 = vmax.f32 %v1025, %v429
      %v1126 = vmax.f32 %v1026, %v430
      %v1127 = vmax.f32 %v1027, %v431
      %v1128 = vmax.f32 %v1028, %v432
      %v1129 = vmax.f32 %v1029, %v433
      %v1130 = vmax.f32 %v1030, %v434
      %v1131 = vmax.f32 %v1031, %v435
      %v1132 = vmax.f32 %v1032, %v436
      %v1133 = vmax.f32 %v1033, %v437
      %v1134 = vmax.f32 %v1034, %v438
      %v1135 = vmax.f32 %v1035, %v439
      %v1136 = vmax.f32 %v1036, %v440
      %v1137 = vmax.f32 %v1037, %v441
      %v1138 = vmax.f32 %v1038, %v442
      %v1139 = vmax.f32 %v1039, %v443
      %v1140 = vmax.f32 %v1040, %v444
      %v1141 = vmax.f32 %v1041, %v445
      %v1142 = vmax.f32 %v1042, %v446
      %v1143 = vmax.f32 %v1043, %v447
      %v1144 = vmax.f32 %v1044, %v448
      %v1145 = vmax.f32 %v1045, %v449
      %v1146 = vmax.f32 %v1046, %v450
      %v1147 = vmax.f32 %v1047, %v451
      %v1148 = vmax.f32 %v1048, %v452
      %v1149 = vmax.f32 %v1049, %v453
      %v1150 = vmax.f32 %v1050, %v454
      %v1151 = vmax.f32 %v1051, %v455
      %v1152 = vmax.f32 %v1052, %v456
      %v1153 = vmax.f32 %v1053, %v457
      %v1154 = vmax.f32 %v1054, %v458
      %v1155 = vmax.f32 %v1055, %v459
      %v1156 = vmax.f32 %v1056, %v460
      %v1157 = vmax.f32 %v1057, %v461
      %v1158 = vmax.f32 %v1058, %v462
      %v1159 = vmax.f32 %v1059, %v463
      %v1160 = vmax.f32 %v1060, %v464
      %v1161 = vmax.f32 %v1061, %v465
      %v1162 = vmax.f32 %v1062, %v466
      %v1163 = vmax.f32 %v1063, %v467
      %v1164 = vmax.f32 %v1064, %v468
      %v1165 = vmax.f32 %v1065, %v469
      %v1166 = vmax.f32 %v1066, %v470
      %v1167 = vmax.f32 %v1067, %v471
      %v1168 = vmax.f32 %v1068, %v472
      %v1169 = vmax.f32 %v1069, %v473
      %v1170 = vmax.f32 %v1070, %v474
      %v1171 = vmax.f32 %v1071, %v475
      %v1172 = vmax.f32 %v1072, %v476
      %v1173 = vmax.f32 %v1073, %v477
      %v1174 = vmax.f32 %v1074, %v478
      %v1175 = vmax.f32 %v1075, %v479
      %v1176 = vmax.f32 %v1076, %v480
      %v1177 = vmax.f32 %v1077, %v481
      %v1178 = vmax.f32 %v1078, %v482
      %v1179 = vmax.f32 %v1079, %v483
      %v1180 = vmax.f32 %v1080, %v484
      %v1181 = vmax.f32 %v1081, %v485
      %v1182 = vmax.f32 %v1082, %v486
      %v1183 = vmax.f32 %v1083, %v487
      %v1184 = vmax.f32 %v1084, %v488
      %v1185 = vmax.f32 %v1085, %v489
      %v1186 = vmax.f32 %v1086, %v490
      %v1187 = vmax.f32 %v1087, %v491
      %v1188 = vmax.f32 %v1088, %v492
      %v1189 = vmax.f32 %v1089, %v493
      %v1190 = vmax.f32 %v1090, %v494
      %v1191 = vmax.f32 %v1091, %v495
      %v1192 = vmax.f32 %v1092, %v496
      %v1193 = vmax.f32 %v1093, %v497
      %v1194 = vmax.f32 %v1094, %v498
      %v1195 = vmax.f32 %v1095, %v499
      %v1196 = vmax.f32 %v1096, %v500
      %v1197 = vmax.f32 %v1097, %v501
      %v1198 = vmax.f32 %v1098, %v502
      %v1199 = vmax.f32 %v1099, %v503
      %v1200 = vmax.f32 %v1100, %v504
      %v1201 = vmax.f32 %v1101, %v505
      %v1202 = vmax.f32 %v1102, %v506
      %v1203 = vmax.f32 %v1103, %v507
      %v1204 = vmax.f32 %v1104, %v508
      %v1205 = vmax.f32 %v1105, %v509
      %v1206 = vmax.f32 %v1106, %v510
      %v1207 = vmax.f32 %v1107, %v511
      %v1208 = vmax.f32 %v1108, %v512
      %v1209 = vmax.f32 %v1109, %v1113
      %v1210 = vmax.f32 %v1110, %v1114
      %v1211 = vmax.f32 %v1111, %v1115
      %v1212 = vmax.f32 %v1112, %v1116
      %v1213 = vpack.c.bf16 %v1117, %v1117
      %v1214 = vpack.c.bf16 %v1118, %v1118
      %v1215 = vpack.c.bf16 %v1119, %v1119
      %v1216 = vpack.c.bf16 %v1120, %v1120
      %v1217 = vpack.c.bf16 %v1121, %v1121
      %v1218 = vpack.c.bf16 %v1122, %v1122
      %v1219 = vpack.c.bf16 %v1123, %v1123
      %v1220 = vpack.c.bf16 %v1124, %v1124
      %v1221 = vpack.c.bf16 %v1125, %v1125
      %v1222 = vpack.c.bf16 %v1126, %v1126
      %v1223 = vpack.c.bf16 %v1127, %v1127
      %v1224 = vpack.c.bf16 %v1128, %v1128
      %v1225 = vpack.c.bf16 %v1129, %v1129
      %v1226 = vpack.c.bf16 %v1130, %v1130
      %v1227 = vpack.c.bf16 %v1131, %v1131
      %v1228 = vpack.c.bf16 %v1132, %v1132
      %v1229 = vpack.c.bf16 %v1133, %v1133
      %v1230 = vpack.c.bf16 %v1134, %v1134
      %v1231 = vpack.c.bf16 %v1135, %v1135
      %v1232 = vpack.c.bf16 %v1136, %v1136
      %v1233 = vpack.c.bf16 %v1137, %v1137
      %v1234 = vpack.c.bf16 %v1138, %v1138
      %v1235 = vpack.c.bf16 %v1139, %v1139
      %v1236 = vpack.c.bf16 %v1140, %v1140
      %v1237 = vpack.c.bf16 %v1141, %v1141
      %v1238 = vpack.c.bf16 %v1142, %v1142
      %v1239 = vpack.c.bf16 %v1143, %v1143
      %v1240 = vpack.c.bf16 %v1144, %v1144
      %v1241 = vpack.c.bf16 %v1145, %v1145
      %v1242 = vpack.c.bf16 %v1146, %v1146
      %v1243 = vpack.c.bf16 %v1147, %v1147
      %v1244 = vpack.c.bf16 %v1148, %v1148
      %v1245 = vpack.c.bf16 %v1149, %v1149
      %v1246 = vpack.c.bf16 %v1150, %v1150
      %v1247 = vpack.c.bf16 %v1151, %v1151
      %v1248 = vpack.c.bf16 %v1152, %v1152
      %v1249 = vpack.c.bf16 %v1153, %v1153
      %v1250 = vpack.c.bf16 %v1154, %v1154
      %v1251 = vpack.c.bf16 %v1155, %v1155
      %v1252 = vpack.c.bf16 %v1156, %v1156
      %v1253 = vpack.c.bf16 %v1157, %v1157
      %v1254 = vpack.c.bf16 %v1158, %v1158
      %v1255 = vpack.c.bf16 %v1159, %v1159
      %v1256 = vpack.c.bf16 %v1160, %v1160
      %v1257 = vpack.c.bf16 %v1161, %v1161
      %v1258 = vpack.c.bf16 %v1162, %v1162
      %v1259 = vpack.c.bf16 %v1163, %v1163
      %v1260 = vpack.c.bf16 %v1164, %v1164
      %v1261 = vpack.c.bf16 %v1165, %v1165
      %v1262 = vpack.c.bf16 %v1166, %v1166
      %v1263 = vpack.c.bf16 %v1167, %v1167
      %v1264 = vpack.c.bf16 %v1168, %v1168
      %v1265 = vpack.c.bf16 %v1169, %v1169
      %v1266 = vpack.c.bf16 %v1170, %v1170
      %v1267 = vpack.c.bf16 %v1171, %v1171
      %v1268 = vpack.c.bf16 %v1172, %v1172
      %v1269 = vpack.c.bf16 %v1173, %v1173
      %v1270 = vpack.c.bf16 %v1174, %v1174
      %v1271 = vpack.c.bf16 %v1175, %v1175
      %v1272 = vpack.c.bf16 %v1176, %v1176
      %v1273 = vpack.c.bf16 %v1177, %v1177
      %v1274 = vpack.c.bf16 %v1178, %v1178
      %v1275 = vpack.c.bf16 %v1179, %v1179
      %v1276 = vpack.c.bf16 %v1180, %v1180
      %v1277 = vpack.c.bf16 %v1181, %v1181
      %v1278 = vpack.c.bf16 %v1182, %v1182
      %v1279 = vpack.c.bf16 %v1183, %v1183
      %v1280 = vpack.c.bf16 %v1184, %v1184
      %v1281 = vpack.c.bf16 %v1185, %v1185
      %v1282 = vpack.c.bf16 %v1186, %v1186
      %v1283 = vpack.c.bf16 %v1187, %v1187
      %v1284 = vpack.c.bf16 %v1188, %v1188
      %v1285 = vpack.c.bf16 %v1189, %v1189
      %v1286 = vpack.c.bf16 %v1190, %v1190
      %v1287 = vpack.c.bf16 %v1191, %v1191
      %v1288 = vpack.c.bf16 %v1192, %v1192
      %v1289 = vpack.c.bf16 %v1193, %v1193
      %v1290 = vpack.c.bf16 %v1194, %v1194
      %v1291 = vpack.c.bf16 %v1195, %v1195
      %v1292 = vpack.c.bf16 %v1196, %v1196
      %v1293 = vpack.c.bf16 %v1197, %v1197
      %v1294 = vpack.c.bf16 %v1198, %v1198
      %v1295 = vpack.c.bf16 %v1199, %v1199
      %v1296 = vpack.c.bf16 %v1200, %v1200
      %v1297 = vpack.c.bf16 %v1201, %v1201
      %v1298 = vpack.c.bf16 %v1202, %v1202
      %v1299 = vpack.c.bf16 %v1203, %v1203
      %v1300 = vpack.c.bf16 %v1204, %v1204
      %v1301 = vpack.c.bf16 %v1205, %v1205
      %v1302 = vpack.c.bf16 %v1206, %v1206
      %v1303 = vpack.c.bf16 %v1207, %v1207
      %v1304 = vpack.c.bf16 %v1208, %v1208
      %v1305 = vpack.c.bf16 %v1209, %v1209
      %v1306 = vpack.c.bf16 %v1210, %v1210
      %v1307 = vpack.c.bf16 %v1211, %v1211
      %v1308 = vpack.c.bf16 %v1212, %v1212
      %v1309 = vunpack.c.l.bf16 %v1213
      %v1310 = vunpack.c.l.bf16 %v1214
      %v1311 = vunpack.c.l.bf16 %v1215
      %v1312 = vunpack.c.l.bf16 %v1216
      %v1313 = vunpack.c.l.bf16 %v1217
      %v1314 = vunpack.c.l.bf16 %v1218
      %v1315 = vunpack.c.l.bf16 %v1219
      %v1316 = vunpack.c.l.bf16 %v1220
      %v1317 = vunpack.c.l.bf16 %v1221
      %v1318 = vunpack.c.l.bf16 %v1222
      %v1319 = vunpack.c.l.bf16 %v1223
      %v1320 = vunpack.c.l.bf16 %v1224
      %v1321 = vunpack.c.l.bf16 %v1225
      %v1322 = vunpack.c.l.bf16 %v1226
      %v1323 = vunpack.c.l.bf16 %v1227
      %v1324 = vunpack.c.l.bf16 %v1228
      %v1325 = vunpack.c.l.bf16 %v1229
      %v1326 = vunpack.c.l.bf16 %v1230
      %v1327 = vunpack.c.l.bf16 %v1231
      %v1328 = vunpack.c.l.bf16 %v1232
      %v1329 = vunpack.c.l.bf16 %v1233
      %v1330 = vunpack.c.l.bf16 %v1234
      %v1331 = vunpack.c.l.bf16 %v1235
      %v1332 = vunpack.c.l.bf16 %v1236
      %v1333 = vunpack.c.l.bf16 %v1237
      %v1334 = vunpack.c.l.bf16 %v1238
      %v1335 = vunpack.c.l.bf16 %v1239
      %v1336 = vunpack.c.l.bf16 %v1240
      %v1337 = vunpack.c.l.bf16 %v1241
      %v1338 = vunpack.c.l.bf16 %v1242
      %v1339 = vunpack.c.l.bf16 %v1243
      %v1340 = vunpack.c.l.bf16 %v1244
      %v1341 = vunpack.c.l.bf16 %v1245
      %v1342 = vunpack.c.l.bf16 %v1246
      %v1343 = vunpack.c.l.bf16 %v1247
      %v1344 = vunpack.c.l.bf16 %v1248
      %v1345 = vunpack.c.l.bf16 %v1249
      %v1346 = vunpack.c.l.bf16 %v1250
      %v1347 = vunpack.c.l.bf16 %v1251
      %v1348 = vunpack.c.l.bf16 %v1252
      %v1349 = vunpack.c.l.bf16 %v1253
      %v1350 = vunpack.c.l.bf16 %v1254
      %v1351 = vunpack.c.l.bf16 %v1255
      %v1352 = vunpack.c.l.bf16 %v1256
      %v1353 = vunpack.c.l.bf16 %v1257
      %v1354 = vunpack.c.l.bf16 %v1258
      %v1355 = vunpack.c.l.bf16 %v1259
      %v1356 = vunpack.c.l.bf16 %v1260
      %v1357 = vunpack.c.l.bf16 %v1261
      %v1358 = vunpack.c.l.bf16 %v1262
      %v1359 = vunpack.c.l.bf16 %v1263
      %v1360 = vunpack.c.l.bf16 %v1264
      %v1361 = vunpack.c.l.bf16 %v1265
      %v1362 = vunpack.c.l.bf16 %v1266
      %v1363 = vunpack.c.l.bf16 %v1267
      %v1364 = vunpack.c.l.bf16 %v1268
      %v1365 = vunpack.c.l.bf16 %v1269
      %v1366 = vunpack.c.l.bf16 %v1270
      %v1367 = vunpack.c.l.bf16 %v1271
      %v1368 = vunpack.c.l.bf16 %v1272
      %v1369 = vunpack.c.l.bf16 %v1273
      %v1370 = vunpack.c.l.bf16 %v1274
      %v1371 = vunpack.c.l.bf16 %v1275
      %v1372 = vunpack.c.l.bf16 %v1276
      %v1373 = vunpack.c.l.bf16 %v1277
      %v1374 = vunpack.c.l.bf16 %v1278
      %v1375 = vunpack.c.l.bf16 %v1279
      %v1376 = vunpack.c.l.bf16 %v1280
      %v1377 = vunpack.c.l.bf16 %v1281
      %v1378 = vunpack.c.l.bf16 %v1282
      %v1379 = vunpack.c.l.bf16 %v1283
      %v1380 = vunpack.c.l.bf16 %v1284
      %v1381 = vunpack.c.l.bf16 %v1285
      %v1382 = vunpack.c.l.bf16 %v1286
      %v1383 = vunpack.c.l.bf16 %v1287
      %v1384 = vunpack.c.l.bf16 %v1288
      %v1385 = vunpack.c.l.bf16 %v1289
      %v1386 = vunpack.c.l.bf16 %v1290
      %v1387 = vunpack.c.l.bf16 %v1291
      %v1388 = vunpack.c.l.bf16 %v1292
      %v1389 = vunpack.c.l.bf16 %v1293
      %v1390 = vunpack.c.l.bf16 %v1294
      %v1391 = vunpack.c.l.bf16 %v1295
      %v1392 = vunpack.c.l.bf16 %v1296
      %v1393 = vunpack.c.l.bf16 %v1297
      %v1394 = vunpack.c.l.bf16 %v1298
      %v1395 = vunpack.c.l.bf16 %v1299
      %v1396 = vunpack.c.l.bf16 %v1300
      %v1397 = vunpack.c.l.bf16 %v1301
      %v1398 = vunpack.c.l.bf16 %v1302
      %v1399 = vunpack.c.l.bf16 %v1303
      %v1400 = vunpack.c.l.bf16 %v1304
      %v1401 = vunpack.c.l.bf16 %v1305
      %v1402 = vunpack.c.l.bf16 %v1306
      %v1403 = vunpack.c.l.bf16 %v1307
      %v1404 = vunpack.c.l.bf16 %v1308
      %vm1501 = vcmask 1046528
      %v1502 = vrot.slane %v1309, 1
      %v1503 = vrot.slane %v1310, 1
      %v1504 = vsel %vm1501, %v1502, %v1503
      %v1505 = vrot.slane %v1311, 1
      %v1506 = vsel %vm1501, %v1503, %v1505
      %v1507 = vrot.slane %v1312, 1
      %v1508 = vsel %vm1501, %v1505, %v1507
      %v1509 = vrot.slane %v1313, 1
      %v1510 = vrot.slane %v1314, 1
      %v1511 = vsel %vm1501, %v1509, %v1510
      %v1512 = vrot.slane %v1315, 1
      %v1513 = vsel %vm1501, %v1510, %v1512
      %v1514 = vrot.slane %v1316, 1
      %v1515 = vsel %vm1501, %v1512, %v1514
      %v1516 = vrot.slane %v1317, 1
      %v1517 = vrot.slane %v1318, 1
      %v1518 = vsel %vm1501, %v1516, %v1517
      %v1519 = vrot.slane %v1319, 1
      %v1520 = vsel %vm1501, %v1517, %v1519
      %v1521 = vrot.slane %v1320, 1
      %v1522 = vsel %vm1501, %v1519, %v1521
      %v1523 = vrot.slane %v1321, 1
      %v1524 = vrot.slane %v1322, 1
      %v1525 = vsel %vm1501, %v1523, %v1524
      %v1526 = vrot.slane %v1323, 1
      %v1527 = vsel %vm1501, %v1524, %v1526
      %v1528 = vrot.slane %v1324, 1
      %v1529 = vsel %vm1501, %v1526, %v1528
      %v1530 = vrot.slane %v1325, 1
      %v1531 = vrot.slane %v1326, 1
      %v1532 = vsel %vm1501, %v1530, %v1531
      %v1533 = vrot.slane %v1327, 1
      %v1534 = vsel %vm1501, %v1531, %v1533
      %v1535 = vrot.slane %v1328, 1
      %v1536 = vsel %vm1501, %v1533, %v1535
      %v1537 = vrot.slane %v1329, 1
      %v1538 = vrot.slane %v1330, 1
      %v1539 = vsel %vm1501, %v1537, %v1538
      %v1540 = vrot.slane %v1331, 1
      %v1541 = vsel %vm1501, %v1538, %v1540
      %v1542 = vrot.slane %v1332, 1
      %v1543 = vsel %vm1501, %v1540, %v1542
      %v1544 = vrot.slane %v1333, 1
      %v1545 = vrot.slane %v1334, 1
      %v1546 = vsel %vm1501, %v1544, %v1545
      %v1547 = vrot.slane %v1335, 1
      %v1548 = vsel %vm1501, %v1545, %v1547
      %v1549 = vrot.slane %v1336, 1
      %v1550 = vsel %vm1501, %v1547, %v1549
      %v1551 = vrot.slane %v1337, 1
      %v1552 = vrot.slane %v1338, 1
      %v1553 = vsel %vm1501, %v1551, %v1552
      %v1554 = vrot.slane %v1339, 1
      %v1555 = vsel %vm1501, %v1552, %v1554
      %v1556 = vrot.slane %v1340, 1
      %v1557 = vsel %vm1501, %v1554, %v1556
      %v1558 = vrot.slane %v1341, 1
      %v1559 = vrot.slane %v1342, 1
      %v1560 = vsel %vm1501, %v1558, %v1559
      %v1561 = vrot.slane %v1343, 1
      %v1562 = vsel %vm1501, %v1559, %v1561
      %v1563 = vrot.slane %v1344, 1
      %v1564 = vsel %vm1501, %v1561, %v1563
      %v1565 = vrot.slane %v1345, 1
      %v1566 = vrot.slane %v1346, 1
      %v1567 = vsel %vm1501, %v1565, %v1566
      %v1568 = vrot.slane %v1347, 1
      %v1569 = vsel %vm1501, %v1566, %v1568
      %v1570 = vrot.slane %v1348, 1
      %v1571 = vsel %vm1501, %v1568, %v1570
      %v1572 = vrot.slane %v1349, 1
      %v1573 = vrot.slane %v1350, 1
      %v1574 = vsel %vm1501, %v1572, %v1573
      %v1575 = vrot.slane %v1351, 1
      %v1576 = vsel %vm1501, %v1573, %v1575
      %v1577 = vrot.slane %v1352, 1
      %v1578 = vsel %vm1501, %v1575, %v1577
      %v1579 = vrot.slane %v1353, 1
      %v1580 = vrot.slane %v1354, 1
      %v1581 = vsel %vm1501, %v1579, %v1580
      %v1582 = vrot.slane %v1355, 1
      %v1583 = vsel %vm1501, %v1580, %v1582
      %v1584 = vrot.slane %v1356, 1
      %v1585 = vsel %vm1501, %v1582, %v1584
      %v1586 = vrot.slane %v1357, 1
      %v1587 = vrot.slane %v1358, 1
      %v1588 = vsel %vm1501, %v1586, %v1587
      %v1589 = vrot.slane %v1359, 1
      %v1590 = vsel %vm1501, %v1587, %v1589
      %v1591 = vrot.slane %v1360, 1
      %v1592 = vsel %vm1501, %v1589, %v1591
      %v1593 = vrot.slane %v1361, 1
      %v1594 = vrot.slane %v1362, 1
      %v1595 = vsel %vm1501, %v1593, %v1594
      %v1596 = vrot.slane %v1363, 1
      %v1597 = vsel %vm1501, %v1594, %v1596
      %v1598 = vrot.slane %v1364, 1
      %v1599 = vsel %vm1501, %v1596, %v1598
      %v1600 = vrot.slane %v1365, 1
      %v1601 = vrot.slane %v1366, 1
      %v1602 = vsel %vm1501, %v1600, %v1601
      %v1603 = vrot.slane %v1367, 1
      %v1604 = vsel %vm1501, %v1601, %v1603
      %v1605 = vrot.slane %v1368, 1
      %v1606 = vsel %vm1501, %v1603, %v1605
      %v1607 = vrot.slane %v1369, 1
      %v1608 = vrot.slane %v1370, 1
      %v1609 = vsel %vm1501, %v1607, %v1608
      %v1610 = vrot.slane %v1371, 1
      %v1611 = vsel %vm1501, %v1608, %v1610
      %v1612 = vrot.slane %v1372, 1
      %v1613 = vsel %vm1501, %v1610, %v1612
      %v1614 = vrot.slane %v1373, 1
      %v1615 = vrot.slane %v1374, 1
      %v1616 = vsel %vm1501, %v1614, %v1615
      %v1617 = vrot.slane %v1375, 1
      %v1618 = vsel %vm1501, %v1615, %v1617
      %v1619 = vrot.slane %v1376, 1
      %v1620 = vsel %vm1501, %v1617, %v1619
      %v1621 = vrot.slane %v1377, 1
      %v1622 = vrot.slane %v1378, 1
      %v1623 = vsel %vm1501, %v1621, %v1622
      %v1624 = vrot.slane %v1379, 1
      %v1625 = vsel %vm1501, %v1622, %v1624
      %v1626 = vrot.slane %v1380, 1
      %v1627 = vsel %vm1501, %v1624, %v1626
      %v1628 = vrot.slane %v1381, 1
      %v1629 = vrot.slane %v1382, 1
      %v1630 = vsel %vm1501, %v1628, %v1629
      %v1631 = vrot.slane %v1383, 1
      %v1632 = vsel %vm1501, %v1629, %v1631
      %v1633 = vrot.slane %v1384, 1
      %v1634 = vsel %vm1501, %v1631, %v1633
      %v1635 = vrot.slane %v1385, 1
      %v1636 = vrot.slane %v1386, 1
      %v1637 = vsel %vm1501, %v1635, %v1636
      %v1638 = vrot.slane %v1387, 1
      %v1639 = vsel %vm1501, %v1636, %v1638
      %v1640 = vrot.slane %v1388, 1
      %v1641 = vsel %vm1501, %v1638, %v1640
      %v1642 = vrot.slane %v1389, 1
      %v1643 = vrot.slane %v1390, 1
      %v1644 = vsel %vm1501, %v1642, %v1643
      %v1645 = vrot.slane %v1391, 1
      %v1646 = vsel %vm1501, %v1643, %v1645
      %v1647 = vrot.slane %v1392, 1
      %v1648 = vsel %vm1501, %v1645, %v1647
      %v1649 = vrot.slane %v1393, 1
      %v1650 = vrot.slane %v1394, 1
      %v1651 = vsel %vm1501, %v1649, %v1650
      %v1652 = vrot.slane %v1395, 1
      %v1653 = vsel %vm1501, %v1650, %v1652
      %v1654 = vrot.slane %v1396, 1
      %v1655 = vsel %vm1501, %v1652, %v1654
      %v1656 = vrot.slane %v1397, 1
      %v1657 = vrot.slane %v1398, 1
      %v1658 = vsel %vm1501, %v1656, %v1657
      %v1659 = vrot.slane %v1399, 1
      %v1660 = vsel %vm1501, %v1657, %v1659
      %v1661 = vrot.slane %v1400, 1
      %v1662 = vsel %vm1501, %v1659, %v1661
      %v1663 = vrot.slane %v1401, 1
      %v1664 = vrot.slane %v1402, 1
      %v1665 = vsel %vm1501, %v1663, %v1664
      %v1666 = vrot.slane %v1403, 1
      %v1667 = vsel %vm1501, %v1664, %v1666
      %v1668 = vrot.slane %v1404, 1
      %v1669 = vsel %vm1501, %v1666, %v1668
      %v1766 = vmax.f32 %v1309, %v1504
      %v1767 = vmax.f32 %v1310, %v1506
      %v1768 = vmax.f32 %v1311, %v1508
      %v1769 = vmax.f32 %v1312, %v1507
      %v1770 = vmax.f32 %v1313, %v1511
      %v1771 = vmax.f32 %v1314, %v1513
      %v1772 = vmax.f32 %v1315, %v1515
      %v1773 = vmax.f32 %v1316, %v1514
      %v1774 = vmax.f32 %v1317, %v1518
      %v1775 = vmax.f32 %v1318, %v1520
      %v1776 = vmax.f32 %v1319, %v1522
      %v1777 = vmax.f32 %v1320, %v1521
      %v1778 = vmax.f32 %v1321, %v1525
      %v1779 = vmax.f32 %v1322, %v1527
      %v1780 = vmax.f32 %v1323, %v1529
      %v1781 = vmax.f32 %v1324, %v1528
      %v1782 = vmax.f32 %v1325, %v1532
      %v1783 = vmax.f32 %v1326, %v1534
      %v1784 = vmax.f32 %v1327, %v1536
      %v1785 = vmax.f32 %v1328, %v1535
      %v1786 = vmax.f32 %v1329, %v1539
      %v1787 = vmax.f32 %v1330, %v1541
      %v1788 = vmax.f32 %v1331, %v1543
      %v1789 = vmax.f32 %v1332, %v1542
      %v1790 = vmax.f32 %v1333, %v1546
      %v1791 = vmax.f32 %v1334, %v1548
      %v1792 = vmax.f32 %v1335, %v1550
      %v1793 = vmax.f32 %v1336, %v1549
      %v1794 = vmax.f32 %v1337, %v1553
      %v1795 = vmax.f32 %v1338, %v1555
      %v1796 = vmax.f32 %v1339, %v1557
      %v1797 = vmax.f32 %v1340, %v1556
      %v1798 = vmax.f32 %v1341, %v1560
      %v1799 = vmax.f32 %v1342, %v1562
      %v1800 = vmax.f32 %v1343, %v1564
      %v1801 = vmax.f32 %v1344, %v1563
      %v1802 = vmax.f32 %v1345, %v1567
      %v1803 = vmax.f32 %v1346, %v1569
      %v1804 = vmax.f32 %v1347, %v1571
      %v1805 = vmax.f32 %v1348, %v1570
      %v1806 = vmax.f32 %v1349, %v1574
      %v1807 = vmax.f32 %v1350, %v1576
      %v1808 = vmax.f32 %v1351, %v1578
      %v1809 = vmax.f32 %v1352, %v1577
      %v1810 = vmax.f32 %v1353, %v1581
      %v1811 = vmax.f32 %v1354, %v1583
      %v1812 = vmax.f32 %v1355, %v1585
      %v1813 = vmax.f32 %v1356, %v1584
      %v1814 = vmax.f32 %v1357, %v1588
      %v1815 = vmax.f32 %v1358, %v1590
      %v1816 = vmax.f32 %v1359, %v1592
      %v1817 = vmax.f32 %v1360, %v1591
      %v1818 = vmax.f32 %v1361, %v1595
      %v1819 = vmax.f32 %v1362, %v1597
      %v1820 = vmax.f32 %v1363, %v1599
      %v1821 = vmax.f32 %v1364, %v1598
      %v1822 = vmax.f32 %v1365, %v1602
      %v1823 = vmax.f32 %v1366, %v1604
      %v1824 = vmax.f32 %v1367, %v1606
      %v1825 = vmax.f32 %v1368, %v1605
      %v1826 = vmax.f32 %v1369, %v1609
      %v1827 = vmax.f32 %v1370, %v1611
      %v1828 = vmax.f32 %v1371, %v1613
      %v1829 = vmax.f32 %v1372, %v1612
      %v1830 = vmax.f32 %v1373, %v1616
      %v1831 = vmax.f32 %v1374, %v1618
      %v1832 = vmax.f32 %v1375, %v1620
      %v1833 = vmax.f32 %v1376, %v1619
      %v1834 = vmax.f32 %v1377, %v1623
      %v1835 = vmax.f32 %v1378, %v1625
      %v1836 = vmax.f32 %v1379, %v1627
      %v1837 = vmax.f32 %v1380, %v1626
      %v1838 = vmax.f32 %v1381, %v1630
      %v1839 = vmax.f32 %v1382, %v1632
      %v1840 = vmax.f32 %v1383, %v1634
      %v1841 = vmax.f32 %v1384, %v1633
      %v1842 = vmax.f32 %v1385, %v1637
      %v1843 = vmax.f32 %v1386, %v1639
      %v1844 = vmax.f32 %v1387, %v1641
      %v1845 = vmax.f32 %v1388, %v1640
      %v1846 = vmax.f32 %v1389, %v1644
      %v1847 = vmax.f32 %v1390, %v1646
      %v1848 = vmax.f32 %v1391, %v1648
      %v1849 = vmax.f32 %v1392, %v1647
      %v1850 = vmax.f32 %v1393, %v1651
      %v1851 = vmax.f32 %v1394, %v1653
      %v1852 = vmax.f32 %v1395, %v1655
      %v1853 = vmax.f32 %v1396, %v1654
      %v1854 = vmax.f32 %v1397, %v1658
      %v1855 = vmax.f32 %v1398, %v1660
      %v1856 = vmax.f32 %v1399, %v1662
      %v1857 = vmax.f32 %v1400, %v1661
      %v1858 = vmax.f32 %v1401, %v1665
      %v1859 = vmax.f32 %v1402, %v1667
      %v1860 = vmax.f32 %v1403, %v1669
      %v1861 = vmax.f32 %v1404, %v1668
      %v1862 = vpack.c.bf16 %v1766, %v1766
      %v1863 = vpack.c.bf16 %v1767, %v1767
      %v1864 = vpack.c.bf16 %v1768, %v1768
      %v1865 = vpack.c.bf16 %v1769, %v1769
      %v1866 = vpack.c.bf16 %v1770, %v1770
      %v1867 = vpack.c.bf16 %v1771, %v1771
      %v1868 = vpack.c.bf16 %v1772, %v1772
      %v1869 = vpack.c.bf16 %v1773, %v1773
      %v1870 = vpack.c.bf16 %v1774, %v1774
      %v1871 = vpack.c.bf16 %v1775, %v1775
      %v1872 = vpack.c.bf16 %v1776, %v1776
      %v1873 = vpack.c.bf16 %v1777, %v1777
      %v1874 = vpack.c.bf16 %v1778, %v1778
      %v1875 = vpack.c.bf16 %v1779, %v1779
      %v1876 = vpack.c.bf16 %v1780, %v1780
      %v1877 = vpack.c.bf16 %v1781, %v1781
      %v1878 = vpack.c.bf16 %v1782, %v1782
      %v1879 = vpack.c.bf16 %v1783, %v1783
      %v1880 = vpack.c.bf16 %v1784, %v1784
      %v1881 = vpack.c.bf16 %v1785, %v1785
      %v1882 = vpack.c.bf16 %v1786, %v1786
      %v1883 = vpack.c.bf16 %v1787, %v1787
      %v1884 = vpack.c.bf16 %v1788, %v1788
      %v1885 = vpack.c.bf16 %v1789, %v1789
      %v1886 = vpack.c.bf16 %v1790, %v1790
      %v1887 = vpack.c.bf16 %v1791, %v1791
      %v1888 = vpack.c.bf16 %v1792, %v1792
      %v1889 = vpack.c.bf16 %v1793, %v1793
      %v1890 = vpack.c.bf16 %v1794, %v1794
      %v1891 = vpack.c.bf16 %v1795, %v1795
      %v1892 = vpack.c.bf16 %v1796, %v1796
      %v1893 = vpack.c.bf16 %v1797, %v1797
      %v1894 = vpack.c.bf16 %v1798, %v1798
      %v1895 = vpack.c.bf16 %v1799, %v1799
      %v1896 = vpack.c.bf16 %v1800, %v1800
      %v1897 = vpack.c.bf16 %v1801, %v1801
      %v1898 = vpack.c.bf16 %v1802, %v1802
      %v1899 = vpack.c.bf16 %v1803, %v1803
      %v1900 = vpack.c.bf16 %v1804, %v1804
      %v1901 = vpack.c.bf16 %v1805, %v1805
      %v1902 = vpack.c.bf16 %v1806, %v1806
      %v1903 = vpack.c.bf16 %v1807, %v1807
      %v1904 = vpack.c.bf16 %v1808, %v1808
      %v1905 = vpack.c.bf16 %v1809, %v1809
      %v1906 = vpack.c.bf16 %v1810, %v1810
      %v1907 = vpack.c.bf16 %v1811, %v1811
      %v1908 = vpack.c.bf16 %v1812, %v1812
      %v1909 = vpack.c.bf16 %v1813, %v1813
      %v1910 = vpack.c.bf16 %v1814, %v1814
      %v1911 = vpack.c.bf16 %v1815, %v1815
      %v1912 = vpack.c.bf16 %v1816, %v1816
      %v1913 = vpack.c.bf16 %v1817, %v1817
      %v1914 = vpack.c.bf16 %v1818, %v1818
      %v1915 = vpack.c.bf16 %v1819, %v1819
      %v1916 = vpack.c.bf16 %v1820, %v1820
      %v1917 = vpack.c.bf16 %v1821, %v1821
      %v1918 = vpack.c.bf16 %v1822, %v1822
      %v1919 = vpack.c.bf16 %v1823, %v1823
      %v1920 = vpack.c.bf16 %v1824, %v1824
      %v1921 = vpack.c.bf16 %v1825, %v1825
      %v1922 = vpack.c.bf16 %v1826, %v1826
      %v1923 = vpack.c.bf16 %v1827, %v1827
      %v1924 = vpack.c.bf16 %v1828, %v1828
      %v1925 = vpack.c.bf16 %v1829, %v1829
      %v1926 = vpack.c.bf16 %v1830, %v1830
      %v1927 = vpack.c.bf16 %v1831, %v1831
      %v1928 = vpack.c.bf16 %v1832, %v1832
      %v1929 = vpack.c.bf16 %v1833, %v1833
      %v1930 = vpack.c.bf16 %v1834, %v1834
      %v1931 = vpack.c.bf16 %v1835, %v1835
      %v1932 = vpack.c.bf16 %v1836, %v1836
      %v1933 = vpack.c.bf16 %v1837, %v1837
      %v1934 = vpack.c.bf16 %v1838, %v1838
      %v1935 = vpack.c.bf16 %v1839, %v1839
      %v1936 = vpack.c.bf16 %v1840, %v1840
      %v1937 = vpack.c.bf16 %v1841, %v1841
      %v1938 = vpack.c.bf16 %v1842, %v1842
      %v1939 = vpack.c.bf16 %v1843, %v1843
      %v1940 = vpack.c.bf16 %v1844, %v1844
      %v1941 = vpack.c.bf16 %v1845, %v1845
      %v1942 = vpack.c.bf16 %v1846, %v1846
      %v1943 = vpack.c.bf16 %v1847, %v1847
      %v1944 = vpack.c.bf16 %v1848, %v1848
      %v1945 = vpack.c.bf16 %v1849, %v1849
      %v1946 = vpack.c.bf16 %v1850, %v1850
      %v1947 = vpack.c.bf16 %v1851, %v1851
      %v1948 = vpack.c.bf16 %v1852, %v1852
      %v1949 = vpack.c.bf16 %v1853, %v1853
      %v1950 = vpack.c.bf16 %v1854, %v1854
      %v1951 = vpack.c.bf16 %v1855, %v1855
      %v1952 = vpack.c.bf16 %v1856, %v1856
      %v1953 = vpack.c.bf16 %v1857, %v1857
      %v1954 = vpack.c.bf16 %v1858, %v1858
      %v1955 = vpack.c.bf16 %v1859, %v1859
      %v1956 = vpack.c.bf16 %v1860, %v1860
      %v1957 = vpack.c.bf16 %v1861, %v1861
      %v1958 = vunpack.c.l.bf16 %v1862
      %v1959 = vunpack.c.l.bf16 %v1863
      %v1960 = vunpack.c.l.bf16 %v1864
      %v1961 = vunpack.c.l.bf16 %v1865
      %v1962 = vunpack.c.l.bf16 %v1866
      %v1963 = vunpack.c.l.bf16 %v1867
      %v1964 = vunpack.c.l.bf16 %v1868
      %v1965 = vunpack.c.l.bf16 %v1869
      %v1966 = vunpack.c.l.bf16 %v1870
      %v1967 = vunpack.c.l.bf16 %v1871
      %v1968 = vunpack.c.l.bf16 %v1872
      %v1969 = vunpack.c.l.bf16 %v1873
      %v1970 = vunpack.c.l.bf16 %v1874
      %v1971 = vunpack.c.l.bf16 %v1875
      %v1972 = vunpack.c.l.bf16 %v1876
      %v1973 = vunpack.c.l.bf16 %v1877
      %v1974 = vunpack.c.l.bf16 %v1878
      %v1975 = vunpack.c.l.bf16 %v1879
      %v1976 = vunpack.c.l.bf16 %v1880
      %v1977 = vunpack.c.l.bf16 %v1881
      %v1978 = vunpack.c.l.bf16 %v1882
      %v1979 = vunpack.c.l.bf16 %v1883
      %v1980 = vunpack.c.l.bf16 %v1884
      %v1981 = vunpack.c.l.bf16 %v1885
      %v1982 = vunpack.c.l.bf16 %v1886
      %v1983 = vunpack.c.l.bf16 %v1887
      %v1984 = vunpack.c.l.bf16 %v1888
      %v1985 = vunpack.c.l.bf16 %v1889
      %v1986 = vunpack.c.l.bf16 %v1890
      %v1987 = vunpack.c.l.bf16 %v1891
      %v1988 = vunpack.c.l.bf16 %v1892
      %v1989 = vunpack.c.l.bf16 %v1893
      %v1990 = vunpack.c.l.bf16 %v1894
      %v1991 = vunpack.c.l.bf16 %v1895
      %v1992 = vunpack.c.l.bf16 %v1896
      %v1993 = vunpack.c.l.bf16 %v1897
      %v1994 = vunpack.c.l.bf16 %v1898
      %v1995 = vunpack.c.l.bf16 %v1899
      %v1996 = vunpack.c.l.bf16 %v1900
      %v1997 = vunpack.c.l.bf16 %v1901
      %v1998 = vunpack.c.l.bf16 %v1902
      %v1999 = vunpack.c.l.bf16 %v1903
      %v2000 = vunpack.c.l.bf16 %v1904
      %v2001 = vunpack.c.l.bf16 %v1905
      %v2002 = vunpack.c.l.bf16 %v1906
      %v2003 = vunpack.c.l.bf16 %v1907
      %v2004 = vunpack.c.l.bf16 %v1908
      %v2005 = vunpack.c.l.bf16 %v1909
      %v2006 = vunpack.c.l.bf16 %v1910
      %v2007 = vunpack.c.l.bf16 %v1911
      %v2008 = vunpack.c.l.bf16 %v1912
      %v2009 = vunpack.c.l.bf16 %v1913
      %v2010 = vunpack.c.l.bf16 %v1914
      %v2011 = vunpack.c.l.bf16 %v1915
      %v2012 = vunpack.c.l.bf16 %v1916
      %v2013 = vunpack.c.l.bf16 %v1917
      %v2014 = vunpack.c.l.bf16 %v1918
      %v2015 = vunpack.c.l.bf16 %v1919
      %v2016 = vunpack.c.l.bf16 %v1920
      %v2017 = vunpack.c.l.bf16 %v1921
      %v2018 = vunpack.c.l.bf16 %v1922
      %v2019 = vunpack.c.l.bf16 %v1923
      %v2020 = vunpack.c.l.bf16 %v1924
      %v2021 = vunpack.c.l.bf16 %v1925
      %v2022 = vunpack.c.l.bf16 %v1926
      %v2023 = vunpack.c.l.bf16 %v1927
      %v2024 = vunpack.c.l.bf16 %v1928
      %v2025 = vunpack.c.l.bf16 %v1929
      %v2026 = vunpack.c.l.bf16 %v1930
      %v2027 = vunpack.c.l.bf16 %v1931
      %v2028 = vunpack.c.l.bf16 %v1932
      %v2029 = vunpack.c.l.bf16 %v1933
      %v2030 = vunpack.c.l.bf16 %v1934
      %v2031 = vunpack.c.l.bf16 %v1935
      %v2032 = vunpack.c.l.bf16 %v1936
      %v2033 = vunpack.c.l.bf16 %v1937
      %v2034 = vunpack.c.l.bf16 %v1938
      %v2035 = vunpack.c.l.bf16 %v1939
      %v2036 = vunpack.c.l.bf16 %v1940
      %v2037 = vunpack.c.l.bf16 %v1941
      %v2038 = vunpack.c.l.bf16 %v1942
      %v2039 = vunpack.c.l.bf16 %v1943
      %v2040 = vunpack.c.l.bf16 %v1944
      %v2041 = vunpack.c.l.bf16 %v1945
      %v2042 = vunpack.c.l.bf16 %v1946
      %v2043 = vunpack.c.l.bf16 %v1947
      %v2044 = vunpack.c.l.bf16 %v1948
      %v2045 = vunpack.c.l.bf16 %v1949
      %v2046 = vunpack.c.l.bf16 %v1950
      %v2047 = vunpack.c.l.bf16 %v1951
      %v2048 = vunpack.c.l.bf16 %v1952
      %v2049 = vunpack.c.l.bf16 %v1953
      %v2050 = vunpack.c.l.bf16 %v1954
      %v2051 = vunpack.c.l.bf16 %v1955
      %v2052 = vunpack.c.l.bf16 %v1956
      %v2053 = vunpack.c.l.bf16 %v1957
      %vm2150 = vcmask 1045504
      %v2151 = vrot.slane %v1958, 2
      %v2152 = vrot.slane %v1959, 2
      %v2153 = vsel %vm2150, %v2151, %v2152
      %v2154 = vrot.slane %v1960, 2
      %v2155 = vsel %vm2150, %v2152, %v2154
      %v2156 = vrot.slane %v1961, 2
      %v2157 = vsel %vm2150, %v2154, %v2156
      %v2158 = vrot.slane %v1962, 2
      %v2159 = vrot.slane %v1963, 2
      %v2160 = vsel %vm2150, %v2158, %v2159
      %v2161 = vrot.slane %v1964, 2
      %v2162 = vsel %vm2150, %v2159, %v2161
      %v2163 = vrot.slane %v1965, 2
      %v2164 = vsel %vm2150, %v2161, %v2163
      %v2165 = vrot.slane %v1966, 2
      %v2166 = vrot.slane %v1967, 2
      %v2167 = vsel %vm2150, %v2165, %v2166
      %v2168 = vrot.slane %v1968, 2
      %v2169 = vsel %vm2150, %v2166, %v2168
      %v2170 = vrot.slane %v1969, 2
      %v2171 = vsel %vm2150, %v2168, %v2170
      %v2172 = vrot.slane %v1970, 2
      %v2173 = vrot.slane %v1971, 2
      %v2174 = vsel %vm2150, %v2172, %v2173
      %v2175 = vrot.slane %v1972, 2
      %v2176 = vsel %vm2150, %v2173, %v2175
      %v2177 = vrot.slane %v1973, 2
      %v2178 = vsel %vm2150, %v2175, %v2177
      %v2179 = vrot.slane %v1974, 2
      %v2180 = vrot.slane %v1975, 2
      %v2181 = vsel %vm2150, %v2179, %v2180
      %v2182 = vrot.slane %v1976, 2
      %v2183 = vsel %vm2150, %v2180, %v2182
      %v2184 = vrot.slane %v1977, 2
      %v2185 = vsel %vm2150, %v2182, %v2184
      %v2186 = vrot.slane %v1978, 2
      %v2187 = vrot.slane %v1979, 2
      %v2188 = vsel %vm2150, %v2186, %v2187
      %v2189 = vrot.slane %v1980, 2
      %v2190 = vsel %vm2150, %v2187, %v2189
      %v2191 = vrot.slane %v1981, 2
      %v2192 = vsel %vm2150, %v2189, %v2191
      %v2193 = vrot.slane %v1982, 2
      %v2194 = vrot.slane %v1983, 2
      %v2195 = vsel %vm2150, %v2193, %v2194
      %v2196 = vrot.slane %v1984, 2
      %v2197 = vsel %vm2150, %v2194, %v2196
      %v2198 = vrot.slane %v1985, 2
      %v2199 = vsel %vm2150, %v2196, %v2198
      %v2200 = vrot.slane %v1986, 2
      %v2201 = vrot.slane %v1987, 2
      %v2202 = vsel %vm2150, %v2200, %v2201
      %v2203 = vrot.slane %v1988, 2
      %v2204 = vsel %vm2150, %v2201, %v2203
      %v2205 = vrot.slane %v1989, 2
      %v2206 = vsel %vm2150, %v2203, %v2205
      %v2207 = vrot.slane %v1990, 2
      %v2208 = vrot.slane %v1991, 2
      %v2209 = vsel %vm2150, %v2207, %v2208
      %v2210 = vrot.slane %v1992, 2
      %v2211 = vsel %vm2150, %v2208, %v2210
      %v2212 = vrot.slane %v1993, 2
      %v2213 = vsel %vm2150, %v2210, %v2212
      %v2214 = vrot.slane %v1994, 2
      %v2215 = vrot.slane %v1995, 2
      %v2216 = vsel %vm2150, %v2214, %v2215
      %v2217 = vrot.slane %v1996, 2
      %v2218 = vsel %vm2150, %v2215, %v2217
      %v2219 = vrot.slane %v1997, 2
      %v2220 = vsel %vm2150, %v2217, %v2219
      %v2221 = vrot.slane %v1998, 2
      %v2222 = vrot.slane %v1999, 2
      %v2223 = vsel %vm2150, %v2221, %v2222
      %v2224 = vrot.slane %v2000, 2
      %v2225 = vsel %vm2150, %v2222, %v2224
      %v2226 = vrot.slane %v2001, 2
      %v2227 = vsel %vm2150, %v2224, %v2226
      %v2228 = vrot.slane %v2002, 2
      %v2229 = vrot.slane %v2003, 2
      %v2230 = vsel %vm2150, %v2228, %v2229
      %v2231 = vrot.slane %v2004, 2
      %v2232 = vsel %vm2150, %v2229, %v2231
      %v2233 = vrot.slane %v2005, 2
      %v2234 = vsel %vm2150, %v2231, %v2233
      %v2235 = vrot.slane %v2006, 2
      %v2236 = vrot.slane %v2007, 2
      %v2237 = vsel %vm2150, %v2235, %v2236
      %v2238 = vrot.slane %v2008, 2
      %v2239 = vsel %vm2150, %v2236, %v2238
      %v2240 = vrot.slane %v2009, 2
      %v2241 = vsel %vm2150, %v2238, %v2240
      %v2242 = vrot.slane %v2010, 2
      %v2243 = vrot.slane %v2011, 2
      %v2244 = vsel %vm2150, %v2242, %v2243
      %v2245 = vrot.slane %v2012, 2
      %v2246 = vsel %vm2150, %v2243, %v2245
      %v2247 = vrot.slane %v2013, 2
      %v2248 = vsel %vm2150, %v2245, %v2247
      %v2249 = vrot.slane %v2014, 2
      %v2250 = vrot.slane %v2015, 2
      %v2251 = vsel %vm2150, %v2249, %v2250
      %v2252 = vrot.slane %v2016, 2
      %v2253 = vsel %vm2150, %v2250, %v2252
      %v2254 = vrot.slane %v2017, 2
      %v2255 = vsel %vm2150, %v2252, %v2254
      %v2256 = vrot.slane %v2018, 2
      %v2257 = vrot.slane %v2019, 2
      %v2258 = vsel %vm2150, %v2256, %v2257
      %v2259 = vrot.slane %v2020, 2
      %v2260 = vsel %vm2150, %v2257, %v2259
      %v2261 = vrot.slane %v2021, 2
      %v2262 = vsel %vm2150, %v2259, %v2261
      %v2263 = vrot.slane %v2022, 2
      %v2264 = vrot.slane %v2023, 2
      %v2265 = vsel %vm2150, %v2263, %v2264
      %v2266 = vrot.slane %v2024, 2
      %v2267 = vsel %vm2150, %v2264, %v2266
      %v2268 = vrot.slane %v2025, 2
      %v2269 = vsel %vm2150, %v2266, %v2268
      %v2270 = vrot.slane %v2026, 2
      %v2271 = vrot.slane %v2027, 2
      %v2272 = vsel %vm2150, %v2270, %v2271
      %v2273 = vrot.slane %v2028, 2
      %v2274 = vsel %vm2150, %v2271, %v2273
      %v2275 = vrot.slane %v2029, 2
      %v2276 = vsel %vm2150, %v2273, %v2275
      %v2277 = vrot.slane %v2030, 2
      %v2278 = vrot.slane %v2031, 2
      %v2279 = vsel %vm2150, %v2277, %v2278
      %v2280 = vrot.slane %v2032, 2
      %v2281 = vsel %vm2150, %v2278, %v2280
      %v2282 = vrot.slane %v2033, 2
      %v2283 = vsel %vm2150, %v2280, %v2282
      %v2284 = vrot.slane %v2034, 2
      %v2285 = vrot.slane %v2035, 2
      %v2286 = vsel %vm2150, %v2284, %v2285
      %v2287 = vrot.slane %v2036, 2
      %v2288 = vsel %vm2150, %v2285, %v2287
      %v2289 = vrot.slane %v2037, 2
      %v2290 = vsel %vm2150, %v2287, %v2289
      %v2291 = vrot.slane %v2038, 2
      %v2292 = vrot.slane %v2039, 2
      %v2293 = vsel %vm2150, %v2291, %v2292
      %v2294 = vrot.slane %v2040, 2
      %v2295 = vsel %vm2150, %v2292, %v2294
      %v2296 = vrot.slane %v2041, 2
      %v2297 = vsel %vm2150, %v2294, %v2296
      %v2298 = vrot.slane %v2042, 2
      %v2299 = vrot.slane %v2043, 2
      %v2300 = vsel %vm2150, %v2298, %v2299
      %v2301 = vrot.slane %v2044, 2
      %v2302 = vsel %vm2150, %v2299, %v2301
      %v2303 = vrot.slane %v2045, 2
      %v2304 = vsel %vm2150, %v2301, %v2303
      %v2305 = vrot.slane %v2046, 2
      %v2306 = vrot.slane %v2047, 2
      %v2307 = vsel %vm2150, %v2305, %v2306
      %v2308 = vrot.slane %v2048, 2
      %v2309 = vsel %vm2150, %v2306, %v2308
      %v2310 = vrot.slane %v2049, 2
      %v2311 = vsel %vm2150, %v2308, %v2310
      %v2312 = vrot.slane %v2050, 2
      %v2313 = vrot.slane %v2051, 2
      %v2314 = vsel %vm2150, %v2312, %v2313
      %v2315 = vrot.slane %v2052, 2
      %v2316 = vsel %vm2150, %v2313, %v2315
      %v2317 = vrot.slane %v2053, 2
      %v2318 = vsel %vm2150, %v2315, %v2317
      %v2415 = vmax.f32 %v1958, %v2153
      %v2416 = vmax.f32 %v1959, %v2155
      %v2417 = vmax.f32 %v1960, %v2157
      %v2418 = vmax.f32 %v1961, %v2156
      %v2419 = vmax.f32 %v1962, %v2160
      %v2420 = vmax.f32 %v1963, %v2162
      %v2421 = vmax.f32 %v1964, %v2164
      %v2422 = vmax.f32 %v1965, %v2163
      %v2423 = vmax.f32 %v1966, %v2167
      %v2424 = vmax.f32 %v1967, %v2169
      %v2425 = vmax.f32 %v1968, %v2171
      %v2426 = vmax.f32 %v1969, %v2170
      %v2427 = vmax.f32 %v1970, %v2174
      %v2428 = vmax.f32 %v1971, %v2176
      %v2429 = vmax.f32 %v1972, %v2178
      %v2430 = vmax.f32 %v1973, %v2177
      %v2431 = vmax.f32 %v1974, %v2181
      %v2432 = vmax.f32 %v1975, %v2183
      %v2433 = vmax.f32 %v1976, %v2185
      %v2434 = vmax.f32 %v1977, %v2184
      %v2435 = vmax.f32 %v1978, %v2188
      %v2436 = vmax.f32 %v1979, %v2190
      %v2437 = vmax.f32 %v1980, %v2192
      %v2438 = vmax.f32 %v1981, %v2191
      %v2439 = vmax.f32 %v1982, %v2195
      %v2440 = vmax.f32 %v1983, %v2197
      %v2441 = vmax.f32 %v1984, %v2199
      %v2442 = vmax.f32 %v1985, %v2198
      %v2443 = vmax.f32 %v1986, %v2202
      %v2444 = vmax.f32 %v1987, %v2204
      %v2445 = vmax.f32 %v1988, %v2206
      %v2446 = vmax.f32 %v1989, %v2205
      %v2447 = vmax.f32 %v1990, %v2209
      %v2448 = vmax.f32 %v1991, %v2211
      %v2449 = vmax.f32 %v1992, %v2213
      %v2450 = vmax.f32 %v1993, %v2212
      %v2451 = vmax.f32 %v1994, %v2216
      %v2452 = vmax.f32 %v1995, %v2218
      %v2453 = vmax.f32 %v1996, %v2220
      %v2454 = vmax.f32 %v1997, %v2219
      %v2455 = vmax.f32 %v1998, %v2223
      %v2456 = vmax.f32 %v1999, %v2225
      %v2457 = vmax.f32 %v2000, %v2227
      %v2458 = vmax.f32 %v2001, %v2226
      %v2459 = vmax.f32 %v2002, %v2230
      %v2460 = vmax.f32 %v2003, %v2232
      %v2461 = vmax.f32 %v2004, %v2234
      %v2462 = vmax.f32 %v2005, %v2233
      %v2463 = vmax.f32 %v2006, %v2237
      %v2464 = vmax.f32 %v2007, %v2239
      %v2465 = vmax.f32 %v2008, %v2241
      %v2466 = vmax.f32 %v2009, %v2240
      %v2467 = vmax.f32 %v2010, %v2244
      %v2468 = vmax.f32 %v2011, %v2246
      %v2469 = vmax.f32 %v2012, %v2248
      %v2470 = vmax.f32 %v2013, %v2247
      %v2471 = vmax.f32 %v2014, %v2251
      %v2472 = vmax.f32 %v2015, %v2253
      %v2473 = vmax.f32 %v2016, %v2255
      %v2474 = vmax.f32 %v2017, %v2254
      %v2475 = vmax.f32 %v2018, %v2258
      %v2476 = vmax.f32 %v2019, %v2260
      %v2477 = vmax.f32 %v2020, %v2262
      %v2478 = vmax.f32 %v2021, %v2261
      %v2479 = vmax.f32 %v2022, %v2265
      %v2480 = vmax.f32 %v2023, %v2267
      %v2481 = vmax.f32 %v2024, %v2269
      %v2482 = vmax.f32 %v2025, %v2268
      %v2483 = vmax.f32 %v2026, %v2272
      %v2484 = vmax.f32 %v2027, %v2274
      %v2485 = vmax.f32 %v2028, %v2276
      %v2486 = vmax.f32 %v2029, %v2275
      %v2487 = vmax.f32 %v2030, %v2279
      %v2488 = vmax.f32 %v2031, %v2281
      %v2489 = vmax.f32 %v2032, %v2283
      %v2490 = vmax.f32 %v2033, %v2282
      %v2491 = vmax.f32 %v2034, %v2286
      %v2492 = vmax.f32 %v2035, %v2288
      %v2493 = vmax.f32 %v2036, %v2290
      %v2494 = vmax.f32 %v2037, %v2289
      %v2495 = vmax.f32 %v2038, %v2293
      %v2496 = vmax.f32 %v2039, %v2295
      %v2497 = vmax.f32 %v2040, %v2297
      %v2498 = vmax.f32 %v2041, %v2296
      %v2499 = vmax.f32 %v2042, %v2300
      %v2500 = vmax.f32 %v2043, %v2302
      %v2501 = vmax.f32 %v2044, %v2304
      %v2502 = vmax.f32 %v2045, %v2303
      %v2503 = vmax.f32 %v2046, %v2307
      %v2504 = vmax.f32 %v2047, %v2309
      %v2505 = vmax.f32 %v2048, %v2311
      %v2506 = vmax.f32 %v2049, %v2310
      %v2507 = vmax.f32 %v2050, %v2314
      %v2508 = vmax.f32 %v2051, %v2316
      %v2509 = vmax.f32 %v2052, %v2318
      %v2510 = vmax.f32 %v2053, %v2317
      %v2511 = vpack.c.bf16 %v2415, %v2415
      %v2512 = vpack.c.bf16 %v2416, %v2416
      %v2513 = vpack.c.bf16 %v2417, %v2417
      %v2514 = vpack.c.bf16 %v2418, %v2418
      %v2515 = vpack.c.bf16 %v2419, %v2419
      %v2516 = vpack.c.bf16 %v2420, %v2420
      %v2517 = vpack.c.bf16 %v2421, %v2421
      %v2518 = vpack.c.bf16 %v2422, %v2422
      %v2519 = vpack.c.bf16 %v2423, %v2423
      %v2520 = vpack.c.bf16 %v2424, %v2424
      %v2521 = vpack.c.bf16 %v2425, %v2425
      %v2522 = vpack.c.bf16 %v2426, %v2426
      %v2523 = vpack.c.bf16 %v2427, %v2427
      %v2524 = vpack.c.bf16 %v2428, %v2428
      %v2525 = vpack.c.bf16 %v2429, %v2429
      %v2526 = vpack.c.bf16 %v2430, %v2430
      %v2527 = vpack.c.bf16 %v2431, %v2431
      %v2528 = vpack.c.bf16 %v2432, %v2432
      %v2529 = vpack.c.bf16 %v2433, %v2433
      %v2530 = vpack.c.bf16 %v2434, %v2434
      %v2531 = vpack.c.bf16 %v2435, %v2435
      %v2532 = vpack.c.bf16 %v2436, %v2436
      %v2533 = vpack.c.bf16 %v2437, %v2437
      %v2534 = vpack.c.bf16 %v2438, %v2438
      %v2535 = vpack.c.bf16 %v2439, %v2439
      %v2536 = vpack.c.bf16 %v2440, %v2440
      %v2537 = vpack.c.bf16 %v2441, %v2441
      %v2538 = vpack.c.bf16 %v2442, %v2442
      %v2539 = vpack.c.bf16 %v2443, %v2443
      %v2540 = vpack.c.bf16 %v2444, %v2444
      %v2541 = vpack.c.bf16 %v2445, %v2445
      %v2542 = vpack.c.bf16 %v2446, %v2446
      %v2543 = vpack.c.bf16 %v2447, %v2447
      %v2544 = vpack.c.bf16 %v2448, %v2448
      %v2545 = vpack.c.bf16 %v2449, %v2449
      %v2546 = vpack.c.bf16 %v2450, %v2450
      %v2547 = vpack.c.bf16 %v2451, %v2451
      %v2548 = vpack.c.bf16 %v2452, %v2452
      %v2549 = vpack.c.bf16 %v2453, %v2453
      %v2550 = vpack.c.bf16 %v2454, %v2454
      %v2551 = vpack.c.bf16 %v2455, %v2455
      %v2552 = vpack.c.bf16 %v2456, %v2456
      %v2553 = vpack.c.bf16 %v2457, %v2457
      %v2554 = vpack.c.bf16 %v2458, %v2458
      %v2555 = vpack.c.bf16 %v2459, %v2459
      %v2556 = vpack.c.bf16 %v2460, %v2460
      %v2557 = vpack.c.bf16 %v2461, %v2461
      %v2558 = vpack.c.bf16 %v2462, %v2462
      %v2559 = vpack.c.bf16 %v2463, %v2463
      %v2560 = vpack.c.bf16 %v2464, %v2464
      %v2561 = vpack.c.bf16 %v2465, %v2465
      %v2562 = vpack.c.bf16 %v2466, %v2466
      %v2563 = vpack.c.bf16 %v2467, %v2467
      %v2564 = vpack.c.bf16 %v2468, %v2468
      %v2565 = vpack.c.bf16 %v2469, %v2469
      %v2566 = vpack.c.bf16 %v2470, %v2470
      %v2567 = vpack.c.bf16 %v2471, %v2471
      %v2568 = vpack.c.bf16 %v2472, %v2472
      %v2569 = vpack.c.bf16 %v2473, %v2473
      %v2570 = vpack.c.bf16 %v2474, %v2474
      %v2571 = vpack.c.bf16 %v2475, %v2475
      %v2572 = vpack.c.bf16 %v2476, %v2476
      %v2573 = vpack.c.bf16 %v2477, %v2477
      %v2574 = vpack.c.bf16 %v2478, %v2478
      %v2575 = vpack.c.bf16 %v2479, %v2479
      %v2576 = vpack.c.bf16 %v2480, %v2480
      %v2577 = vpack.c.bf16 %v2481, %v2481
      %v2578 = vpack.c.bf16 %v2482, %v2482
      %v2579 = vpack.c.bf16 %v2483, %v2483
      %v2580 = vpack.c.bf16 %v2484, %v2484
      %v2581 = vpack.c.bf16 %v2485, %v2485
      %v2582 = vpack.c.bf16 %v2486, %v2486
      %v2583 = vpack.c.bf16 %v2487, %v2487
      %v2584 = vpack.c.bf16 %v2488, %v2488
      %v2585 = vpack.c.bf16 %v2489, %v2489
      %v2586 = vpack.c.bf16 %v2490, %v2490
      %v2587 = vpack.c.bf16 %v2491, %v2491
      %v2588 = vpack.c.bf16 %v2492, %v2492
      %v2589 = vpack.c.bf16 %v2493, %v2493
      %v2590 = vpack.c.bf16 %v2494, %v2494
      %v2591 = vpack.c.bf16 %v2495, %v2495
      %v2592 = vpack.c.bf16 %v2496, %v2496
      %v2593 = vpack.c.bf16 %v2497, %v2497
      %v2594 = vpack.c.bf16 %v2498, %v2498
      %v2595 = vpack.c.bf16 %v2499, %v2499
      %v2596 = vpack.c.bf16 %v2500, %v2500
      %v2597 = vpack.c.bf16 %v2501, %v2501
      %v2598 = vpack.c.bf16 %v2502, %v2502
      %v2599 = vpack.c.bf16 %v2503, %v2503
      %v2600 = vpack.c.bf16 %v2504, %v2504
      %v2601 = vpack.c.bf16 %v2505, %v2505
      %v2602 = vpack.c.bf16 %v2506, %v2506
      %v2603 = vpack.c.bf16 %v2507, %v2507
      %v2604 = vpack.c.bf16 %v2508, %v2508
      %v2605 = vpack.c.bf16 %v2509, %v2509
      %v2606 = vpack.c.bf16 %v2510, %v2510
      %v2607 = vunpack.c.l.bf16 %v2511
      %v2608 = vunpack.c.l.bf16 %v2512
      %v2609 = vunpack.c.l.bf16 %v2513
      %v2610 = vunpack.c.l.bf16 %v2514
      %v2611 = vunpack.c.l.bf16 %v2515
      %v2612 = vunpack.c.l.bf16 %v2516
      %v2613 = vunpack.c.l.bf16 %v2517
      %v2614 = vunpack.c.l.bf16 %v2518
      %v2615 = vunpack.c.l.bf16 %v2519
      %v2616 = vunpack.c.l.bf16 %v2520
      %v2617 = vunpack.c.l.bf16 %v2521
      %v2618 = vunpack.c.l.bf16 %v2522
      %v2619 = vunpack.c.l.bf16 %v2523
      %v2620 = vunpack.c.l.bf16 %v2524
      %v2621 = vunpack.c.l.bf16 %v2525
      %v2622 = vunpack.c.l.bf16 %v2526
      %v2623 = vunpack.c.l.bf16 %v2527
      %v2624 = vunpack.c.l.bf16 %v2528
      %v2625 = vunpack.c.l.bf16 %v2529
      %v2626 = vunpack.c.l.bf16 %v2530
      %v2627 = vunpack.c.l.bf16 %v2531
      %v2628 = vunpack.c.l.bf16 %v2532
      %v2629 = vunpack.c.l.bf16 %v2533
      %v2630 = vunpack.c.l.bf16 %v2534
      %v2631 = vunpack.c.l.bf16 %v2535
      %v2632 = vunpack.c.l.bf16 %v2536
      %v2633 = vunpack.c.l.bf16 %v2537
      %v2634 = vunpack.c.l.bf16 %v2538
      %v2635 = vunpack.c.l.bf16 %v2539
      %v2636 = vunpack.c.l.bf16 %v2540
      %v2637 = vunpack.c.l.bf16 %v2541
      %v2638 = vunpack.c.l.bf16 %v2542
      %v2639 = vunpack.c.l.bf16 %v2543
      %v2640 = vunpack.c.l.bf16 %v2544
      %v2641 = vunpack.c.l.bf16 %v2545
      %v2642 = vunpack.c.l.bf16 %v2546
      %v2643 = vunpack.c.l.bf16 %v2547
      %v2644 = vunpack.c.l.bf16 %v2548
      %v2645 = vunpack.c.l.bf16 %v2549
      %v2646 = vunpack.c.l.bf16 %v2550
      %v2647 = vunpack.c.l.bf16 %v2551
      %v2648 = vunpack.c.l.bf16 %v2552
      %v2649 = vunpack.c.l.bf16 %v2553
      %v2650 = vunpack.c.l.bf16 %v2554
      %v2651 = vunpack.c.l.bf16 %v2555
      %v2652 = vunpack.c.l.bf16 %v2556
      %v2653 = vunpack.c.l.bf16 %v2557
      %v2654 = vunpack.c.l.bf16 %v2558
      %v2655 = vunpack.c.l.bf16 %v2559
      %v2656 = vunpack.c.l.bf16 %v2560
      %v2657 = vunpack.c.l.bf16 %v2561
      %v2658 = vunpack.c.l.bf16 %v2562
      %v2659 = vunpack.c.l.bf16 %v2563
      %v2660 = vunpack.c.l.bf16 %v2564
      %v2661 = vunpack.c.l.bf16 %v2565
      %v2662 = vunpack.c.l.bf16 %v2566
      %v2663 = vunpack.c.l.bf16 %v2567
      %v2664 = vunpack.c.l.bf16 %v2568
      %v2665 = vunpack.c.l.bf16 %v2569
      %v2666 = vunpack.c.l.bf16 %v2570
      %v2667 = vunpack.c.l.bf16 %v2571
      %v2668 = vunpack.c.l.bf16 %v2572
      %v2669 = vunpack.c.l.bf16 %v2573
      %v2670 = vunpack.c.l.bf16 %v2574
      %v2671 = vunpack.c.l.bf16 %v2575
      %v2672 = vunpack.c.l.bf16 %v2576
      %v2673 = vunpack.c.l.bf16 %v2577
      %v2674 = vunpack.c.l.bf16 %v2578
      %v2675 = vunpack.c.l.bf16 %v2579
      %v2676 = vunpack.c.l.bf16 %v2580
      %v2677 = vunpack.c.l.bf16 %v2581
      %v2678 = vunpack.c.l.bf16 %v2582
      %v2679 = vunpack.c.l.bf16 %v2583
      %v2680 = vunpack.c.l.bf16 %v2584
      %v2681 = vunpack.c.l.bf16 %v2585
      %v2682 = vunpack.c.l.bf16 %v2586
      %v2683 = vunpack.c.l.bf16 %v2587
      %v2684 = vunpack.c.l.bf16 %v2588
      %v2685 = vunpack.c.l.bf16 %v2589
      %v2686 = vunpack.c.l.bf16 %v2590
      %v2687 = vunpack.c.l.bf16 %v2591
      %v2688 = vunpack.c.l.bf16 %v2592
      %v2689 = vunpack.c.l.bf16 %v2593
      %v2690 = vunpack.c.l.bf16 %v2594
      %v2691 = vunpack.c.l.bf16 %v2595
      %v2692 = vunpack.c.l.bf16 %v2596
      %v2693 = vunpack.c.l.bf16 %v2597
      %v2694 = vunpack.c.l.bf16 %v2598
      %v2695 = vunpack.c.l.bf16 %v2599
      %v2696 = vunpack.c.l.bf16 %v2600
      %v2697 = vunpack.c.l.bf16 %v2601
      %v2698 = vunpack.c.l.bf16 %v2602
      %v2699 = vunpack.c.l.bf16 %v2603
      %v2700 = vunpack.c.l.bf16 %v2604
      %v2701 = vunpack.c.l.bf16 %v2605
      %v2702 = vunpack.c.l.bf16 %v2606
      %vm2703 = vcmask 1043456
      %v2704 = vrot.slane %v1309, 4
      %v2705 = vrot.slane %v1310, 4
      %v2706 = vsel %vm2703, %v2704, %v2705
      %v2707 = vrot.slane %v1311, 4
      %v2708 = vsel %vm2703, %v2705, %v2707
      %v2709 = vrot.slane %v1312, 4
      %v2710 = vsel %vm2703, %v2707, %v2709
      %v2711 = vrot.slane %v1313, 4
      %v2712 = vrot.slane %v1314, 4
      %v2713 = vsel %vm2703, %v2711, %v2712
      %v2714 = vrot.slane %v1315, 4
      %v2715 = vsel %vm2703, %v2712, %v2714
      %v2716 = vrot.slane %v1316, 4
      %v2717 = vsel %vm2703, %v2714, %v2716
      %v2718 = vrot.slane %v1317, 4
      %v2719 = vrot.slane %v1318, 4
      %v2720 = vsel %vm2703, %v2718, %v2719
      %v2721 = vrot.slane %v1319, 4
      %v2722 = vsel %vm2703, %v2719, %v2721
      %v2723 = vrot.slane %v1320, 4
      %v2724 = vsel %vm2703, %v2721, %v2723
      %v2725 = vrot.slane %v1321, 4
      %v2726 = vrot.slane %v1322, 4
      %v2727 = vsel %vm2703, %v2725, %v2726
      %v2728 = vrot.slane %v1323, 4
      %v2729 = vsel %vm2703, %v2726, %v2728
      %v2730 = vrot.slane %v1324, 4
      %v2731 = vsel %vm2703, %v2728, %v2730
      %v2732 = vrot.slane %v1325, 4
      %v2733 = vrot.slane %v1326, 4
      %v2734 = vsel %vm2703, %v2732, %v2733
      %v2735 = vrot.slane %v1327, 4
      %v2736 = vsel %vm2703, %v2733, %v2735
      %v2737 = vrot.slane %v1328, 4
      %v2738 = vsel %vm2703, %v2735, %v2737
      %v2739 = vrot.slane %v1329, 4
      %v2740 = vrot.slane %v1330, 4
      %v2741 = vsel %vm2703, %v2739, %v2740
      %v2742 = vrot.slane %v1331, 4
      %v2743 = vsel %vm2703, %v2740, %v2742
      %v2744 = vrot.slane %v1332, 4
      %v2745 = vsel %vm2703, %v2742, %v2744
      %v2746 = vrot.slane %v1333, 4
      %v2747 = vrot.slane %v1334, 4
      %v2748 = vsel %vm2703, %v2746, %v2747
      %v2749 = vrot.slane %v1335, 4
      %v2750 = vsel %vm2703, %v2747, %v2749
      %v2751 = vrot.slane %v1336, 4
      %v2752 = vsel %vm2703, %v2749, %v2751
      %v2753 = vrot.slane %v1337, 4
      %v2754 = vrot.slane %v1338, 4
      %v2755 = vsel %vm2703, %v2753, %v2754
      %v2756 = vrot.slane %v1339, 4
      %v2757 = vsel %vm2703, %v2754, %v2756
      %v2758 = vrot.slane %v1340, 4
      %v2759 = vsel %vm2703, %v2756, %v2758
      %v2760 = vrot.slane %v1341, 4
      %v2761 = vrot.slane %v1342, 4
      %v2762 = vsel %vm2703, %v2760, %v2761
      %v2763 = vrot.slane %v1343, 4
      %v2764 = vsel %vm2703, %v2761, %v2763
      %v2765 = vrot.slane %v1344, 4
      %v2766 = vsel %vm2703, %v2763, %v2765
      %v2767 = vrot.slane %v1345, 4
      %v2768 = vrot.slane %v1346, 4
      %v2769 = vsel %vm2703, %v2767, %v2768
      %v2770 = vrot.slane %v1347, 4
      %v2771 = vsel %vm2703, %v2768, %v2770
      %v2772 = vrot.slane %v1348, 4
      %v2773 = vsel %vm2703, %v2770, %v2772
      %v2774 = vrot.slane %v1349, 4
      %v2775 = vrot.slane %v1350, 4
      %v2776 = vsel %vm2703, %v2774, %v2775
      %v2777 = vrot.slane %v1351, 4
      %v2778 = vsel %vm2703, %v2775, %v2777
      %v2779 = vrot.slane %v1352, 4
      %v2780 = vsel %vm2703, %v2777, %v2779
      %v2781 = vrot.slane %v1353, 4
      %v2782 = vrot.slane %v1354, 4
      %v2783 = vsel %vm2703, %v2781, %v2782
      %v2784 = vrot.slane %v1355, 4
      %v2785 = vsel %vm2703, %v2782, %v2784
      %v2786 = vrot.slane %v1356, 4
      %v2787 = vsel %vm2703, %v2784, %v2786
      %v2788 = vrot.slane %v1357, 4
      %v2789 = vrot.slane %v1358, 4
      %v2790 = vsel %vm2703, %v2788, %v2789
      %v2791 = vrot.slane %v1359, 4
      %v2792 = vsel %vm2703, %v2789, %v2791
      %v2793 = vrot.slane %v1360, 4
      %v2794 = vsel %vm2703, %v2791, %v2793
      %v2795 = vrot.slane %v1361, 4
      %v2796 = vrot.slane %v1362, 4
      %v2797 = vsel %vm2703, %v2795, %v2796
      %v2798 = vrot.slane %v1363, 4
      %v2799 = vsel %vm2703, %v2796, %v2798
      %v2800 = vrot.slane %v1364, 4
      %v2801 = vsel %vm2703, %v2798, %v2800
      %v2802 = vrot.slane %v1365, 4
      %v2803 = vrot.slane %v1366, 4
      %v2804 = vsel %vm2703, %v2802, %v2803
      %v2805 = vrot.slane %v1367, 4
      %v2806 = vsel %vm2703, %v2803, %v2805
      %v2807 = vrot.slane %v1368, 4
      %v2808 = vsel %vm2703, %v2805, %v2807
      %v2809 = vrot.slane %v1369, 4
      %v2810 = vrot.slane %v1370, 4
      %v2811 = vsel %vm2703, %v2809, %v2810
      %v2812 = vrot.slane %v1371, 4
      %v2813 = vsel %vm2703, %v2810, %v2812
      %v2814 = vrot.slane %v1372, 4
      %v2815 = vsel %vm2703, %v2812, %v2814
      %v2816 = vrot.slane %v1373, 4
      %v2817 = vrot.slane %v1374, 4
      %v2818 = vsel %vm2703, %v2816, %v2817
      %v2819 = vrot.slane %v1375, 4
      %v2820 = vsel %vm2703, %v2817, %v2819
      %v2821 = vrot.slane %v1376, 4
      %v2822 = vsel %vm2703, %v2819, %v2821
      %v2823 = vrot.slane %v1377, 4
      %v2824 = vrot.slane %v1378, 4
      %v2825 = vsel %vm2703, %v2823, %v2824
      %v2826 = vrot.slane %v1379, 4
      %v2827 = vsel %vm2703, %v2824, %v2826
      %v2828 = vrot.slane %v1380, 4
      %v2829 = vsel %vm2703, %v2826, %v2828
      %v2830 = vrot.slane %v1381, 4
      %v2831 = vrot.slane %v1382, 4
      %v2832 = vsel %vm2703, %v2830, %v2831
      %v2833 = vrot.slane %v1383, 4
      %v2834 = vsel %vm2703, %v2831, %v2833
      %v2835 = vrot.slane %v1384, 4
      %v2836 = vsel %vm2703, %v2833, %v2835
      %v2837 = vrot.slane %v1385, 4
      %v2838 = vrot.slane %v1386, 4
      %v2839 = vsel %vm2703, %v2837, %v2838
      %v2840 = vrot.slane %v1387, 4
      %v2841 = vsel %vm2703, %v2838, %v2840
      %v2842 = vrot.slane %v1388, 4
      %v2843 = vsel %vm2703, %v2840, %v2842
      %v2844 = vrot.slane %v1389, 4
      %v2845 = vrot.slane %v1390, 4
      %v2846 = vsel %vm2703, %v2844, %v2845
      %v2847 = vrot.slane %v1391, 4
      %v2848 = vsel %vm2703, %v2845, %v2847
      %v2849 = vrot.slane %v1392, 4
      %v2850 = vsel %vm2703, %v2847, %v2849
      %v2851 = vrot.slane %v1393, 4
      %v2852 = vrot.slane %v1394, 4
      %v2853 = vsel %vm2703, %v2851, %v2852
      %v2854 = vrot.slane %v1395, 4
      %v2855 = vsel %vm2703, %v2852, %v2854
      %v2856 = vrot.slane %v1396, 4
      %v2857 = vsel %vm2703, %v2854, %v2856
      %v2858 = vrot.slane %v1397, 4
      %v2859 = vrot.slane %v1398, 4
      %v2860 = vsel %vm2703, %v2858, %v2859
      %v2861 = vrot.slane %v1399, 4
      %v2862 = vsel %vm2703, %v2859, %v2861
      %v2863 = vrot.slane %v1400, 4
      %v2864 = vsel %vm2703, %v2861, %v2863
      %v2865 = vrot.slane %v1401, 4
      %v2866 = vrot.slane %v1402, 4
      %v2867 = vsel %vm2703, %v2865, %v2866
      %v2868 = vrot.slane %v1403, 4
      %v2869 = vsel %vm2703, %v2866, %v2868
      %v2870 = vrot.slane %v1404, 4
      %v2871 = vsel %vm2703, %v2868, %v2870
      %v2968 = vmax.f32 %v2607, %v2706
      %v2969 = vmax.f32 %v2608, %v2708
      %v2970 = vmax.f32 %v2609, %v2710
      %v2971 = vmax.f32 %v2610, %v2709
      %v2972 = vmax.f32 %v2611, %v2713
      %v2973 = vmax.f32 %v2612, %v2715
      %v2974 = vmax.f32 %v2613, %v2717
      %v2975 = vmax.f32 %v2614, %v2716
      %v2976 = vmax.f32 %v2615, %v2720
      %v2977 = vmax.f32 %v2616, %v2722
      %v2978 = vmax.f32 %v2617, %v2724
      %v2979 = vmax.f32 %v2618, %v2723
      %v2980 = vmax.f32 %v2619, %v2727
      %v2981 = vmax.f32 %v2620, %v2729
      %v2982 = vmax.f32 %v2621, %v2731
      %v2983 = vmax.f32 %v2622, %v2730
      %v2984 = vmax.f32 %v2623, %v2734
      %v2985 = vmax.f32 %v2624, %v2736
      %v2986 = vmax.f32 %v2625, %v2738
      %v2987 = vmax.f32 %v2626, %v2737
      %v2988 = vmax.f32 %v2627, %v2741
      %v2989 = vmax.f32 %v2628, %v2743
      %v2990 = vmax.f32 %v2629, %v2745
      %v2991 = vmax.f32 %v2630, %v2744
      %v2992 = vmax.f32 %v2631, %v2748
      %v2993 = vmax.f32 %v2632, %v2750
      %v2994 = vmax.f32 %v2633, %v2752
      %v2995 = vmax.f32 %v2634, %v2751
      %v2996 = vmax.f32 %v2635, %v2755
      %v2997 = vmax.f32 %v2636, %v2757
      %v2998 = vmax.f32 %v2637, %v2759
      %v2999 = vmax.f32 %v2638, %v2758
      %v3000 = vmax.f32 %v2639, %v2762
      %v3001 = vmax.f32 %v2640, %v2764
      %v3002 = vmax.f32 %v2641, %v2766
      %v3003 = vmax.f32 %v2642, %v2765
      %v3004 = vmax.f32 %v2643, %v2769
      %v3005 = vmax.f32 %v2644, %v2771
      %v3006 = vmax.f32 %v2645, %v2773
      %v3007 = vmax.f32 %v2646, %v2772
      %v3008 = vmax.f32 %v2647, %v2776
      %v3009 = vmax.f32 %v2648, %v2778
      %v3010 = vmax.f32 %v2649, %v2780
      %v3011 = vmax.f32 %v2650, %v2779
      %v3012 = vmax.f32 %v2651, %v2783
      %v3013 = vmax.f32 %v2652, %v2785
      %v3014 = vmax.f32 %v2653, %v2787
      %v3015 = vmax.f32 %v2654, %v2786
      %v3016 = vmax.f32 %v2655, %v2790
      %v3017 = vmax.f32 %v2656, %v2792
      %v3018 = vmax.f32 %v2657, %v2794
      %v3019 = vmax.f32 %v2658, %v2793
      %v3020 = vmax.f32 %v2659, %v2797
      %v3021 = vmax.f32 %v2660, %v2799
      %v3022 = vmax.f32 %v2661, %v2801
      %v3023 = vmax.f32 %v2662, %v2800
      %v3024 = vmax.f32 %v2663, %v2804
      %v3025 = vmax.f32 %v2664, %v2806
      %v3026 = vmax.f32 %v2665, %v2808
      %v3027 = vmax.f32 %v2666, %v2807
      %v3028 = vmax.f32 %v2667, %v2811
      %v3029 = vmax.f32 %v2668, %v2813
      %v3030 = vmax.f32 %v2669, %v2815
      %v3031 = vmax.f32 %v2670, %v2814
      %v3032 = vmax.f32 %v2671, %v2818
      %v3033 = vmax.f32 %v2672, %v2820
      %v3034 = vmax.f32 %v2673, %v2822
      %v3035 = vmax.f32 %v2674, %v2821
      %v3036 = vmax.f32 %v2675, %v2825
      %v3037 = vmax.f32 %v2676, %v2827
      %v3038 = vmax.f32 %v2677, %v2829
      %v3039 = vmax.f32 %v2678, %v2828
      %v3040 = vmax.f32 %v2679, %v2832
      %v3041 = vmax.f32 %v2680, %v2834
      %v3042 = vmax.f32 %v2681, %v2836
      %v3043 = vmax.f32 %v2682, %v2835
      %v3044 = vmax.f32 %v2683, %v2839
      %v3045 = vmax.f32 %v2684, %v2841
      %v3046 = vmax.f32 %v2685, %v2843
      %v3047 = vmax.f32 %v2686, %v2842
      %v3048 = vmax.f32 %v2687, %v2846
      %v3049 = vmax.f32 %v2688, %v2848
      %v3050 = vmax.f32 %v2689, %v2850
      %v3051 = vmax.f32 %v2690, %v2849
      %v3052 = vmax.f32 %v2691, %v2853
      %v3053 = vmax.f32 %v2692, %v2855
      %v3054 = vmax.f32 %v2693, %v2857
      %v3055 = vmax.f32 %v2694, %v2856
      %v3056 = vmax.f32 %v2695, %v2860
      %v3057 = vmax.f32 %v2696, %v2862
      %v3058 = vmax.f32 %v2697, %v2864
      %v3059 = vmax.f32 %v2698, %v2863
      %v3060 = vmax.f32 %v2699, %v2867
      %v3061 = vmax.f32 %v2700, %v2869
      %v3062 = vmax.f32 %v2701, %v2871
      %v3063 = vmax.f32 %v2702, %v2870
      %v3064 = vpack.c.bf16 %v2968, %v2968
      %v3065 = vpack.c.bf16 %v2969, %v2969
      %v3066 = vpack.c.bf16 %v2970, %v2970
      %v3067 = vpack.c.bf16 %v2971, %v2971
      %v3068 = vpack.c.bf16 %v2972, %v2972
      %v3069 = vpack.c.bf16 %v2973, %v2973
      %v3070 = vpack.c.bf16 %v2974, %v2974
      %v3071 = vpack.c.bf16 %v2975, %v2975
      %v3072 = vpack.c.bf16 %v2976, %v2976
      %v3073 = vpack.c.bf16 %v2977, %v2977
      %v3074 = vpack.c.bf16 %v2978, %v2978
      %v3075 = vpack.c.bf16 %v2979, %v2979
      %v3076 = vpack.c.bf16 %v2980, %v2980
      %v3077 = vpack.c.bf16 %v2981, %v2981
      %v3078 = vpack.c.bf16 %v2982, %v2982
      %v3079 = vpack.c.bf16 %v2983, %v2983
      %v3080 = vpack.c.bf16 %v2984, %v2984
      %v3081 = vpack.c.bf16 %v2985, %v2985
      %v3082 = vpack.c.bf16 %v2986, %v2986
      %v3083 = vpack.c.bf16 %v2987, %v2987
      %v3084 = vpack.c.bf16 %v2988, %v2988
      %v3085 = vpack.c.bf16 %v2989, %v2989
      %v3086 = vpack.c.bf16 %v2990, %v2990
      %v3087 = vpack.c.bf16 %v2991, %v2991
      %v3088 = vpack.c.bf16 %v2992, %v2992
      %v3089 = vpack.c.bf16 %v2993, %v2993
      %v3090 = vpack.c.bf16 %v2994, %v2994
      %v3091 = vpack.c.bf16 %v2995, %v2995
      %v3092 = vpack.c.bf16 %v2996, %v2996
      %v3093 = vpack.c.bf16 %v2997, %v2997
      %v3094 = vpack.c.bf16 %v2998, %v2998
      %v3095 = vpack.c.bf16 %v2999, %v2999
      %v3096 = vpack.c.bf16 %v3000, %v3000
      %v3097 = vpack.c.bf16 %v3001, %v3001
      %v3098 = vpack.c.bf16 %v3002, %v3002
      %v3099 = vpack.c.bf16 %v3003, %v3003
      %v3100 = vpack.c.bf16 %v3004, %v3004
      %v3101 = vpack.c.bf16 %v3005, %v3005
      %v3102 = vpack.c.bf16 %v3006, %v3006
      %v3103 = vpack.c.bf16 %v3007, %v3007
      %v3104 = vpack.c.bf16 %v3008, %v3008
      %v3105 = vpack.c.bf16 %v3009, %v3009
      %v3106 = vpack.c.bf16 %v3010, %v3010
      %v3107 = vpack.c.bf16 %v3011, %v3011
      %v3108 = vpack.c.bf16 %v3012, %v3012
      %v3109 = vpack.c.bf16 %v3013, %v3013
      %v3110 = vpack.c.bf16 %v3014, %v3014
      %v3111 = vpack.c.bf16 %v3015, %v3015
      %v3112 = vpack.c.bf16 %v3016, %v3016
      %v3113 = vpack.c.bf16 %v3017, %v3017
      %v3114 = vpack.c.bf16 %v3018, %v3018
      %v3115 = vpack.c.bf16 %v3019, %v3019
      %v3116 = vpack.c.bf16 %v3020, %v3020
      %v3117 = vpack.c.bf16 %v3021, %v3021
      %v3118 = vpack.c.bf16 %v3022, %v3022
      %v3119 = vpack.c.bf16 %v3023, %v3023
      %v3120 = vpack.c.bf16 %v3024, %v3024
      %v3121 = vpack.c.bf16 %v3025, %v3025
      %v3122 = vpack.c.bf16 %v3026, %v3026
      %v3123 = vpack.c.bf16 %v3027, %v3027
      %v3124 = vpack.c.bf16 %v3028, %v3028
      %v3125 = vpack.c.bf16 %v3029, %v3029
      %v3126 = vpack.c.bf16 %v3030, %v3030
      %v3127 = vpack.c.bf16 %v3031, %v3031
      %v3128 = vpack.c.bf16 %v3032, %v3032
      %v3129 = vpack.c.bf16 %v3033, %v3033
      %v3130 = vpack.c.bf16 %v3034, %v3034
      %v3131 = vpack.c.bf16 %v3035, %v3035
      %v3132 = vpack.c.bf16 %v3036, %v3036
      %v3133 = vpack.c.bf16 %v3037, %v3037
      %v3134 = vpack.c.bf16 %v3038, %v3038
      %v3135 = vpack.c.bf16 %v3039, %v3039
      %v3136 = vpack.c.bf16 %v3040, %v3040
      %v3137 = vpack.c.bf16 %v3041, %v3041
      %v3138 = vpack.c.bf16 %v3042, %v3042
      %v3139 = vpack.c.bf16 %v3043, %v3043
      %v3140 = vpack.c.bf16 %v3044, %v3044
      %v3141 = vpack.c.bf16 %v3045, %v3045
      %v3142 = vpack.c.bf16 %v3046, %v3046
      %v3143 = vpack.c.bf16 %v3047, %v3047
      %v3144 = vpack.c.bf16 %v3048, %v3048
      %v3145 = vpack.c.bf16 %v3049, %v3049
      %v3146 = vpack.c.bf16 %v3050, %v3050
      %v3147 = vpack.c.bf16 %v3051, %v3051
      %v3148 = vpack.c.bf16 %v3052, %v3052
      %v3149 = vpack.c.bf16 %v3053, %v3053
      %v3150 = vpack.c.bf16 %v3054, %v3054
      %v3151 = vpack.c.bf16 %v3055, %v3055
      %v3152 = vpack.c.bf16 %v3056, %v3056
      %v3153 = vpack.c.bf16 %v3057, %v3057
      %v3154 = vpack.c.bf16 %v3058, %v3058
      %v3155 = vpack.c.bf16 %v3059, %v3059
      %v3156 = vpack.c.bf16 %v3060, %v3060
      %v3157 = vpack.c.bf16 %v3061, %v3061
      %v3158 = vpack.c.bf16 %v3062, %v3062
      %v3159 = vpack.c.bf16 %v3063, %v3063
      %v3160 = vunpack.c.l.bf16 %v3064
      %v3161 = vunpack.c.l.bf16 %v3065
      %v3162 = vunpack.c.l.bf16 %v3066
      %v3163 = vunpack.c.l.bf16 %v3067
      %v3164 = vunpack.c.l.bf16 %v3068
      %v3165 = vunpack.c.l.bf16 %v3069
      %v3166 = vunpack.c.l.bf16 %v3070
      %v3167 = vunpack.c.l.bf16 %v3071
      %v3168 = vunpack.c.l.bf16 %v3072
      %v3169 = vunpack.c.l.bf16 %v3073
      %v3170 = vunpack.c.l.bf16 %v3074
      %v3171 = vunpack.c.l.bf16 %v3075
      %v3172 = vunpack.c.l.bf16 %v3076
      %v3173 = vunpack.c.l.bf16 %v3077
      %v3174 = vunpack.c.l.bf16 %v3078
      %v3175 = vunpack.c.l.bf16 %v3079
      %v3176 = vunpack.c.l.bf16 %v3080
      %v3177 = vunpack.c.l.bf16 %v3081
      %v3178 = vunpack.c.l.bf16 %v3082
      %v3179 = vunpack.c.l.bf16 %v3083
      %v3180 = vunpack.c.l.bf16 %v3084
      %v3181 = vunpack.c.l.bf16 %v3085
      %v3182 = vunpack.c.l.bf16 %v3086
      %v3183 = vunpack.c.l.bf16 %v3087
      %v3184 = vunpack.c.l.bf16 %v3088
      %v3185 = vunpack.c.l.bf16 %v3089
      %v3186 = vunpack.c.l.bf16 %v3090
      %v3187 = vunpack.c.l.bf16 %v3091
      %v3188 = vunpack.c.l.bf16 %v3092
      %v3189 = vunpack.c.l.bf16 %v3093
      %v3190 = vunpack.c.l.bf16 %v3094
      %v3191 = vunpack.c.l.bf16 %v3095
      %v3192 = vunpack.c.l.bf16 %v3096
      %v3193 = vunpack.c.l.bf16 %v3097
      %v3194 = vunpack.c.l.bf16 %v3098
      %v3195 = vunpack.c.l.bf16 %v3099
      %v3196 = vunpack.c.l.bf16 %v3100
      %v3197 = vunpack.c.l.bf16 %v3101
      %v3198 = vunpack.c.l.bf16 %v3102
      %v3199 = vunpack.c.l.bf16 %v3103
      %v3200 = vunpack.c.l.bf16 %v3104
      %v3201 = vunpack.c.l.bf16 %v3105
      %v3202 = vunpack.c.l.bf16 %v3106
      %v3203 = vunpack.c.l.bf16 %v3107
      %v3204 = vunpack.c.l.bf16 %v3108
      %v3205 = vunpack.c.l.bf16 %v3109
      %v3206 = vunpack.c.l.bf16 %v3110
      %v3207 = vunpack.c.l.bf16 %v3111
      %v3208 = vunpack.c.l.bf16 %v3112
      %v3209 = vunpack.c.l.bf16 %v3113
      %v3210 = vunpack.c.l.bf16 %v3114
      %v3211 = vunpack.c.l.bf16 %v3115
      %v3212 = vunpack.c.l.bf16 %v3116
      %v3213 = vunpack.c.l.bf16 %v3117
      %v3214 = vunpack.c.l.bf16 %v3118
      %v3215 = vunpack.c.l.bf16 %v3119
      %v3216 = vunpack.c.l.bf16 %v3120
      %v3217 = vunpack.c.l.bf16 %v3121
      %v3218 = vunpack.c.l.bf16 %v3122
      %v3219 = vunpack.c.l.bf16 %v3123
      %v3220 = vunpack.c.l.bf16 %v3124
      %v3221 = vunpack.c.l.bf16 %v3125
      %v3222 = vunpack.c.l.bf16 %v3126
      %v3223 = vunpack.c.l.bf16 %v3127
      %v3224 = vunpack.c.l.bf16 %v3128
      %v3225 = vunpack.c.l.bf16 %v3129
      %v3226 = vunpack.c.l.bf16 %v3130
      %v3227 = vunpack.c.l.bf16 %v3131
      %v3228 = vunpack.c.l.bf16 %v3132
      %v3229 = vunpack.c.l.bf16 %v3133
      %v3230 = vunpack.c.l.bf16 %v3134
      %v3231 = vunpack.c.l.bf16 %v3135
      %v3232 = vunpack.c.l.bf16 %v3136
      %v3233 = vunpack.c.l.bf16 %v3137
      %v3234 = vunpack.c.l.bf16 %v3138
      %v3235 = vunpack.c.l.bf16 %v3139
      %v3236 = vunpack.c.l.bf16 %v3140
      %v3237 = vunpack.c.l.bf16 %v3141
      %v3238 = vunpack.c.l.bf16 %v3142
      %v3239 = vunpack.c.l.bf16 %v3143
      %v3240 = vunpack.c.l.bf16 %v3144
      %v3241 = vunpack.c.l.bf16 %v3145
      %v3242 = vunpack.c.l.bf16 %v3146
      %v3243 = vunpack.c.l.bf16 %v3147
      %v3244 = vunpack.c.l.bf16 %v3148
      %v3245 = vunpack.c.l.bf16 %v3149
      %v3246 = vunpack.c.l.bf16 %v3150
      %v3247 = vunpack.c.l.bf16 %v3151
      %v3248 = vunpack.c.l.bf16 %v3152
      %v3249 = vunpack.c.l.bf16 %v3153
      %v3250 = vunpack.c.l.bf16 %v3154
      %v3251 = vunpack.c.l.bf16 %v3155
      %v3252 = vunpack.c.l.bf16 %v3156
      %v3253 = vunpack.c.l.bf16 %v3157
      %v3254 = vunpack.c.l.bf16 %v3158
      %v3255 = vunpack.c.l.bf16 %v3159
      %v3256 = vmax.f32 %v3160, %v3176
      %v3257 = vmax.f32 %v3161, %v3177
      %v3258 = vmax.f32 %v3162, %v3178
      %v3259 = vmax.f32 %v3163, %v3179
      %v3260 = vmax.f32 %v3164, %v3180
      %v3261 = vmax.f32 %v3165, %v3181
      %v3262 = vmax.f32 %v3166, %v3182
      %v3263 = vmax.f32 %v3167, %v3183
      %v3264 = vmax.f32 %v3168, %v3184
      %v3265 = vmax.f32 %v3169, %v3185
      %v3266 = vmax.f32 %v3170, %v3186
      %v3267 = vmax.f32 %v3171, %v3187
      %v3268 = vmax.f32 %v3172, %v3188
      %v3269 = vmax.f32 %v3173, %v3189
      %v3270 = vmax.f32 %v3174, %v3190
      %v3271 = vmax.f32 %v3175, %v3191
      %v3272 = vmax.f32 %v3176, %v3192
      %v3273 = vmax.f32 %v3177, %v3193
      %v3274 = vmax.f32 %v3178, %v3194
      %v3275 = vmax.f32 %v3179, %v3195
      %v3276 = vmax.f32 %v3180, %v3196
      %v3277 = vmax.f32 %v3181, %v3197
      %v3278 = vmax.f32 %v3182, %v3198
      %v3279 = vmax.f32 %v3183, %v3199
      %v3280 = vmax.f32 %v3184, %v3200
      %v3281 = vmax.f32 %v3185, %v3201
      %v3282 = vmax.f32 %v3186, %v3202
      %v3283 = vmax.f32 %v3187, %v3203
      %v3284 = vmax.f32 %v3188, %v3204
      %v3285 = vmax.f32 %v3189, %v3205
      %v3286 = vmax.f32 %v3190, %v3206
      %v3287 = vmax.f32 %v3191, %v3207
      %v3288 = vmax.f32 %v3192, %v3208
      %v3289 = vmax.f32 %v3193, %v3209
      %v3290 = vmax.f32 %v3194, %v3210
      %v3291 = vmax.f32 %v3195, %v3211
      %v3292 = vmax.f32 %v3196, %v3212
      %v3293 = vmax.f32 %v3197, %v3213
      %v3294 = vmax.f32 %v3198, %v3214
      %v3295 = vmax.f32 %v3199, %v3215
      %v3296 = vmax.f32 %v3200, %v3216
      %v3297 = vmax.f32 %v3201, %v3217
      %v3298 = vmax.f32 %v3202, %v3218
      %v3299 = vmax.f32 %v3203, %v3219
      %v3300 = vmax.f32 %v3204, %v3220
      %v3301 = vmax.f32 %v3205, %v3221
      %v3302 = vmax.f32 %v3206, %v3222
      %v3303 = vmax.f32 %v3207, %v3223
      %v3304 = vmax.f32 %v3208, %v3224
      %v3305 = vmax.f32 %v3209, %v3225
      %v3306 = vmax.f32 %v3210, %v3226
      %v3307 = vmax.f32 %v3211, %v3227
      %v3308 = vmax.f32 %v3212, %v3228
      %v3309 = vmax.f32 %v3213, %v3229
      %v3310 = vmax.f32 %v3214, %v3230
      %v3311 = vmax.f32 %v3215, %v3231
      %v3312 = vmax.f32 %v3216, %v3232
      %v3313 = vmax.f32 %v3217, %v3233
      %v3314 = vmax.f32 %v3218, %v3234
      %v3315 = vmax.f32 %v3219, %v3235
      %v3316 = vmax.f32 %v3220, %v3236
      %v3317 = vmax.f32 %v3221, %v3237
      %v3318 = vmax.f32 %v3222, %v3238
      %v3319 = vmax.f32 %v3223, %v3239
      %v3320 = vmax.f32 %v3224, %v3240
      %v3321 = vmax.f32 %v3225, %v3241
      %v3322 = vmax.f32 %v3226, %v3242
      %v3323 = vmax.f32 %v3227, %v3243
      %v3324 = vmax.f32 %v3228, %v3244
      %v3325 = vmax.f32 %v3229, %v3245
      %v3326 = vmax.f32 %v3230, %v3246
      %v3327 = vmax.f32 %v3231, %v3247
      %v3328 = vmax.f32 %v3232, %v3248
      %v3329 = vmax.f32 %v3233, %v3249
      %v3330 = vmax.f32 %v3234, %v3250
      %v3331 = vmax.f32 %v3235, %v3251
      %v3332 = vmax.f32 %v3236, %v3252
      %v3333 = vmax.f32 %v3237, %v3253
      %v3334 = vmax.f32 %v3238, %v3254
      %v3335 = vmax.f32 %v3239, %v3255
      %v3336 = vpack.c.bf16 %v3256, %v3256
      %v3337 = vpack.c.bf16 %v3257, %v3257
      %v3338 = vpack.c.bf16 %v3258, %v3258
      %v3339 = vpack.c.bf16 %v3259, %v3259
      %v3340 = vpack.c.bf16 %v3260, %v3260
      %v3341 = vpack.c.bf16 %v3261, %v3261
      %v3342 = vpack.c.bf16 %v3262, %v3262
      %v3343 = vpack.c.bf16 %v3263, %v3263
      %v3344 = vpack.c.bf16 %v3264, %v3264
      %v3345 = vpack.c.bf16 %v3265, %v3265
      %v3346 = vpack.c.bf16 %v3266, %v3266
      %v3347 = vpack.c.bf16 %v3267, %v3267
      %v3348 = vpack.c.bf16 %v3268, %v3268
      %v3349 = vpack.c.bf16 %v3269, %v3269
      %v3350 = vpack.c.bf16 %v3270, %v3270
      %v3351 = vpack.c.bf16 %v3271, %v3271
      %v3352 = vpack.c.bf16 %v3272, %v3272
      %v3353 = vpack.c.bf16 %v3273, %v3273
      %v3354 = vpack.c.bf16 %v3274, %v3274
      %v3355 = vpack.c.bf16 %v3275, %v3275
      %v3356 = vpack.c.bf16 %v3276, %v3276
      %v3357 = vpack.c.bf16 %v3277, %v3277
      %v3358 = vpack.c.bf16 %v3278, %v3278
      %v3359 = vpack.c.bf16 %v3279, %v3279
      %v3360 = vpack.c.bf16 %v3280, %v3280
      %v3361 = vpack.c.bf16 %v3281, %v3281
      %v3362 = vpack.c.bf16 %v3282, %v3282
      %v3363 = vpack.c.bf16 %v3283, %v3283
      %v3364 = vpack.c.bf16 %v3284, %v3284
      %v3365 = vpack.c.bf16 %v3285, %v3285
      %v3366 = vpack.c.bf16 %v3286, %v3286
      %v3367 = vpack.c.bf16 %v3287, %v3287
      %v3368 = vpack.c.bf16 %v3288, %v3288
      %v3369 = vpack.c.bf16 %v3289, %v3289
      %v3370 = vpack.c.bf16 %v3290, %v3290
      %v3371 = vpack.c.bf16 %v3291, %v3291
      %v3372 = vpack.c.bf16 %v3292, %v3292
      %v3373 = vpack.c.bf16 %v3293, %v3293
      %v3374 = vpack.c.bf16 %v3294, %v3294
      %v3375 = vpack.c.bf16 %v3295, %v3295
      %v3376 = vpack.c.bf16 %v3296, %v3296
      %v3377 = vpack.c.bf16 %v3297, %v3297
      %v3378 = vpack.c.bf16 %v3298, %v3298
      %v3379 = vpack.c.bf16 %v3299, %v3299
      %v3380 = vpack.c.bf16 %v3300, %v3300
      %v3381 = vpack.c.bf16 %v3301, %v3301
      %v3382 = vpack.c.bf16 %v3302, %v3302
      %v3383 = vpack.c.bf16 %v3303, %v3303
      %v3384 = vpack.c.bf16 %v3304, %v3304
      %v3385 = vpack.c.bf16 %v3305, %v3305
      %v3386 = vpack.c.bf16 %v3306, %v3306
      %v3387 = vpack.c.bf16 %v3307, %v3307
      %v3388 = vpack.c.bf16 %v3308, %v3308
      %v3389 = vpack.c.bf16 %v3309, %v3309
      %v3390 = vpack.c.bf16 %v3310, %v3310
      %v3391 = vpack.c.bf16 %v3311, %v3311
      %v3392 = vpack.c.bf16 %v3312, %v3312
      %v3393 = vpack.c.bf16 %v3313, %v3313
      %v3394 = vpack.c.bf16 %v3314, %v3314
      %v3395 = vpack.c.bf16 %v3315, %v3315
      %v3396 = vpack.c.bf16 %v3316, %v3316
      %v3397 = vpack.c.bf16 %v3317, %v3317
      %v3398 = vpack.c.bf16 %v3318, %v3318
      %v3399 = vpack.c.bf16 %v3319, %v3319
      %v3400 = vpack.c.bf16 %v3320, %v3320
      %v3401 = vpack.c.bf16 %v3321, %v3321
      %v3402 = vpack.c.bf16 %v3322, %v3322
      %v3403 = vpack.c.bf16 %v3323, %v3323
      %v3404 = vpack.c.bf16 %v3324, %v3324
      %v3405 = vpack.c.bf16 %v3325, %v3325
      %v3406 = vpack.c.bf16 %v3326, %v3326
      %v3407 = vpack.c.bf16 %v3327, %v3327
      %v3408 = vpack.c.bf16 %v3328, %v3328
      %v3409 = vpack.c.bf16 %v3329, %v3329
      %v3410 = vpack.c.bf16 %v3330, %v3330
      %v3411 = vpack.c.bf16 %v3331, %v3331
      %v3412 = vpack.c.bf16 %v3332, %v3332
      %v3413 = vpack.c.bf16 %v3333, %v3333
      %v3414 = vpack.c.bf16 %v3334, %v3334
      %v3415 = vpack.c.bf16 %v3335, %v3335
      %v3416 = vunpack.c.l.bf16 %v3336
      %v3417 = vunpack.c.l.bf16 %v3337
      %v3418 = vunpack.c.l.bf16 %v3338
      %v3419 = vunpack.c.l.bf16 %v3340
      %v3420 = vunpack.c.l.bf16 %v3341
      %v3421 = vunpack.c.l.bf16 %v3342
      %v3422 = vunpack.c.l.bf16 %v3344
      %v3423 = vunpack.c.l.bf16 %v3345
      %v3424 = vunpack.c.l.bf16 %v3346
      %v3425 = vunpack.c.l.bf16 %v3348
      %v3426 = vunpack.c.l.bf16 %v3349
      %v3427 = vunpack.c.l.bf16 %v3350
      %v3428 = vunpack.c.l.bf16 %v3352
      %v3429 = vunpack.c.l.bf16 %v3353
      %v3430 = vunpack.c.l.bf16 %v3354
      %v3431 = vunpack.c.l.bf16 %v3356
      %v3432 = vunpack.c.l.bf16 %v3357
      %v3433 = vunpack.c.l.bf16 %v3358
      %v3434 = vunpack.c.l.bf16 %v3360
      %v3435 = vunpack.c.l.bf16 %v3361
      %v3436 = vunpack.c.l.bf16 %v3362
      %v3437 = vunpack.c.l.bf16 %v3364
      %v3438 = vunpack.c.l.bf16 %v3365
      %v3439 = vunpack.c.l.bf16 %v3366
      %v3440 = vunpack.c.l.bf16 %v3368
      %v3441 = vunpack.c.l.bf16 %v3369
      %v3442 = vunpack.c.l.bf16 %v3370
      %v3443 = vunpack.c.l.bf16 %v3372
      %v3444 = vunpack.c.l.bf16 %v3373
      %v3445 = vunpack.c.l.bf16 %v3374
      %v3446 = vunpack.c.l.bf16 %v3376
      %v3447 = vunpack.c.l.bf16 %v3377
      %v3448 = vunpack.c.l.bf16 %v3378
      %v3449 = vunpack.c.l.bf16 %v3380
      %v3450 = vunpack.c.l.bf16 %v3381
      %v3451 = vunpack.c.l.bf16 %v3382
      %v3452 = vunpack.c.l.bf16 %v3384
      %v3453 = vunpack.c.l.bf16 %v3385
      %v3454 = vunpack.c.l.bf16 %v3386
      %v3455 = vunpack.c.l.bf16 %v3388
      %v3456 = vunpack.c.l.bf16 %v3389
      %v3457 = vunpack.c.l.bf16 %v3390
      %v3458 = vunpack.c.l.bf16 %v3392
      %v3459 = vunpack.c.l.bf16 %v3393
      %v3460 = vunpack.c.l.bf16 %v3394
      %v3461 = vunpack.c.l.bf16 %v3396
      %v3462 = vunpack.c.l.bf16 %v3397
      %v3463 = vunpack.c.l.bf16 %v3398
      %v3464 = vunpack.c.l.bf16 %v3400
      %v3465 = vunpack.c.l.bf16 %v3401
      %v3466 = vunpack.c.l.bf16 %v3402
      %v3467 = vunpack.c.l.bf16 %v3404
      %v3468 = vunpack.c.l.bf16 %v3405
      %v3469 = vunpack.c.l.bf16 %v3406
      %v3470 = vunpack.c.l.bf16 %v3408
      %v3471 = vunpack.c.l.bf16 %v3409
      %v3472 = vunpack.c.l.bf16 %v3410
      %v3473 = vunpack.c.l.bf16 %v3412
      %v3474 = vunpack.c.l.bf16 %v3413
      %v3475 = vunpack.c.l.bf16 %v3414
      %v3476 = vunpack.c.l.bf16 %v3339
      %v3477 = vunpack.c.l.bf16 %v3343
      %v3478 = vunpack.c.l.bf16 %v3347
      %v3479 = vunpack.c.l.bf16 %v3351
      %v3480 = vunpack.c.l.bf16 %v3355
      %v3481 = vunpack.c.l.bf16 %v3359
      %v3482 = vunpack.c.l.bf16 %v3363
      %v3483 = vunpack.c.l.bf16 %v3367
      %v3484 = vunpack.c.l.bf16 %v3371
      %v3485 = vunpack.c.l.bf16 %v3375
      %v3486 = vunpack.c.l.bf16 %v3379
      %v3487 = vunpack.c.l.bf16 %v3383
      %v3488 = vunpack.c.l.bf16 %v3387
      %v3489 = vunpack.c.l.bf16 %v3391
      %v3490 = vunpack.c.l.bf16 %v3395
      %v3491 = vunpack.c.l.bf16 %v3399
      %v3492 = vunpack.c.l.bf16 %v3403
      %v3493 = vunpack.c.l.bf16 %v3407
      %v3494 = vunpack.c.l.bf16 %v3411
      %v3495 = vunpack.c.l.bf16 %v3415
      %v3576 = vrot.slane %v3416, 4
      %v3577 = vrot.slane %v3417, 4
      %v3578 = vsel %vm2703, %v3576, %v3577
      %v3579 = vrot.slane %v3418, 4
      %v3580 = vsel %vm2703, %v3577, %v3579
      %v3581 = vrot.slane %v3476, 4
      %v3582 = vsel %vm2703, %v3579, %v3581
      %v3583 = vrot.slane %v3419, 4
      %v3584 = vrot.slane %v3420, 4
      %v3585 = vsel %vm2703, %v3583, %v3584
      %v3586 = vrot.slane %v3421, 4
      %v3587 = vsel %vm2703, %v3584, %v3586
      %v3588 = vrot.slane %v3477, 4
      %v3589 = vsel %vm2703, %v3586, %v3588
      %v3590 = vrot.slane %v3422, 4
      %v3591 = vrot.slane %v3423, 4
      %v3592 = vsel %vm2703, %v3590, %v3591
      %v3593 = vrot.slane %v3424, 4
      %v3594 = vsel %vm2703, %v3591, %v3593
      %v3595 = vrot.slane %v3478, 4
      %v3596 = vsel %vm2703, %v3593, %v3595
      %v3597 = vrot.slane %v3425, 4
      %v3598 = vrot.slane %v3426, 4
      %v3599 = vsel %vm2703, %v3597, %v3598
      %v3600 = vrot.slane %v3427, 4
      %v3601 = vsel %vm2703, %v3598, %v3600
      %v3602 = vrot.slane %v3479, 4
      %v3603 = vsel %vm2703, %v3600, %v3602
      %v3604 = vrot.slane %v3428, 4
      %v3605 = vrot.slane %v3429, 4
      %v3606 = vsel %vm2703, %v3604, %v3605
      %v3607 = vrot.slane %v3430, 4
      %v3608 = vsel %vm2703, %v3605, %v3607
      %v3609 = vrot.slane %v3480, 4
      %v3610 = vsel %vm2703, %v3607, %v3609
      %v3611 = vrot.slane %v3431, 4
      %v3612 = vrot.slane %v3432, 4
      %v3613 = vsel %vm2703, %v3611, %v3612
      %v3614 = vrot.slane %v3433, 4
      %v3615 = vsel %vm2703, %v3612, %v3614
      %v3616 = vrot.slane %v3481, 4
      %v3617 = vsel %vm2703, %v3614, %v3616
      %v3618 = vrot.slane %v3434, 4
      %v3619 = vrot.slane %v3435, 4
      %v3620 = vsel %vm2703, %v3618, %v3619
      %v3621 = vrot.slane %v3436, 4
      %v3622 = vsel %vm2703, %v3619, %v3621
      %v3623 = vrot.slane %v3482, 4
      %v3624 = vsel %vm2703, %v3621, %v3623
      %v3625 = vrot.slane %v3437, 4
      %v3626 = vrot.slane %v3438, 4
      %v3627 = vsel %vm2703, %v3625, %v3626
      %v3628 = vrot.slane %v3439, 4
      %v3629 = vsel %vm2703, %v3626, %v3628
      %v3630 = vrot.slane %v3483, 4
      %v3631 = vsel %vm2703, %v3628, %v3630
      %v3632 = vrot.slane %v3440, 4
      %v3633 = vrot.slane %v3441, 4
      %v3634 = vsel %vm2703, %v3632, %v3633
      %v3635 = vrot.slane %v3442, 4
      %v3636 = vsel %vm2703, %v3633, %v3635
      %v3637 = vrot.slane %v3484, 4
      %v3638 = vsel %vm2703, %v3635, %v3637
      %v3639 = vrot.slane %v3443, 4
      %v3640 = vrot.slane %v3444, 4
      %v3641 = vsel %vm2703, %v3639, %v3640
      %v3642 = vrot.slane %v3445, 4
      %v3643 = vsel %vm2703, %v3640, %v3642
      %v3644 = vrot.slane %v3485, 4
      %v3645 = vsel %vm2703, %v3642, %v3644
      %v3646 = vrot.slane %v3446, 4
      %v3647 = vrot.slane %v3447, 4
      %v3648 = vsel %vm2703, %v3646, %v3647
      %v3649 = vrot.slane %v3448, 4
      %v3650 = vsel %vm2703, %v3647, %v3649
      %v3651 = vrot.slane %v3486, 4
      %v3652 = vsel %vm2703, %v3649, %v3651
      %v3653 = vrot.slane %v3449, 4
      %v3654 = vrot.slane %v3450, 4
      %v3655 = vsel %vm2703, %v3653, %v3654
      %v3656 = vrot.slane %v3451, 4
      %v3657 = vsel %vm2703, %v3654, %v3656
      %v3658 = vrot.slane %v3487, 4
      %v3659 = vsel %vm2703, %v3656, %v3658
      %v3660 = vrot.slane %v3452, 4
      %v3661 = vrot.slane %v3453, 4
      %v3662 = vsel %vm2703, %v3660, %v3661
      %v3663 = vrot.slane %v3454, 4
      %v3664 = vsel %vm2703, %v3661, %v3663
      %v3665 = vrot.slane %v3488, 4
      %v3666 = vsel %vm2703, %v3663, %v3665
      %v3667 = vrot.slane %v3455, 4
      %v3668 = vrot.slane %v3456, 4
      %v3669 = vsel %vm2703, %v3667, %v3668
      %v3670 = vrot.slane %v3457, 4
      %v3671 = vsel %vm2703, %v3668, %v3670
      %v3672 = vrot.slane %v3489, 4
      %v3673 = vsel %vm2703, %v3670, %v3672
      %v3674 = vrot.slane %v3458, 4
      %v3675 = vrot.slane %v3459, 4
      %v3676 = vsel %vm2703, %v3674, %v3675
      %v3677 = vrot.slane %v3460, 4
      %v3678 = vsel %vm2703, %v3675, %v3677
      %v3679 = vrot.slane %v3490, 4
      %v3680 = vsel %vm2703, %v3677, %v3679
      %v3681 = vrot.slane %v3461, 4
      %v3682 = vrot.slane %v3462, 4
      %v3683 = vsel %vm2703, %v3681, %v3682
      %v3684 = vrot.slane %v3463, 4
      %v3685 = vsel %vm2703, %v3682, %v3684
      %v3686 = vrot.slane %v3491, 4
      %v3687 = vsel %vm2703, %v3684, %v3686
      %v3688 = vrot.slane %v3464, 4
      %v3689 = vrot.slane %v3465, 4
      %v3690 = vsel %vm2703, %v3688, %v3689
      %v3691 = vrot.slane %v3466, 4
      %v3692 = vsel %vm2703, %v3689, %v3691
      %v3693 = vrot.slane %v3492, 4
      %v3694 = vsel %vm2703, %v3691, %v3693
      %v3695 = vrot.slane %v3467, 4
      %v3696 = vrot.slane %v3468, 4
      %v3697 = vsel %vm2703, %v3695, %v3696
      %v3698 = vrot.slane %v3469, 4
      %v3699 = vsel %vm2703, %v3696, %v3698
      %v3700 = vrot.slane %v3493, 4
      %v3701 = vsel %vm2703, %v3698, %v3700
      %v3702 = vrot.slane %v3470, 4
      %v3703 = vrot.slane %v3471, 4
      %v3704 = vsel %vm2703, %v3702, %v3703
      %v3705 = vrot.slane %v3472, 4
      %v3706 = vsel %vm2703, %v3703, %v3705
      %v3707 = vrot.slane %v3494, 4
      %v3708 = vsel %vm2703, %v3705, %v3707
      %v3709 = vrot.slane %v3473, 4
      %v3710 = vrot.slane %v3474, 4
      %v3711 = vsel %vm2703, %v3709, %v3710
      %v3712 = vrot.slane %v3475, 4
      %v3713 = vsel %vm2703, %v3710, %v3712
      %v3714 = vrot.slane %v3495, 4
      %v3715 = vsel %vm2703, %v3712, %v3714
      %v3776 = vmax.f32 %v3416, %v3578
      %v3777 = vmax.f32 %v3417, %v3580
      %v3778 = vmax.f32 %v3418, %v3582
      %v3779 = vmax.f32 %v3419, %v3585
      %v3780 = vmax.f32 %v3420, %v3587
      %v3781 = vmax.f32 %v3421, %v3589
      %v3782 = vmax.f32 %v3422, %v3592
      %v3783 = vmax.f32 %v3423, %v3594
      %v3784 = vmax.f32 %v3424, %v3596
      %v3785 = vmax.f32 %v3425, %v3599
      %v3786 = vmax.f32 %v3426, %v3601
      %v3787 = vmax.f32 %v3427, %v3603
      %v3788 = vmax.f32 %v3428, %v3606
      %v3789 = vmax.f32 %v3429, %v3608
      %v3790 = vmax.f32 %v3430, %v3610
      %v3791 = vmax.f32 %v3431, %v3613
      %v3792 = vmax.f32 %v3432, %v3615
      %v3793 = vmax.f32 %v3433, %v3617
      %v3794 = vmax.f32 %v3434, %v3620
      %v3795 = vmax.f32 %v3435, %v3622
      %v3796 = vmax.f32 %v3436, %v3624
      %v3797 = vmax.f32 %v3437, %v3627
      %v3798 = vmax.f32 %v3438, %v3629
      %v3799 = vmax.f32 %v3439, %v3631
      %v3800 = vmax.f32 %v3440, %v3634
      %v3801 = vmax.f32 %v3441, %v3636
      %v3802 = vmax.f32 %v3442, %v3638
      %v3803 = vmax.f32 %v3443, %v3641
      %v3804 = vmax.f32 %v3444, %v3643
      %v3805 = vmax.f32 %v3445, %v3645
      %v3806 = vmax.f32 %v3446, %v3648
      %v3807 = vmax.f32 %v3447, %v3650
      %v3808 = vmax.f32 %v3448, %v3652
      %v3809 = vmax.f32 %v3449, %v3655
      %v3810 = vmax.f32 %v3450, %v3657
      %v3811 = vmax.f32 %v3451, %v3659
      %v3812 = vmax.f32 %v3452, %v3662
      %v3813 = vmax.f32 %v3453, %v3664
      %v3814 = vmax.f32 %v3454, %v3666
      %v3815 = vmax.f32 %v3455, %v3669
      %v3816 = vmax.f32 %v3456, %v3671
      %v3817 = vmax.f32 %v3457, %v3673
      %v3818 = vmax.f32 %v3458, %v3676
      %v3819 = vmax.f32 %v3459, %v3678
      %v3820 = vmax.f32 %v3460, %v3680
      %v3821 = vmax.f32 %v3461, %v3683
      %v3822 = vmax.f32 %v3462, %v3685
      %v3823 = vmax.f32 %v3463, %v3687
      %v3824 = vmax.f32 %v3464, %v3690
      %v3825 = vmax.f32 %v3465, %v3692
      %v3826 = vmax.f32 %v3466, %v3694
      %v3827 = vmax.f32 %v3467, %v3697
      %v3828 = vmax.f32 %v3468, %v3699
      %v3829 = vmax.f32 %v3469, %v3701
      %v3830 = vmax.f32 %v3470, %v3704
      %v3831 = vmax.f32 %v3471, %v3706
      %v3832 = vmax.f32 %v3472, %v3708
      %v3833 = vmax.f32 %v3473, %v3711
      %v3834 = vmax.f32 %v3474, %v3713
      %v3835 = vmax.f32 %v3475, %v3715
      %v3836 = vpack.c.bf16 %v3776, %v3776
      %v3837 = vpack.c.bf16 %v3777, %v3777
      %v3838 = vpack.c.bf16 %v3778, %v3778
      %v3839 = vpack.c.bf16 %v3779, %v3779
      %v3840 = vpack.c.bf16 %v3780, %v3780
      %v3841 = vpack.c.bf16 %v3781, %v3781
      %v3842 = vpack.c.bf16 %v3782, %v3782
      %v3843 = vpack.c.bf16 %v3783, %v3783
      %v3844 = vpack.c.bf16 %v3784, %v3784
      %v3845 = vpack.c.bf16 %v3785, %v3785
      %v3846 = vpack.c.bf16 %v3786, %v3786
      %v3847 = vpack.c.bf16 %v3787, %v3787
      %v3848 = vpack.c.bf16 %v3788, %v3788
      %v3849 = vpack.c.bf16 %v3789, %v3789
      %v3850 = vpack.c.bf16 %v3790, %v3790
      %v3851 = vpack.c.bf16 %v3791, %v3791
      %v3852 = vpack.c.bf16 %v3792, %v3792
      %v3853 = vpack.c.bf16 %v3793, %v3793
      %v3854 = vpack.c.bf16 %v3794, %v3794
      %v3855 = vpack.c.bf16 %v3795, %v3795
      %v3856 = vpack.c.bf16 %v3796, %v3796
      %v3857 = vpack.c.bf16 %v3797, %v3797
      %v3858 = vpack.c.bf16 %v3798, %v3798
      %v3859 = vpack.c.bf16 %v3799, %v3799
      %v3860 = vpack.c.bf16 %v3800, %v3800
      %v3861 = vpack.c.bf16 %v3801, %v3801
      %v3862 = vpack.c.bf16 %v3802, %v3802
      %v3863 = vpack.c.bf16 %v3803, %v3803
      %v3864 = vpack.c.bf16 %v3804, %v3804
      %v3865 = vpack.c.bf16 %v3805, %v3805
      %v3866 = vpack.c.bf16 %v3806, %v3806
      %v3867 = vpack.c.bf16 %v3807, %v3807
      %v3868 = vpack.c.bf16 %v3808, %v3808
      %v3869 = vpack.c.bf16 %v3809, %v3809
      %v3870 = vpack.c.bf16 %v3810, %v3810
      %v3871 = vpack.c.bf16 %v3811, %v3811
      %v3872 = vpack.c.bf16 %v3812, %v3812
      %v3873 = vpack.c.bf16 %v3813, %v3813
      %v3874 = vpack.c.bf16 %v3814, %v3814
      %v3875 = vpack.c.bf16 %v3815, %v3815
      %v3876 = vpack.c.bf16 %v3816, %v3816
      %v3877 = vpack.c.bf16 %v3817, %v3817
      %v3878 = vpack.c.bf16 %v3818, %v3818
      %v3879 = vpack.c.bf16 %v3819, %v3819
      %v3880 = vpack.c.bf16 %v3820, %v3820
      %v3881 = vpack.c.bf16 %v3821, %v3821
      %v3882 = vpack.c.bf16 %v3822, %v3822
      %v3883 = vpack.c.bf16 %v3823, %v3823
      %v3884 = vpack.c.bf16 %v3824, %v3824
      %v3885 = vpack.c.bf16 %v3825, %v3825
      %v3886 = vpack.c.bf16 %v3826, %v3826
      %v3887 = vpack.c.bf16 %v3827, %v3827
      %v3888 = vpack.c.bf16 %v3828, %v3828
      %v3889 = vpack.c.bf16 %v3829, %v3829
      %v3890 = vpack.c.bf16 %v3830, %v3830
      %v3891 = vpack.c.bf16 %v3831, %v3831
      %v3892 = vpack.c.bf16 %v3832, %v3832
      %v3893 = vpack.c.bf16 %v3833, %v3833
      %v3894 = vpack.c.bf16 %v3834, %v3834
      %v3895 = vpack.c.bf16 %v3835, %v3835
      %v3896 = vunpack.c.l.bf16 %v3836
      %v3897 = vunpack.c.l.bf16 %v3837
      %v3898 = vunpack.c.l.bf16 %v3838
      %v3899 = vunpack.c.l.bf16 %v3839
      %v3900 = vunpack.c.l.bf16 %v3840
      %v3901 = vunpack.c.l.bf16 %v3841
      %v3902 = vunpack.c.l.bf16 %v3842
      %v3903 = vunpack.c.l.bf16 %v3843
      %v3904 = vunpack.c.l.bf16 %v3844
      %v3905 = vunpack.c.l.bf16 %v3845
      %v3906 = vunpack.c.l.bf16 %v3846
      %v3907 = vunpack.c.l.bf16 %v3847
      %v3908 = vunpack.c.l.bf16 %v3848
      %v3909 = vunpack.c.l.bf16 %v3849
      %v3910 = vunpack.c.l.bf16 %v3850
      %v3911 = vunpack.c.l.bf16 %v3851
      %v3912 = vunpack.c.l.bf16 %v3852
      %v3913 = vunpack.c.l.bf16 %v3853
      %v3914 = vunpack.c.l.bf16 %v3854
      %v3915 = vunpack.c.l.bf16 %v3855
      %v3916 = vunpack.c.l.bf16 %v3856
      %v3917 = vunpack.c.l.bf16 %v3857
      %v3918 = vunpack.c.l.bf16 %v3858
      %v3919 = vunpack.c.l.bf16 %v3859
      %v3920 = vunpack.c.l.bf16 %v3860
      %v3921 = vunpack.c.l.bf16 %v3861
      %v3922 = vunpack.c.l.bf16 %v3862
      %v3923 = vunpack.c.l.bf16 %v3863
      %v3924 = vunpack.c.l.bf16 %v3864
      %v3925 = vunpack.c.l.bf16 %v3865
      %v3926 = vunpack.c.l.bf16 %v3866
      %v3927 = vunpack.c.l.bf16 %v3867
      %v3928 = vunpack.c.l.bf16 %v3868
      %v3929 = vunpack.c.l.bf16 %v3869
      %v3930 = vunpack.c.l.bf16 %v3870
      %v3931 = vunpack.c.l.bf16 %v3871
      %v3932 = vunpack.c.l.bf16 %v3872
      %v3933 = vunpack.c.l.bf16 %v3873
      %v3934 = vunpack.c.l.bf16 %v3874
      %v3935 = vunpack.c.l.bf16 %v3875
      %v3936 = vunpack.c.l.bf16 %v3876
      %v3937 = vunpack.c.l.bf16 %v3877
      %v3938 = vunpack.c.l.bf16 %v3878
      %v3939 = vunpack.c.l.bf16 %v3879
      %v3940 = vunpack.c.l.bf16 %v3880
      %v3941 = vunpack.c.l.bf16 %v3881
      %v3942 = vunpack.c.l.bf16 %v3882
      %v3943 = vunpack.c.l.bf16 %v3883
      %v3944 = vunpack.c.l.bf16 %v3884
      %v3945 = vunpack.c.l.bf16 %v3885
      %v3946 = vunpack.c.l.bf16 %v3886
      %v3947 = vunpack.c.l.bf16 %v3887
      %v3948 = vunpack.c.l.bf16 %v3888
      %v3949 = vunpack.c.l.bf16 %v3889
      %v3950 = vunpack.c.l.bf16 %v3890
      %v3951 = vunpack.c.l.bf16 %v3891
      %v3952 = vunpack.c.l.bf16 %v3892
      %v3953 = vunpack.c.l.bf16 %v3893
      %v3954 = vunpack.c.l.bf16 %v3894
      %v3955 = vunpack.c.l.bf16 %v3895
      %v3956 = vmax.f32 %v3896, %v3908
      %v3957 = vmax.f32 %v3897, %v3909
      %v3958 = vmax.f32 %v3898, %v3910
      %v3959 = vmax.f32 %v3899, %v3911
      %v3960 = vmax.f32 %v3900, %v3912
      %v3961 = vmax.f32 %v3901, %v3913
      %v3962 = vmax.f32 %v3902, %v3914
      %v3963 = vmax.f32 %v3903, %v3915
      %v3964 = vmax.f32 %v3904, %v3916
      %v3965 = vmax.f32 %v3905, %v3917
      %v3966 = vmax.f32 %v3906, %v3918
      %v3967 = vmax.f32 %v3907, %v3919
      %v3968 = vmax.f32 %v3908, %v3920
      %v3969 = vmax.f32 %v3909, %v3921
      %v3970 = vmax.f32 %v3910, %v3922
      %v3971 = vmax.f32 %v3911, %v3923
      %v3972 = vmax.f32 %v3912, %v3924
      %v3973 = vmax.f32 %v3913, %v3925
      %v3974 = vmax.f32 %v3914, %v3926
      %v3975 = vmax.f32 %v3915, %v3927
      %v3976 = vmax.f32 %v3916, %v3928
      %v3977 = vmax.f32 %v3917, %v3929
      %v3978 = vmax.f32 %v3918, %v3930
      %v3979 = vmax.f32 %v3919, %v3931
      %v3980 = vmax.f32 %v3920, %v3932
      %v3981 = vmax.f32 %v3921, %v3933
      %v3982 = vmax.f32 %v3922, %v3934
      %v3983 = vmax.f32 %v3923, %v3935
      %v3984 = vmax.f32 %v3924, %v3936
      %v3985 = vmax.f32 %v3925, %v3937
      %v3986 = vmax.f32 %v3926, %v3938
      %v3987 = vmax.f32 %v3927, %v3939
      %v3988 = vmax.f32 %v3928, %v3940
      %v3989 = vmax.f32 %v3929, %v3941
      %v3990 = vmax.f32 %v3930, %v3942
      %v3991 = vmax.f32 %v3931, %v3943
      %v3992 = vmax.f32 %v3932, %v3944
      %v3993 = vmax.f32 %v3933, %v3945
      %v3994 = vmax.f32 %v3934, %v3946
      %v3995 = vmax.f32 %v3935, %v3947
      %v3996 = vmax.f32 %v3936, %v3948
      %v3997 = vmax.f32 %v3937, %v3949
      %v3998 = vmax.f32 %v3938, %v3950
      %v3999 = vmax.f32 %v3939, %v3951
      %v4000 = vmax.f32 %v3940, %v3952
      %v4001 = vmax.f32 %v3941, %v3953
      %v4002 = vmax.f32 %v3942, %v3954
      %v4003 = vmax.f32 %v3943, %v3955
      %v4004 = vpack.c.bf16 %v3956, %v3956
      %v4005 = vpack.c.bf16 %v3957, %v3957
      %v4006 = vpack.c.bf16 %v3958, %v3958
      %v4007 = vpack.c.bf16 %v3959, %v3959
      %v4008 = vpack.c.bf16 %v3960, %v3960
      %v4009 = vpack.c.bf16 %v3961, %v3961
      %v4010 = vpack.c.bf16 %v3962, %v3962
      %v4011 = vpack.c.bf16 %v3963, %v3963
      %v4012 = vpack.c.bf16 %v3964, %v3964
      %v4013 = vpack.c.bf16 %v3965, %v3965
      %v4014 = vpack.c.bf16 %v3966, %v3966
      %v4015 = vpack.c.bf16 %v3967, %v3967
      %v4016 = vpack.c.bf16 %v3968, %v3968
      %v4017 = vpack.c.bf16 %v3969, %v3969
      %v4018 = vpack.c.bf16 %v3970, %v3970
      %v4019 = vpack.c.bf16 %v3971, %v3971
      %v4020 = vpack.c.bf16 %v3972, %v3972
      %v4021 = vpack.c.bf16 %v3973, %v3973
      %v4022 = vpack.c.bf16 %v3974, %v3974
      %v4023 = vpack.c.bf16 %v3975, %v3975
      %v4024 = vpack.c.bf16 %v3976, %v3976
      %v4025 = vpack.c.bf16 %v3977, %v3977
      %v4026 = vpack.c.bf16 %v3978, %v3978
      %v4027 = vpack.c.bf16 %v3979, %v3979
      %v4028 = vpack.c.bf16 %v3980, %v3980
      %v4029 = vpack.c.bf16 %v3981, %v3981
      %v4030 = vpack.c.bf16 %v3982, %v3982
      %v4031 = vpack.c.bf16 %v3983, %v3983
      %v4032 = vpack.c.bf16 %v3984, %v3984
      %v4033 = vpack.c.bf16 %v3985, %v3985
      %v4034 = vpack.c.bf16 %v3986, %v3986
      %v4035 = vpack.c.bf16 %v3987, %v3987
      %v4036 = vpack.c.bf16 %v3988, %v3988
      %v4037 = vpack.c.bf16 %v3989, %v3989
      %v4038 = vpack.c.bf16 %v3990, %v3990
      %v4039 = vpack.c.bf16 %v3991, %v3991
      %v4040 = vpack.c.bf16 %v3992, %v3992
      %v4041 = vpack.c.bf16 %v3993, %v3993
      %v4042 = vpack.c.bf16 %v3994, %v3994
      %v4043 = vpack.c.bf16 %v3995, %v3995
      %v4044 = vpack.c.bf16 %v3996, %v3996
      %v4045 = vpack.c.bf16 %v3997, %v3997
      %v4046 = vpack.c.bf16 %v3998, %v3998
      %v4047 = vpack.c.bf16 %v3999, %v3999
      %v4048 = vpack.c.bf16 %v4000, %v4000
      %v4049 = vpack.c.bf16 %v4001, %v4001
      %v4050 = vpack.c.bf16 %v4002, %v4002
      %v4051 = vpack.c.bf16 %v4003, %v4003
      %v4052 = vunpack.c.l.bf16 %v4004
      %v4053 = vunpack.c.l.bf16 %v4005
      %v4054 = vunpack.c.l.bf16 %v4006
      %v4055 = vunpack.c.l.bf16 %v4007
      %v4056 = vunpack.c.l.bf16 %v4008
      %v4057 = vunpack.c.l.bf16 %v4009
      %v4058 = vunpack.c.l.bf16 %v4010
      %v4059 = vunpack.c.l.bf16 %v4011
      %v4060 = vunpack.c.l.bf16 %v4012
      %v4061 = vunpack.c.l.bf16 %v4013
      %v4062 = vunpack.c.l.bf16 %v4014
      %v4063 = vunpack.c.l.bf16 %v4015
      %v4064 = vunpack.c.l.bf16 %v4016
      %v4065 = vunpack.c.l.bf16 %v4017
      %v4066 = vunpack.c.l.bf16 %v4018
      %v4067 = vunpack.c.l.bf16 %v4019
      %v4068 = vunpack.c.l.bf16 %v4020
      %v4069 = vunpack.c.l.bf16 %v4021
      %v4070 = vunpack.c.l.bf16 %v4022
      %v4071 = vunpack.c.l.bf16 %v4023
      %v4072 = vunpack.c.l.bf16 %v4024
      %v4073 = vunpack.c.l.bf16 %v4025
      %v4074 = vunpack.c.l.bf16 %v4026
      %v4075 = vunpack.c.l.bf16 %v4027
      %v4076 = vunpack.c.l.bf16 %v4028
      %v4077 = vunpack.c.l.bf16 %v4029
      %v4078 = vunpack.c.l.bf16 %v4030
      %v4079 = vunpack.c.l.bf16 %v4031
      %v4080 = vunpack.c.l.bf16 %v4032
      %v4081 = vunpack.c.l.bf16 %v4033
      %v4082 = vunpack.c.l.bf16 %v4034
      %v4083 = vunpack.c.l.bf16 %v4035
      %v4084 = vunpack.c.l.bf16 %v4036
      %v4085 = vunpack.c.l.bf16 %v4037
      %v4086 = vunpack.c.l.bf16 %v4038
      %v4087 = vunpack.c.l.bf16 %v4039
      %v4088 = vunpack.c.l.bf16 %v4040
      %v4089 = vunpack.c.l.bf16 %v4041
      %v4090 = vunpack.c.l.bf16 %v4042
      %v4091 = vunpack.c.l.bf16 %v4043
      %v4092 = vunpack.c.l.bf16 %v4044
      %v4093 = vunpack.c.l.bf16 %v4045
      %v4094 = vunpack.c.l.bf16 %v4046
      %v4095 = vunpack.c.l.bf16 %v4047
      %v4096 = vunpack.c.l.bf16 %v4048
      %v4097 = vunpack.c.l.bf16 %v4049
      %v4098 = vunpack.c.l.bf16 %v4050
      %v4099 = vunpack.c.l.bf16 %v4051
      %v4148 = vrot.slane %v4052, 4
      %v4149 = vrot.slane %v4053, 4
      %v4150 = vsel %vm2703, %v4148, %v4149
      %v4151 = vrot.slane %v4054, 4
      %v4152 = vsel %vm2703, %v4149, %v4151
      %v4153 = vrot.slane %v4055, 4
      %v4154 = vrot.slane %v4056, 4
      %v4155 = vsel %vm2703, %v4153, %v4154
      %v4156 = vrot.slane %v4057, 4
      %v4157 = vsel %vm2703, %v4154, %v4156
      %v4158 = vrot.slane %v4058, 4
      %v4159 = vrot.slane %v4059, 4
      %v4160 = vsel %vm2703, %v4158, %v4159
      %v4161 = vrot.slane %v4060, 4
      %v4162 = vsel %vm2703, %v4159, %v4161
      %v4163 = vrot.slane %v4061, 4
      %v4164 = vrot.slane %v4062, 4
      %v4165 = vsel %vm2703, %v4163, %v4164
      %v4166 = vrot.slane %v4063, 4
      %v4167 = vsel %vm2703, %v4164, %v4166
      %v4168 = vrot.slane %v4064, 4
      %v4169 = vrot.slane %v4065, 4
      %v4170 = vsel %vm2703, %v4168, %v4169
      %v4171 = vrot.slane %v4066, 4
      %v4172 = vsel %vm2703, %v4169, %v4171
      %v4173 = vrot.slane %v4067, 4
      %v4174 = vrot.slane %v4068, 4
      %v4175 = vsel %vm2703, %v4173, %v4174
      %v4176 = vrot.slane %v4069, 4
      %v4177 = vsel %vm2703, %v4174, %v4176
      %v4178 = vrot.slane %v4070, 4
      %v4179 = vrot.slane %v4071, 4
      %v4180 = vsel %vm2703, %v4178, %v4179
      %v4181 = vrot.slane %v4072, 4
      %v4182 = vsel %vm2703, %v4179, %v4181
      %v4183 = vrot.slane %v4073, 4
      %v4184 = vrot.slane %v4074, 4
      %v4185 = vsel %vm2703, %v4183, %v4184
      %v4186 = vrot.slane %v4075, 4
      %v4187 = vsel %vm2703, %v4184, %v4186
      %v4188 = vrot.slane %v4076, 4
      %v4189 = vrot.slane %v4077, 4
      %v4190 = vsel %vm2703, %v4188, %v4189
      %v4191 = vrot.slane %v4078, 4
      %v4192 = vsel %vm2703, %v4189, %v4191
      %v4193 = vrot.slane %v4079, 4
      %v4194 = vrot.slane %v4080, 4
      %v4195 = vsel %vm2703, %v4193, %v4194
      %v4196 = vrot.slane %v4081, 4
      %v4197 = vsel %vm2703, %v4194, %v4196
      %v4198 = vrot.slane %v4082, 4
      %v4199 = vrot.slane %v4083, 4
      %v4200 = vsel %vm2703, %v4198, %v4199
      %v4201 = vrot.slane %v4084, 4
      %v4202 = vsel %vm2703, %v4199, %v4201
      %v4203 = vrot.slane %v4085, 4
      %v4204 = vrot.slane %v4086, 4
      %v4205 = vsel %vm2703, %v4203, %v4204
      %v4206 = vrot.slane %v4087, 4
      %v4207 = vsel %vm2703, %v4204, %v4206
      %v4208 = vrot.slane %v4088, 4
      %v4209 = vrot.slane %v4089, 4
      %v4210 = vsel %vm2703, %v4208, %v4209
      %v4211 = vrot.slane %v4090, 4
      %v4212 = vsel %vm2703, %v4209, %v4211
      %v4213 = vrot.slane %v4091, 4
      %v4214 = vrot.slane %v4092, 4
      %v4215 = vsel %vm2703, %v4213, %v4214
      %v4216 = vrot.slane %v4093, 4
      %v4217 = vsel %vm2703, %v4214, %v4216
      %v4218 = vrot.slane %v4094, 4
      %v4219 = vrot.slane %v4095, 4
      %v4220 = vsel %vm2703, %v4218, %v4219
      %v4221 = vrot.slane %v4096, 4
      %v4222 = vsel %vm2703, %v4219, %v4221
      %v4223 = vrot.slane %v4097, 4
      %v4224 = vrot.slane %v4098, 4
      %v4225 = vsel %vm2703, %v4223, %v4224
      %v4226 = vrot.slane %v4099, 4
      %v4227 = vsel %vm2703, %v4224, %v4226
      %v4276 = vmax.f32 %v4052, %v4150
      %v4277 = vmax.f32 %v4053, %v4152
      %v4278 = vmax.f32 %v4054, %v4151
      %v4279 = vmax.f32 %v4055, %v4155
      %v4280 = vmax.f32 %v4056, %v4157
      %v4281 = vmax.f32 %v4057, %v4156
      %v4282 = vmax.f32 %v4058, %v4160
      %v4283 = vmax.f32 %v4059, %v4162
      %v4284 = vmax.f32 %v4060, %v4161
      %v4285 = vmax.f32 %v4061, %v4165
      %v4286 = vmax.f32 %v4062, %v4167
      %v4287 = vmax.f32 %v4063, %v4166
      %v4288 = vmax.f32 %v4064, %v4170
      %v4289 = vmax.f32 %v4065, %v4172
      %v4290 = vmax.f32 %v4066, %v4171
      %v4291 = vmax.f32 %v4067, %v4175
      %v4292 = vmax.f32 %v4068, %v4177
      %v4293 = vmax.f32 %v4069, %v4176
      %v4294 = vmax.f32 %v4070, %v4180
      %v4295 = vmax.f32 %v4071, %v4182
      %v4296 = vmax.f32 %v4072, %v4181
      %v4297 = vmax.f32 %v4073, %v4185
      %v4298 = vmax.f32 %v4074, %v4187
      %v4299 = vmax.f32 %v4075, %v4186
      %v4300 = vmax.f32 %v4076, %v4190
      %v4301 = vmax.f32 %v4077, %v4192
      %v4302 = vmax.f32 %v4078, %v4191
      %v4303 = vmax.f32 %v4079, %v4195
      %v4304 = vmax.f32 %v4080, %v4197
      %v4305 = vmax.f32 %v4081, %v4196
      %v4306 = vmax.f32 %v4082, %v4200
      %v4307 = vmax.f32 %v4083, %v4202
      %v4308 = vmax.f32 %v4084, %v4201
      %v4309 = vmax.f32 %v4085, %v4205
      %v4310 = vmax.f32 %v4086, %v4207
      %v4311 = vmax.f32 %v4087, %v4206
      %v4312 = vmax.f32 %v4088, %v4210
      %v4313 = vmax.f32 %v4089, %v4212
      %v4314 = vmax.f32 %v4090, %v4211
      %v4315 = vmax.f32 %v4091, %v4215
      %v4316 = vmax.f32 %v4092, %v4217
      %v4317 = vmax.f32 %v4093, %v4216
      %v4318 = vmax.f32 %v4094, %v4220
      %v4319 = vmax.f32 %v4095, %v4222
      %v4320 = vmax.f32 %v4096, %v4221
      %v4321 = vmax.f32 %v4097, %v4225
      %v4322 = vmax.f32 %v4098, %v4227
      %v4323 = vmax.f32 %v4099, %v4226
      %v4324 = vpack.c.bf16 %v4276, %v4276
      %v4325 = vpack.c.bf16 %v4277, %v4277
      %v4326 = vpack.c.bf16 %v4278, %v4278
      %v4327 = vpack.c.bf16 %v4279, %v4279
      %v4328 = vpack.c.bf16 %v4280, %v4280
      %v4329 = vpack.c.bf16 %v4281, %v4281
      %v4330 = vpack.c.bf16 %v4282, %v4282
      %v4331 = vpack.c.bf16 %v4283, %v4283
      %v4332 = vpack.c.bf16 %v4284, %v4284
      %v4333 = vpack.c.bf16 %v4285, %v4285
      %v4334 = vpack.c.bf16 %v4286, %v4286
      %v4335 = vpack.c.bf16 %v4287, %v4287
      %v4336 = vpack.c.bf16 %v4288, %v4288
      %v4337 = vpack.c.bf16 %v4289, %v4289
      %v4338 = vpack.c.bf16 %v4290, %v4290
      %v4339 = vpack.c.bf16 %v4291, %v4291
      %v4340 = vpack.c.bf16 %v4292, %v4292
      %v4341 = vpack.c.bf16 %v4293, %v4293
      %v4342 = vpack.c.bf16 %v4294, %v4294
      %v4343 = vpack.c.bf16 %v4295, %v4295
      %v4344 = vpack.c.bf16 %v4296, %v4296
      %v4345 = vpack.c.bf16 %v4297, %v4297
      %v4346 = vpack.c.bf16 %v4298, %v4298
      %v4347 = vpack.c.bf16 %v4299, %v4299
      %v4348 = vpack.c.bf16 %v4300, %v4300
      %v4349 = vpack.c.bf16 %v4301, %v4301
      %v4350 = vpack.c.bf16 %v4302, %v4302
      %v4351 = vpack.c.bf16 %v4303, %v4303
      %v4352 = vpack.c.bf16 %v4304, %v4304
      %v4353 = vpack.c.bf16 %v4305, %v4305
      %v4354 = vpack.c.bf16 %v4306, %v4306
      %v4355 = vpack.c.bf16 %v4307, %v4307
      %v4356 = vpack.c.bf16 %v4308, %v4308
      %v4357 = vpack.c.bf16 %v4309, %v4309
      %v4358 = vpack.c.bf16 %v4310, %v4310
      %v4359 = vpack.c.bf16 %v4311, %v4311
      %v4360 = vpack.c.bf16 %v4312, %v4312
      %v4361 = vpack.c.bf16 %v4313, %v4313
      %v4362 = vpack.c.bf16 %v4314, %v4314
      %v4363 = vpack.c.bf16 %v4315, %v4315
      %v4364 = vpack.c.bf16 %v4316, %v4316
      %v4365 = vpack.c.bf16 %v4317, %v4317
      %v4366 = vpack.c.bf16 %v4318, %v4318
      %v4367 = vpack.c.bf16 %v4319, %v4319
      %v4368 = vpack.c.bf16 %v4320, %v4320
      %v4369 = vpack.c.bf16 %v4321, %v4321
      %v4370 = vpack.c.bf16 %v4322, %v4322
      %v4371 = vpack.c.bf16 %v4323, %v4323
      %v4372 = vld [vmem:[%s138] sm:$0xf]
      %v4373 = vld [vmem:[%s138 + $0x4] sm:$0xf]
      %v4374 = vld [vmem:[%s138 + $0x8] sm:$0xf]
      %v4375 = vld [vmem:[%s138 + $0xc] sm:$0xf]
      %v4376 = vld [vmem:[%s138 + $0x10] sm:$0xf]
      %v4377 = vld [vmem:[%s138 + $0x14] sm:$0xf]
      %v4378 = vld [vmem:[%s138 + $0x18] sm:$0xf]
      %v4379 = vld [vmem:[%s138 + $0x1c] sm:$0xf]
      %v4380 = vld [vmem:[%s138 + $0x20] sm:$0xf]
      %v4381 = vld [vmem:[%s138 + $0x24] sm:$0xf]
      %v4382 = vld [vmem:[%s138 + $0x28] sm:$0xf]
      %v4383 = vld [vmem:[%s138 + $0x2c] sm:$0xf]
      %v4384 = vld [vmem:[%s138 + $0x30] sm:$0xf]
      %v4385 = vld [vmem:[%s138 + $0x34] sm:$0xf]
      %v4386 = vld [vmem:[%s138 + $0x38] sm:$0xf]
      %v4387 = vld [vmem:[%s138 + $0x3c] sm:$0xf]
      %v4388 = vld [vmem:[%s138 + $0x40] sm:$0xf]
      %v4389 = vld [vmem:[%s138 + $0x44] sm:$0xf]
      %v4390 = vld [vmem:[%s138 + $0x48] sm:$0xf]
      %v4391 = vld [vmem:[%s138 + $0x4c] sm:$0xf]
      %v4392 = vld [vmem:[%s138 + $0x50] sm:$0xf]
      %v4393 = vld [vmem:[%s138 + $0x54] sm:$0xf]
      %v4394 = vld [vmem:[%s138 + $0x58] sm:$0xf]
      %v4395 = vld [vmem:[%s138 + $0x5c] sm:$0xf]
      %v4396 = vld [vmem:[%s138 + $0x60] sm:$0xf]
      %v4397 = vld [vmem:[%s138 + $0x64] sm:$0xf]
      %v4398 = vld [vmem:[%s138 + $0x68] sm:$0xf]
      %v4399 = vld [vmem:[%s138 + $0x6c] sm:$0xf]
      %v4400 = vld [vmem:[%s138 + $0x70] sm:$0xf]
      %v4401 = vld [vmem:[%s138 + $0x74] sm:$0xf]
      %v4402 = vld [vmem:[%s138 + $0x78] sm:$0xf]
      %v4403 = vld [vmem:[%s138 + $0x7c] sm:$0xf]
      %v4404 = vld [vmem:[%s1] sm:$0x3]
      %vm4453 = vcmask 1040384
      %vm4454 = vcmask 1044484
      %vm4455 = vmor %vm4453, %vm4454
      %v4456 = vrot.slane %v3080, 7
      %v4457 = vrot.slane %v4456, 4
      %v4458 = vrot.slane %v3081, 7
      %v4459 = vsel %vm4455, %v4457, %v4458
      %v4460 = vrot.slane %v4458, 4
      %v4461 = vrot.slane %v3082, 7
      %v4462 = vsel %vm4455, %v4460, %v4461
      %v4463 = vrot.slane %v3084, 7
      %v4464 = vrot.slane %v4463, 4
      %v4465 = vrot.slane %v3085, 7
      %v4466 = vsel %vm4455, %v4464, %v4465
      %v4467 = vrot.slane %v4465, 4
      %v4468 = vrot.slane %v3086, 7
      %v4469 = vsel %vm4455, %v4467, %v4468
      %v4470 = vrot.slane %v3088, 7
      %v4471 = vrot.slane %v4470, 4
      %v4472 = vrot.slane %v3089, 7
      %v4473 = vsel %vm4455, %v4471, %v4472
      %v4474 = vrot.slane %v4472, 4
      %v4475 = vrot.slane %v3090, 7
      %v4476 = vsel %vm4455, %v4474, %v4475
      %v4477 = vrot.slane %v3092, 7
      %v4478 = vrot.slane %v4477, 4
      %v4479 = vrot.slane %v3093, 7
      %v4480 = vsel %vm4455, %v4478, %v4479
      %v4481 = vrot.slane %v4479, 4
      %v4482 = vrot.slane %v3094, 7
      %v4483 = vsel %vm4455, %v4481, %v4482
      %v4484 = vrot.slane %v3096, 7
      %v4485 = vrot.slane %v4484, 4
      %v4486 = vrot.slane %v3097, 7
      %v4487 = vsel %vm4455, %v4485, %v4486
      %v4488 = vrot.slane %v4486, 4
      %v4489 = vrot.slane %v3098, 7
      %v4490 = vsel %vm4455, %v4488, %v4489
      %v4491 = vrot.slane %v3100, 7
      %v4492 = vrot.slane %v4491, 4
      %v4493 = vrot.slane %v3101, 7
      %v4494 = vsel %vm4455, %v4492, %v4493
      %v4495 = vrot.slane %v4493, 4
      %v4496 = vrot.slane %v3102, 7
      %v4497 = vsel %vm4455, %v4495, %v4496
      %v4498 = vrot.slane %v3104, 7
      %v4499 = vrot.slane %v4498, 4
      %v4500 = vrot.slane %v3105, 7
      %v4501 = vsel %vm4455, %v4499, %v4500
      %v4502 = vrot.slane %v4500, 4
      %v4503 = vrot.slane %v3106, 7
      %v4504 = vsel %vm4455, %v4502, %v4503
      %v4505 = vrot.slane %v3108, 7
      %v4506 = vrot.slane %v4505, 4
      %v4507 = vrot.slane %v3109, 7
      %v4508 = vsel %vm4455, %v4506, %v4507
      %v4509 = vrot.slane %v4507, 4
      %v4510 = vrot.slane %v3110, 7
      %v4511 = vsel %vm4455, %v4509, %v4510
      %v4512 = vrot.slane %v3112, 7
      %v4513 = vrot.slane %v4512, 4
      %v4514 = vrot.slane %v3113, 7
      %v4515 = vsel %vm4455, %v4513, %v4514
      %v4516 = vrot.slane %v4514, 4
      %v4517 = vrot.slane %v3114, 7
      %v4518 = vsel %vm4455, %v4516, %v4517
      %v4519 = vrot.slane %v3116, 7
      %v4520 = vrot.slane %v4519, 4
      %v4521 = vrot.slane %v3117, 7
      %v4522 = vsel %vm4455, %v4520, %v4521
      %v4523 = vrot.slane %v4521, 4
      %v4524 = vrot.slane %v3118, 7
      %v4525 = vsel %vm4455, %v4523, %v4524
      %v4526 = vrot.slane %v3120, 7
      %v4527 = vrot.slane %v4526, 4
      %v4528 = vrot.slane %v3121, 7
      %v4529 = vsel %vm4455, %v4527, %v4528
      %v4530 = vrot.slane %v4528, 4
      %v4531 = vrot.slane %v3122, 7
      %v4532 = vsel %vm4455, %v4530, %v4531
      %v4533 = vrot.slane %v3124, 7
      %v4534 = vrot.slane %v4533, 4
      %v4535 = vrot.slane %v3125, 7
      %v4536 = vsel %vm4455, %v4534, %v4535
      %v4537 = vrot.slane %v4535, 4
      %v4538 = vrot.slane %v3126, 7
      %v4539 = vsel %vm4455, %v4537, %v4538
      %v4540 = vrot.slane %v3128, 7
      %v4541 = vrot.slane %v4540, 4
      %v4542 = vrot.slane %v3129, 7
      %v4543 = vsel %vm4455, %v4541, %v4542
      %v4544 = vrot.slane %v4542, 4
      %v4545 = vrot.slane %v3130, 7
      %v4546 = vsel %vm4455, %v4544, %v4545
      %v4547 = vrot.slane %v3132, 7
      %v4548 = vrot.slane %v4547, 4
      %v4549 = vrot.slane %v3133, 7
      %v4550 = vsel %vm4455, %v4548, %v4549
      %v4551 = vrot.slane %v4549, 4
      %v4552 = vrot.slane %v3134, 7
      %v4553 = vsel %vm4455, %v4551, %v4552
      %v4554 = vrot.slane %v3136, 7
      %v4555 = vrot.slane %v4554, 4
      %v4556 = vrot.slane %v3137, 7
      %v4557 = vsel %vm4455, %v4555, %v4556
      %v4558 = vrot.slane %v4556, 4
      %v4559 = vrot.slane %v3138, 7
      %v4560 = vsel %vm4455, %v4558, %v4559
      %v4561 = vrot.slane %v3140, 7
      %v4562 = vrot.slane %v4561, 4
      %v4563 = vrot.slane %v3141, 7
      %v4564 = vsel %vm4455, %v4562, %v4563
      %v4565 = vrot.slane %v4563, 4
      %v4566 = vrot.slane %v3142, 7
      %v4567 = vsel %vm4455, %v4565, %v4566
      %s4568 = scalar_lea.vmem %s1, 2
      %v4569 = vld [vmem:[%s4568] sm:$0x3]
      %v4570 = vunpack.c.l.b16 %v4459
      %v4571 = vunpack.c.l.b16 %v4462
      %v4572 = vunpack.c.l.b16 %v4466
      %v4573 = vunpack.c.l.b16 %v4469
      %v4574 = vunpack.c.l.b16 %v4473
      %v4575 = vunpack.c.l.b16 %v4476
      %v4576 = vunpack.c.l.b16 %v4480
      %v4577 = vunpack.c.l.b16 %v4483
      %v4578 = vunpack.c.l.b16 %v4487
      %v4579 = vunpack.c.l.b16 %v4490
      %v4580 = vunpack.c.l.b16 %v4494
      %v4581 = vunpack.c.l.b16 %v4497
      %v4582 = vunpack.c.l.b16 %v4501
      %v4583 = vunpack.c.l.b16 %v4504
      %v4584 = vunpack.c.l.b16 %v4508
      %v4585 = vunpack.c.l.b16 %v4511
      %v4586 = vunpack.c.l.b16 %v4515
      %v4587 = vunpack.c.l.b16 %v4518
      %v4588 = vunpack.c.l.b16 %v4522
      %v4589 = vunpack.c.l.b16 %v4525
      %v4590 = vunpack.c.l.b16 %v4529
      %v4591 = vunpack.c.l.b16 %v4532
      %v4592 = vunpack.c.l.b16 %v4536
      %v4593 = vunpack.c.l.b16 %v4539
      %v4594 = vunpack.c.l.b16 %v4543
      %v4595 = vunpack.c.l.b16 %v4546
      %v4596 = vunpack.c.l.b16 %v4550
      %v4597 = vunpack.c.l.b16 %v4553
      %v4598 = vunpack.c.l.b16 %v4557
      %v4599 = vunpack.c.l.b16 %v4560
      %v4600 = vunpack.c.l.b16 %v4564
      %v4601 = vunpack.c.l.b16 %v4567
      %v4602 = vpack.c.b16 %v4571, %v4570
      %v4603 = vpack.c.b16 %v4573, %v4572
      %v4604 = vpack.c.b16 %v4575, %v4574
      %v4605 = vpack.c.b16 %v4577, %v4576
      %v4606 = vpack.c.b16 %v4579, %v4578
      %v4607 = vpack.c.b16 %v4581, %v4580
      %v4608 = vpack.c.b16 %v4583, %v4582
      %v4609 = vpack.c.b16 %v4585, %v4584
      %v4610 = vpack.c.b16 %v4587, %v4586
      %v4611 = vpack.c.b16 %v4589, %v4588
      %v4612 = vpack.c.b16 %v4591, %v4590
      %v4613 = vpack.c.b16 %v4593, %v4592
      %v4614 = vpack.c.b16 %v4595, %v4594
      %v4615 = vpack.c.b16 %v4597, %v4596
      %v4616 = vpack.c.b16 %v4599, %v4598
      %v4617 = vpack.c.b16 %v4601, %v4600
      %vm4618 = vcmask 31744
      %v4620 = vsel %vm4618, %v4602, 0
      %v4623 = vsel %vm4618, %v4603, 0
      %v4626 = vsel %vm4618, %v4604, 0
      %v4629 = vsel %vm4618, %v4605, 0
      %v4632 = vsel %vm4618, %v4606, 0
      %v4635 = vsel %vm4618, %v4607, 0
      %v4638 = vsel %vm4618, %v4608, 0
      %v4641 = vsel %vm4618, %v4609, 0
      %v4644 = vsel %vm4618, %v4610, 0
      %v4647 = vsel %vm4618, %v4611, 0
      %v4650 = vsel %vm4618, %v4612, 0
      %v4653 = vsel %vm4618, %v4613, 0
      %v4656 = vsel %vm4618, %v4614, 0
      %v4659 = vsel %vm4618, %v4615, 0
      %v4662 = vsel %vm4618, %v4616, 0
      %v4665 = vsel %vm4618, %v4617, 0
      %vm4667 = vcmask 1041408
      %v4669 = vsel %vm4667, %v4569, 0
      %4671 = vmatpush.bf16.msra.mxu0 0
      %4672 = vmatpush.bf16.msra.mxu0 0
      %4673 = vmatpush.bf16.msra.mxu0 0
      %4674 = vmatpush.bf16.msra.mxu0 0
      %4675 = vmatpush.bf16.msra.mxu0 0
      %4676 = vmatpush.bf16.msra.mxu0 0
      %4677 = vmatpush.bf16.msra.mxu0 0
      %4678 = vmatpush.bf16.msra.mxu0 %v4669
      %4679 = vmatmul.bf16.gmra.mxu0 %v4620
      %v4680 = vpop.f32.mrf.mxu0
      %v4681 = vadd.f32 0.0, %v4680
      %v4682 = vpop.f32.mrf.mxu0
      %v4683 = vadd.f32 0.0, %v4682
      %4684 = vmatmul.bf16.gmra.mxu0 %v4623
      %v4685 = vpop.f32.mrf.mxu0
      %v4686 = vadd.f32 0.0, %v4685
      %v4687 = vpop.f32.mrf.mxu0
      %v4688 = vadd.f32 0.0, %v4687
      %4689 = vmatmul.bf16.gmra.mxu0 %v4626
      %v4690 = vpop.f32.mrf.mxu0
      %v4691 = vadd.f32 0.0, %v4690
      %v4692 = vpop.f32.mrf.mxu0
      %v4693 = vadd.f32 0.0, %v4692
      %4694 = vmatmul.bf16.gmra.mxu0 %v4629
      %v4695 = vpop.f32.mrf.mxu0
      %v4696 = vadd.f32 0.0, %v4695
      %v4697 = vpop.f32.mrf.mxu0
      %v4698 = vadd.f32 0.0, %v4697
      %4699 = vmatmul.bf16.gmra.mxu0 %v4632
      %v4700 = vpop.f32.mrf.mxu0
      %v4701 = vadd.f32 0.0, %v4700
      %v4702 = vpop.f32.mrf.mxu0
      %v4703 = vadd.f32 0.0, %v4702
      %4704 = vmatmul.bf16.gmra.mxu0 %v4635
      %v4705 = vpop.f32.mrf.mxu0
      %v4706 = vadd.f32 0.0, %v4705
      %v4707 = vpop.f32.mrf.mxu0
      %v4708 = vadd.f32 0.0, %v4707
      %4709 = vmatmul.bf16.gmra.mxu0 %v4638
      %v4710 = vpop.f32.mrf.mxu0
      %v4711 = vadd.f32 0.0, %v4710
      %v4712 = vpop.f32.mrf.mxu0
      %v4713 = vadd.f32 0.0, %v4712
      %4714 = vmatmul.bf16.gmra.mxu0 %v4641
      %v4715 = vpop.f32.mrf.mxu0
      %v4716 = vadd.f32 0.0, %v4715
      %v4717 = vpop.f32.mrf.mxu0
      %v4718 = vadd.f32 0.0, %v4717
      %4719 = vmatmul.bf16.gmra.mxu0 %v4644
      %v4720 = vpop.f32.mrf.mxu0
      %v4721 = vadd.f32 0.0, %v4720
      %v4722 = vpop.f32.mrf.mxu0
      %v4723 = vadd.f32 0.0, %v4722
      %4724 = vmatmul.bf16.gmra.mxu0 %v4647
      %v4725 = vpop.f32.mrf.mxu0
      %v4726 = vadd.f32 0.0, %v4725
      %v4727 = vpop.f32.mrf.mxu0
      %v4728 = vadd.f32 0.0, %v4727
      %4729 = vmatmul.bf16.gmra.mxu0 %v4650
      %v4730 = vpop.f32.mrf.mxu0
      %v4731 = vadd.f32 0.0, %v4730
      %v4732 = vpop.f32.mrf.mxu0
      %v4733 = vadd.f32 0.0, %v4732
      %4734 = vmatmul.bf16.gmra.mxu0 %v4653
      %v4735 = vpop.f32.mrf.mxu0
      %v4736 = vadd.f32 0.0, %v4735
      %v4737 = vpop.f32.mrf.mxu0
      %v4738 = vadd.f32 0.0, %v4737
      %4739 = vmatmul.bf16.gmra.mxu0 %v4656
      %v4740 = vpop.f32.mrf.mxu0
      %v4741 = vadd.f32 0.0, %v4740
      %v4742 = vpop.f32.mrf.mxu0
      %v4743 = vadd.f32 0.0, %v4742
      %4744 = vmatmul.bf16.gmra.mxu0 %v4659
      %v4745 = vpop.f32.mrf.mxu0
      %v4746 = vadd.f32 0.0, %v4745
      %v4747 = vpop.f32.mrf.mxu0
      %v4748 = vadd.f32 0.0, %v4747
      %4749 = vmatmul.bf16.gmra.mxu0 %v4662
      %v4750 = vpop.f32.mrf.mxu0
      %v4751 = vadd.f32 0.0, %v4750
      %v4752 = vpop.f32.mrf.mxu0
      %v4753 = vadd.f32 0.0, %v4752
      %4754 = vmatmul.bf16.gmra.mxu0 %v4665
      %v4755 = vpop.f32.mrf.mxu0
      %v4756 = vadd.f32 0.0, %v4755
      %v4757 = vpop.f32.mrf.mxu0
      %v4758 = vadd.f32 0.0, %v4757
      %4759 = vdwg.mxu0
      %v4792 = vunpack.c.l.b16 %v4372
      %v4793 = vunpack.c.l.b16 %v4373
      %v4794 = vunpack.c.l.b16 %v4374
      %v4795 = vunpack.c.l.b16 %v4375
      %v4796 = vunpack.c.l.b16 %v4376
      %v4797 = vunpack.c.l.b16 %v4377
      %v4798 = vunpack.c.l.b16 %v4378
      %v4799 = vunpack.c.l.b16 %v4379
      %v4800 = vunpack.c.l.b16 %v4380
      %v4801 = vunpack.c.l.b16 %v4381
      %v4802 = vunpack.c.l.b16 %v4382
      %v4803 = vunpack.c.l.b16 %v4383
      %v4804 = vunpack.c.l.b16 %v4384
      %v4805 = vunpack.c.l.b16 %v4385
      %v4806 = vunpack.c.l.b16 %v4386
      %v4807 = vunpack.c.l.b16 %v4387
      %v4808 = vunpack.c.l.b16 %v4388
      %v4809 = vunpack.c.l.b16 %v4389
      %v4810 = vunpack.c.l.b16 %v4390
      %v4811 = vunpack.c.l.b16 %v4391
      %v4812 = vunpack.c.l.b16 %v4392
      %v4813 = vunpack.c.l.b16 %v4393
      %v4814 = vunpack.c.l.b16 %v4394
      %v4815 = vunpack.c.l.b16 %v4395
      %v4816 = vunpack.c.l.b16 %v4396
      %v4817 = vunpack.c.l.b16 %v4397
      %v4818 = vunpack.c.l.b16 %v4398
      %v4819 = vunpack.c.l.b16 %v4399
      %v4820 = vunpack.c.l.b16 %v4400
      %v4821 = vunpack.c.l.b16 %v4401
      %v4822 = vunpack.c.l.b16 %v4402
      %v4823 = vunpack.c.l.b16 %v4403
      %v4824 = vpack.c.b16 %v4793, %v4792
      %v4825 = vpack.c.b16 %v4795, %v4794
      %v4826 = vpack.c.b16 %v4797, %v4796
      %v4827 = vpack.c.b16 %v4799, %v4798
      %v4828 = vpack.c.b16 %v4801, %v4800
      %v4829 = vpack.c.b16 %v4803, %v4802
      %v4830 = vpack.c.b16 %v4805, %v4804
      %v4831 = vpack.c.b16 %v4807, %v4806
      %v4832 = vpack.c.b16 %v4809, %v4808
      %v4833 = vpack.c.b16 %v4811, %v4810
      %v4834 = vpack.c.b16 %v4813, %v4812
      %v4835 = vpack.c.b16 %v4815, %v4814
      %v4836 = vpack.c.b16 %v4817, %v4816
      %v4837 = vpack.c.b16 %v4819, %v4818
      %v4838 = vpack.c.b16 %v4821, %v4820
      %v4839 = vpack.c.b16 %v4823, %v4822
      %v4841 = vsel %vm4618, %v4824, 0
      %v4844 = vsel %vm4618, %v4825, 0
      %v4847 = vsel %vm4618, %v4826, 0
      %v4850 = vsel %vm4618, %v4827, 0
      %v4853 = vsel %vm4618, %v4828, 0
      %v4856 = vsel %vm4618, %v4829, 0
      %v4859 = vsel %vm4618, %v4830, 0
      %v4862 = vsel %vm4618, %v4831, 0
      %v4865 = vsel %vm4618, %v4832, 0
      %v4868 = vsel %vm4618, %v4833, 0
      %v4871 = vsel %vm4618, %v4834, 0
      %v4874 = vsel %vm4618, %v4835, 0
      %v4877 = vsel %vm4618, %v4836, 0
      %v4880 = vsel %vm4618, %v4837, 0
      %v4883 = vsel %vm4618, %v4838, 0
      %v4886 = vsel %vm4618, %v4839, 0
      %v4889 = vsel %vm4667, %v4404, 0
      %4891 = vmatpush.bf16.msra.mxu0 0
      %4892 = vmatpush.bf16.msra.mxu0 0
      %4893 = vmatpush.bf16.msra.mxu0 0
      %4894 = vmatpush.bf16.msra.mxu0 0
      %4895 = vmatpush.bf16.msra.mxu0 0
      %4896 = vmatpush.bf16.msra.mxu0 0
      %4897 = vmatpush.bf16.msra.mxu0 0
      %4898 = vmatpush.bf16.msra.mxu0 %v4889
      %4899 = vmatmul.bf16.gmra.mxu0 %v4841
      %v4900 = vpop.f32.mrf.mxu0
      %v4901 = vadd.f32 %v4681, %v4900
      %v4902 = vpop.f32.mrf.mxu0
      %v4903 = vadd.f32 %v4683, %v4902
      %4904 = vmatmul.bf16.gmra.mxu0 %v4844
      %v4905 = vpop.f32.mrf.mxu0
      %v4906 = vadd.f32 %v4686, %v4905
      %v4907 = vpop.f32.mrf.mxu0
      %v4908 = vadd.f32 %v4688, %v4907
      %4909 = vmatmul.bf16.gmra.mxu0 %v4847
      %v4910 = vpop.f32.mrf.mxu0
      %v4911 = vadd.f32 %v4691, %v4910
      %v4912 = vpop.f32.mrf.mxu0
      %v4913 = vadd.f32 %v4693, %v4912
      %4914 = vmatmul.bf16.gmra.mxu0 %v4850
      %v4915 = vpop.f32.mrf.mxu0
      %v4916 = vadd.f32 %v4696, %v4915
      %v4917 = vpop.f32.mrf.mxu0
      %v4918 = vadd.f32 %v4698, %v4917
      %4919 = vmatmul.bf16.gmra.mxu0 %v4853
      %v4920 = vpop.f32.mrf.mxu0
      %v4921 = vadd.f32 %v4701, %v4920
      %v4922 = vpop.f32.mrf.mxu0
      %v4923 = vadd.f32 %v4703, %v4922
      %4924 = vmatmul.bf16.gmra.mxu0 %v4856
      %v4925 = vpop.f32.mrf.mxu0
      %v4926 = vadd.f32 %v4706, %v4925
      %v4927 = vpop.f32.mrf.mxu0
      %v4928 = vadd.f32 %v4708, %v4927
      %4929 = vmatmul.bf16.gmra.mxu0 %v4859
      %v4930 = vpop.f32.mrf.mxu0
      %v4931 = vadd.f32 %v4711, %v4930
      %v4932 = vpop.f32.mrf.mxu0
      %v4933 = vadd.f32 %v4713, %v4932
      %4934 = vmatmul.bf16.gmra.mxu0 %v4862
      %v4935 = vpop.f32.mrf.mxu0
      %v4936 = vadd.f32 %v4716, %v4935
      %v4937 = vpop.f32.mrf.mxu0
      %v4938 = vadd.f32 %v4718, %v4937
      %4939 = vmatmul.bf16.gmra.mxu0 %v4865
      %v4940 = vpop.f32.mrf.mxu0
      %v4941 = vadd.f32 %v4721, %v4940
      %v4942 = vpop.f32.mrf.mxu0
      %v4943 = vadd.f32 %v4723, %v4942
      %4944 = vmatmul.bf16.gmra.mxu0 %v4868
      %v4945 = vpop.f32.mrf.mxu0
      %v4946 = vadd.f32 %v4726, %v4945
      %v4947 = vpop.f32.mrf.mxu0
      %v4948 = vadd.f32 %v4728, %v4947
      %4949 = vmatmul.bf16.gmra.mxu0 %v4871
      %v4950 = vpop.f32.mrf.mxu0
      %v4951 = vadd.f32 %v4731, %v4950
      %v4952 = vpop.f32.mrf.mxu0
      %v4953 = vadd.f32 %v4733, %v4952
      %4954 = vmatmul.bf16.gmra.mxu0 %v4874
      %v4955 = vpop.f32.mrf.mxu0
      %v4956 = vadd.f32 %v4736, %v4955
      %v4957 = vpop.f32.mrf.mxu0
      %v4958 = vadd.f32 %v4738, %v4957
      %4959 = vmatmul.bf16.gmra.mxu0 %v4877
      %v4960 = vpop.f32.mrf.mxu0
      %v4961 = vadd.f32 %v4741, %v4960
      %v4962 = vpop.f32.mrf.mxu0
      %v4963 = vadd.f32 %v4743, %v4962
      %4964 = vmatmul.bf16.gmra.mxu0 %v4880
      %v4965 = vpop.f32.mrf.mxu0
      %v4966 = vadd.f32 %v4746, %v4965
      %v4967 = vpop.f32.mrf.mxu0
      %v4968 = vadd.f32 %v4748, %v4967
      %4969 = vmatmul.bf16.gmra.mxu0 %v4883
      %v4970 = vpop.f32.mrf.mxu0
      %v4971 = vadd.f32 %v4751, %v4970
      %v4972 = vpop.f32.mrf.mxu0
      %v4973 = vadd.f32 %v4753, %v4972
      %4974 = vmatmul.bf16.gmra.mxu0 %v4886
      %v4975 = vpop.f32.mrf.mxu0
      %v4976 = vadd.f32 %v4756, %v4975
      %v4977 = vpop.f32.mrf.mxu0
      %v4978 = vadd.f32 %v4758, %v4977
      %4979 = vdwg.mxu0
      %vm5028 = vcmask 1041408
      %vm5029 = vcmask 1045508
      %vm5030 = vmor %vm5028, %vm5029
      %v5031 = vrot.slane %v3842, 6
      %v5032 = vrot.slane %v5031, 4
      %v5033 = vrot.slane %v3843, 6
      %v5034 = vsel %vm5030, %v5032, %v5033
      %v5035 = vrot.slane %v5033, 4
      %v5036 = vrot.slane %v3844, 6
      %v5037 = vsel %vm5030, %v5035, %v5036
      %v5038 = vrot.slane %v3845, 6
      %v5039 = vrot.slane %v5038, 4
      %v5040 = vrot.slane %v3846, 6
      %v5041 = vsel %vm5030, %v5039, %v5040
      %v5042 = vrot.slane %v5040, 4
      %v5043 = vrot.slane %v3847, 6
      %v5044 = vsel %vm5030, %v5042, %v5043
      %v5045 = vrot.slane %v3848, 6
      %v5046 = vrot.slane %v5045, 4
      %v5047 = vrot.slane %v3849, 6
      %v5048 = vsel %vm5030, %v5046, %v5047
      %v5049 = vrot.slane %v5047, 4
      %v5050 = vrot.slane %v3850, 6
      %v5051 = vsel %vm5030, %v5049, %v5050
      %v5052 = vrot.slane %v3851, 6
      %v5053 = vrot.slane %v5052, 4
      %v5054 = vrot.slane %v3852, 6
      %v5055 = vsel %vm5030, %v5053, %v5054
      %v5056 = vrot.slane %v5054, 4
      %v5057 = vrot.slane %v3853, 6
      %v5058 = vsel %vm5030, %v5056, %v5057
      %v5059 = vrot.slane %v3854, 6
      %v5060 = vrot.slane %v5059, 4
      %v5061 = vrot.slane %v3855, 6
      %v5062 = vsel %vm5030, %v5060, %v5061
      %v5063 = vrot.slane %v5061, 4
      %v5064 = vrot.slane %v3856, 6
      %v5065 = vsel %vm5030, %v5063, %v5064
      %v5066 = vrot.slane %v3857, 6
      %v5067 = vrot.slane %v5066, 4
      %v5068 = vrot.slane %v3858, 6
      %v5069 = vsel %vm5030, %v5067, %v5068
      %v5070 = vrot.slane %v5068, 4
      %v5071 = vrot.slane %v3859, 6
      %v5072 = vsel %vm5030, %v5070, %v5071
      %v5073 = vrot.slane %v3860, 6
      %v5074 = vrot.slane %v5073, 4
      %v5075 = vrot.slane %v3861, 6
      %v5076 = vsel %vm5030, %v5074, %v5075
      %v5077 = vrot.slane %v5075, 4
      %v5078 = vrot.slane %v3862, 6
      %v5079 = vsel %vm5030, %v5077, %v5078
      %v5080 = vrot.slane %v3863, 6
      %v5081 = vrot.slane %v5080, 4
      %v5082 = vrot.slane %v3864, 6
      %v5083 = vsel %vm5030, %v5081, %v5082
      %v5084 = vrot.slane %v5082, 4
      %v5085 = vrot.slane %v3865, 6
      %v5086 = vsel %vm5030, %v5084, %v5085
      %v5087 = vrot.slane %v3866, 6
      %v5088 = vrot.slane %v5087, 4
      %v5089 = vrot.slane %v3867, 6
      %v5090 = vsel %vm5030, %v5088, %v5089
      %v5091 = vrot.slane %v5089, 4
      %v5092 = vrot.slane %v3868, 6
      %v5093 = vsel %vm5030, %v5091, %v5092
      %v5094 = vrot.slane %v3869, 6
      %v5095 = vrot.slane %v5094, 4
      %v5096 = vrot.slane %v3870, 6
      %v5097 = vsel %vm5030, %v5095, %v5096
      %v5098 = vrot.slane %v5096, 4
      %v5099 = vrot.slane %v3871, 6
      %v5100 = vsel %vm5030, %v5098, %v5099
      %v5101 = vrot.slane %v3872, 6
      %v5102 = vrot.slane %v5101, 4
      %v5103 = vrot.slane %v3873, 6
      %v5104 = vsel %vm5030, %v5102, %v5103
      %v5105 = vrot.slane %v5103, 4
      %v5106 = vrot.slane %v3874, 6
      %v5107 = vsel %vm5030, %v5105, %v5106
      %v5108 = vrot.slane %v3875, 6
      %v5109 = vrot.slane %v5108, 4
      %v5110 = vrot.slane %v3876, 6
      %v5111 = vsel %vm5030, %v5109, %v5110
      %v5112 = vrot.slane %v5110, 4
      %v5113 = vrot.slane %v3877, 6
      %v5114 = vsel %vm5030, %v5112, %v5113
      %v5115 = vrot.slane %v3878, 6
      %v5116 = vrot.slane %v5115, 4
      %v5117 = vrot.slane %v3879, 6
      %v5118 = vsel %vm5030, %v5116, %v5117
      %v5119 = vrot.slane %v5117, 4
      %v5120 = vrot.slane %v3880, 6
      %v5121 = vsel %vm5030, %v5119, %v5120
      %v5122 = vrot.slane %v3881, 6
      %v5123 = vrot.slane %v5122, 4
      %v5124 = vrot.slane %v3882, 6
      %v5125 = vsel %vm5030, %v5123, %v5124
      %v5126 = vrot.slane %v5124, 4
      %v5127 = vrot.slane %v3883, 6
      %v5128 = vsel %vm5030, %v5126, %v5127
      %v5129 = vrot.slane %v3884, 6
      %v5130 = vrot.slane %v5129, 4
      %v5131 = vrot.slane %v3885, 6
      %v5132 = vsel %vm5030, %v5130, %v5131
      %v5133 = vrot.slane %v5131, 4
      %v5134 = vrot.slane %v3886, 6
      %v5135 = vsel %vm5030, %v5133, %v5134
      %v5136 = vrot.slane %v3887, 6
      %v5137 = vrot.slane %v5136, 4
      %v5138 = vrot.slane %v3888, 6
      %v5139 = vsel %vm5030, %v5137, %v5138
      %v5140 = vrot.slane %v5138, 4
      %v5141 = vrot.slane %v3889, 6
      %v5142 = vsel %vm5030, %v5140, %v5141
      %s5143 = scalar_lea.vmem %s1, 4
      %v5144 = vld [vmem:[%s5143] sm:$0x3]
      %v5145 = vunpack.c.l.b16 %v5034
      %v5146 = vunpack.c.l.b16 %v5037
      %v5147 = vunpack.c.l.b16 %v5041
      %v5148 = vunpack.c.l.b16 %v5044
      %v5149 = vunpack.c.l.b16 %v5048
      %v5150 = vunpack.c.l.b16 %v5051
      %v5151 = vunpack.c.l.b16 %v5055
      %v5152 = vunpack.c.l.b16 %v5058
      %v5153 = vunpack.c.l.b16 %v5062
      %v5154 = vunpack.c.l.b16 %v5065
      %v5155 = vunpack.c.l.b16 %v5069
      %v5156 = vunpack.c.l.b16 %v5072
      %v5157 = vunpack.c.l.b16 %v5076
      %v5158 = vunpack.c.l.b16 %v5079
      %v5159 = vunpack.c.l.b16 %v5083
      %v5160 = vunpack.c.l.b16 %v5086
      %v5161 = vunpack.c.l.b16 %v5090
      %v5162 = vunpack.c.l.b16 %v5093
      %v5163 = vunpack.c.l.b16 %v5097
      %v5164 = vunpack.c.l.b16 %v5100
      %v5165 = vunpack.c.l.b16 %v5104
      %v5166 = vunpack.c.l.b16 %v5107
      %v5167 = vunpack.c.l.b16 %v5111
      %v5168 = vunpack.c.l.b16 %v5114
      %v5169 = vunpack.c.l.b16 %v5118
      %v5170 = vunpack.c.l.b16 %v5121
      %v5171 = vunpack.c.l.b16 %v5125
      %v5172 = vunpack.c.l.b16 %v5128
      %v5173 = vunpack.c.l.b16 %v5132
      %v5174 = vunpack.c.l.b16 %v5135
      %v5175 = vunpack.c.l.b16 %v5139
      %v5176 = vunpack.c.l.b16 %v5142
      %v5177 = vpack.c.b16 %v5146, %v5145
      %v5178 = vpack.c.b16 %v5148, %v5147
      %v5179 = vpack.c.b16 %v5150, %v5149
      %v5180 = vpack.c.b16 %v5152, %v5151
      %v5181 = vpack.c.b16 %v5154, %v5153
      %v5182 = vpack.c.b16 %v5156, %v5155
      %v5183 = vpack.c.b16 %v5158, %v5157
      %v5184 = vpack.c.b16 %v5160, %v5159
      %v5185 = vpack.c.b16 %v5162, %v5161
      %v5186 = vpack.c.b16 %v5164, %v5163
      %v5187 = vpack.c.b16 %v5166, %v5165
      %v5188 = vpack.c.b16 %v5168, %v5167
      %v5189 = vpack.c.b16 %v5170, %v5169
      %v5190 = vpack.c.b16 %v5172, %v5171
      %v5191 = vpack.c.b16 %v5174, %v5173
      %v5192 = vpack.c.b16 %v5176, %v5175
      %v5194 = vsel %vm4618, %v5177, 0
      %v5197 = vsel %vm4618, %v5178, 0
      %v5200 = vsel %vm4618, %v5179, 0
      %v5203 = vsel %vm4618, %v5180, 0
      %v5206 = vsel %vm4618, %v5181, 0
      %v5209 = vsel %vm4618, %v5182, 0
      %v5212 = vsel %vm4618, %v5183, 0
      %v5215 = vsel %vm4618, %v5184, 0
      %v5218 = vsel %vm4618, %v5185, 0
      %v5221 = vsel %vm4618, %v5186, 0
      %v5224 = vsel %vm4618, %v5187, 0
      %v5227 = vsel %vm4618, %v5188, 0
      %v5230 = vsel %vm4618, %v5189, 0
      %v5233 = vsel %vm4618, %v5190, 0
      %v5236 = vsel %vm4618, %v5191, 0
      %v5239 = vsel %vm4618, %v5192, 0
      %v5242 = vsel %vm4667, %v5144, 0
      %5244 = vmatpush.bf16.msra.mxu0 0
      %5245 = vmatpush.bf16.msra.mxu0 0
      %5246 = vmatpush.bf16.msra.mxu0 0
      %5247 = vmatpush.bf16.msra.mxu0 0
      %5248 = vmatpush.bf16.msra.mxu0 0
      %5249 = vmatpush.bf16.msra.mxu0 0
      %5250 = vmatpush.bf16.msra.mxu0 0
      %5251 = vmatpush.bf16.msra.mxu0 %v5242
      %5252 = vmatmul.bf16.gmra.mxu0 %v5194
      %v5253 = vpop.f32.mrf.mxu0
      %v5254 = vadd.f32 0.0, %v5253
      %v5255 = vpop.f32.mrf.mxu0
      %v5256 = vadd.f32 0.0, %v5255
      %5257 = vmatmul.bf16.gmra.mxu0 %v5197
      %v5258 = vpop.f32.mrf.mxu0
      %v5259 = vadd.f32 0.0, %v5258
      %v5260 = vpop.f32.mrf.mxu0
      %v5261 = vadd.f32 0.0, %v5260
      %5262 = vmatmul.bf16.gmra.mxu0 %v5200
      %v5263 = vpop.f32.mrf.mxu0
      %v5264 = vadd.f32 0.0, %v5263
      %v5265 = vpop.f32.mrf.mxu0
      %v5266 = vadd.f32 0.0, %v5265
      %5267 = vmatmul.bf16.gmra.mxu0 %v5203
      %v5268 = vpop.f32.mrf.mxu0
      %v5269 = vadd.f32 0.0, %v5268
      %v5270 = vpop.f32.mrf.mxu0
      %v5271 = vadd.f32 0.0, %v5270
      %5272 = vmatmul.bf16.gmra.mxu0 %v5206
      %v5273 = vpop.f32.mrf.mxu0
      %v5274 = vadd.f32 0.0, %v5273
      %v5275 = vpop.f32.mrf.mxu0
      %v5276 = vadd.f32 0.0, %v5275
      %5277 = vmatmul.bf16.gmra.mxu0 %v5209
      %v5278 = vpop.f32.mrf.mxu0
      %v5279 = vadd.f32 0.0, %v5278
      %v5280 = vpop.f32.mrf.mxu0
      %v5281 = vadd.f32 0.0, %v5280
      %5282 = vmatmul.bf16.gmra.mxu0 %v5212
      %v5283 = vpop.f32.mrf.mxu0
      %v5284 = vadd.f32 0.0, %v5283
      %v5285 = vpop.f32.mrf.mxu0
      %v5286 = vadd.f32 0.0, %v5285
      %5287 = vmatmul.bf16.gmra.mxu0 %v5215
      %v5288 = vpop.f32.mrf.mxu0
      %v5289 = vadd.f32 0.0, %v5288
      %v5290 = vpop.f32.mrf.mxu0
      %v5291 = vadd.f32 0.0, %v5290
      %5292 = vmatmul.bf16.gmra.mxu0 %v5218
      %v5293 = vpop.f32.mrf.mxu0
      %v5294 = vadd.f32 0.0, %v5293
      %v5295 = vpop.f32.mrf.mxu0
      %v5296 = vadd.f32 0.0, %v5295
      %5297 = vmatmul.bf16.gmra.mxu0 %v5221
      %v5298 = vpop.f32.mrf.mxu0
      %v5299 = vadd.f32 0.0, %v5298
      %v5300 = vpop.f32.mrf.mxu0
      %v5301 = vadd.f32 0.0, %v5300
      %5302 = vmatmul.bf16.gmra.mxu0 %v5224
      %v5303 = vpop.f32.mrf.mxu0
      %v5304 = vadd.f32 0.0, %v5303
      %v5305 = vpop.f32.mrf.mxu0
      %v5306 = vadd.f32 0.0, %v5305
      %5307 = vmatmul.bf16.gmra.mxu0 %v5227
      %v5308 = vpop.f32.mrf.mxu0
      %v5309 = vadd.f32 0.0, %v5308
      %v5310 = vpop.f32.mrf.mxu0
      %v5311 = vadd.f32 0.0, %v5310
      %5312 = vmatmul.bf16.gmra.mxu0 %v5230
      %v5313 = vpop.f32.mrf.mxu0
      %v5314 = vadd.f32 0.0, %v5313
      %v5315 = vpop.f32.mrf.mxu0
      %v5316 = vadd.f32 0.0, %v5315
      %5317 = vmatmul.bf16.gmra.mxu0 %v5233
      %v5318 = vpop.f32.mrf.mxu0
      %v5319 = vadd.f32 0.0, %v5318
      %v5320 = vpop.f32.mrf.mxu0
      %v5321 = vadd.f32 0.0, %v5320
      %5322 = vmatmul.bf16.gmra.mxu0 %v5236
      %v5323 = vpop.f32.mrf.mxu0
      %v5324 = vadd.f32 0.0, %v5323
      %v5325 = vpop.f32.mrf.mxu0
      %v5326 = vadd.f32 0.0, %v5325
      %5327 = vmatmul.bf16.gmra.mxu0 %v5239
      %v5328 = vpop.f32.mrf.mxu0
      %v5329 = vadd.f32 0.0, %v5328
      %v5330 = vpop.f32.mrf.mxu0
      %v5331 = vadd.f32 0.0, %v5330
      %5332 = vdwg.mxu0
      %v5333 = vadd.f32 %v4901, %v5254
      %v5334 = vadd.f32 %v4903, %v5256
      %v5335 = vadd.f32 %v4906, %v5259
      %v5336 = vadd.f32 %v4908, %v5261
      %v5337 = vadd.f32 %v4911, %v5264
      %v5338 = vadd.f32 %v4913, %v5266
      %v5339 = vadd.f32 %v4916, %v5269
      %v5340 = vadd.f32 %v4918, %v5271
      %v5341 = vadd.f32 %v4921, %v5274
      %v5342 = vadd.f32 %v4923, %v5276
      %v5343 = vadd.f32 %v4926, %v5279
      %v5344 = vadd.f32 %v4928, %v5281
      %v5345 = vadd.f32 %v4931, %v5284
      %v5346 = vadd.f32 %v4933, %v5286
      %v5347 = vadd.f32 %v4936, %v5289
      %v5348 = vadd.f32 %v4938, %v5291
      %v5349 = vadd.f32 %v4941, %v5294
      %v5350 = vadd.f32 %v4943, %v5296
      %v5351 = vadd.f32 %v4946, %v5299
      %v5352 = vadd.f32 %v4948, %v5301
      %v5353 = vadd.f32 %v4951, %v5304
      %v5354 = vadd.f32 %v4953, %v5306
      %v5355 = vadd.f32 %v4956, %v5309
      %v5356 = vadd.f32 %v4958, %v5311
      %v5357 = vadd.f32 %v4961, %v5314
      %v5358 = vadd.f32 %v4963, %v5316
      %v5359 = vadd.f32 %v4966, %v5319
      %v5360 = vadd.f32 %v4968, %v5321
      %v5361 = vadd.f32 %v4971, %v5324
      %v5362 = vadd.f32 %v4973, %v5326
      %v5363 = vadd.f32 %v4976, %v5329
      %v5364 = vadd.f32 %v4978, %v5331
      %vm5413 = vcmask 1042432
      %vm5414 = vcmask 1046532
      %vm5415 = vmor %vm5413, %vm5414
      %v5416 = vrot.slane %v4324, 5
      %v5417 = vrot.slane %v5416, 4
      %v5418 = vrot.slane %v4325, 5
      %v5419 = vsel %vm5415, %v5417, %v5418
      %v5420 = vrot.slane %v5418, 4
      %v5421 = vrot.slane %v4326, 5
      %v5422 = vsel %vm5415, %v5420, %v5421
      %v5423 = vrot.slane %v4327, 5
      %v5424 = vrot.slane %v5423, 4
      %v5425 = vrot.slane %v4328, 5
      %v5426 = vsel %vm5415, %v5424, %v5425
      %v5427 = vrot.slane %v5425, 4
      %v5428 = vrot.slane %v4329, 5
      %v5429 = vsel %vm5415, %v5427, %v5428
      %v5430 = vrot.slane %v4330, 5
      %v5431 = vrot.slane %v5430, 4
      %v5432 = vrot.slane %v4331, 5
      %v5433 = vsel %vm5415, %v5431, %v5432
      %v5434 = vrot.slane %v5432, 4
      %v5435 = vrot.slane %v4332, 5
      %v5436 = vsel %vm5415, %v5434, %v5435
      %v5437 = vrot.slane %v4333, 5
      %v5438 = vrot.slane %v5437, 4
      %v5439 = vrot.slane %v4334, 5
      %v5440 = vsel %vm5415, %v5438, %v5439
      %v5441 = vrot.slane %v5439, 4
      %v5442 = vrot.slane %v4335, 5
      %v5443 = vsel %vm5415, %v5441, %v5442
      %v5444 = vrot.slane %v4336, 5
      %v5445 = vrot.slane %v5444, 4
      %v5446 = vrot.slane %v4337, 5
      %v5447 = vsel %vm5415, %v5445, %v5446
      %v5448 = vrot.slane %v5446, 4
      %v5449 = vrot.slane %v4338, 5
      %v5450 = vsel %vm5415, %v5448, %v5449
      %v5451 = vrot.slane %v4339, 5
      %v5452 = vrot.slane %v5451, 4
      %v5453 = vrot.slane %v4340, 5
      %v5454 = vsel %vm5415, %v5452, %v5453
      %v5455 = vrot.slane %v5453, 4
      %v5456 = vrot.slane %v4341, 5
      %v5457 = vsel %vm5415, %v5455, %v5456
      %v5458 = vrot.slane %v4342, 5
      %v5459 = vrot.slane %v5458, 4
      %v5460 = vrot.slane %v4343, 5
      %v5461 = vsel %vm5415, %v5459, %v5460
      %v5462 = vrot.slane %v5460, 4
      %v5463 = vrot.slane %v4344, 5
      %v5464 = vsel %vm5415, %v5462, %v5463
      %v5465 = vrot.slane %v4345, 5
      %v5466 = vrot.slane %v5465, 4
      %v5467 = vrot.slane %v4346, 5
      %v5468 = vsel %vm5415, %v5466, %v5467
      %v5469 = vrot.slane %v5467, 4
      %v5470 = vrot.slane %v4347, 5
      %v5471 = vsel %vm5415, %v5469, %v5470
      %v5472 = vrot.slane %v4348, 5
      %v5473 = vrot.slane %v5472, 4
      %v5474 = vrot.slane %v4349, 5
      %v5475 = vsel %vm5415, %v5473, %v5474
      %v5476 = vrot.slane %v5474, 4
      %v5477 = vrot.slane %v4350, 5
      %v5478 = vsel %vm5415, %v5476, %v5477
      %v5479 = vrot.slane %v4351, 5
      %v5480 = vrot.slane %v5479, 4
      %v5481 = vrot.slane %v4352, 5
      %v5482 = vsel %vm5415, %v5480, %v5481
      %v5483 = vrot.slane %v5481, 4
      %v5484 = vrot.slane %v4353, 5
      %v5485 = vsel %vm5415, %v5483, %v5484
      %v5486 = vrot.slane %v4354, 5
      %v5487 = vrot.slane %v5486, 4
      %v5488 = vrot.slane %v4355, 5
      %v5489 = vsel %vm5415, %v5487, %v5488
      %v5490 = vrot.slane %v5488, 4
      %v5491 = vrot.slane %v4356, 5
      %v5492 = vsel %vm5415, %v5490, %v5491
      %v5493 = vrot.slane %v4357, 5
      %v5494 = vrot.slane %v5493, 4
      %v5495 = vrot.slane %v4358, 5
      %v5496 = vsel %vm5415, %v5494, %v5495
      %v5497 = vrot.slane %v5495, 4
      %v5498 = vrot.slane %v4359, 5
      %v5499 = vsel %vm5415, %v5497, %v5498
      %v5500 = vrot.slane %v4360, 5
      %v5501 = vrot.slane %v5500, 4
      %v5502 = vrot.slane %v4361, 5
      %v5503 = vsel %vm5415, %v5501, %v5502
      %v5504 = vrot.slane %v5502, 4
      %v5505 = vrot.slane %v4362, 5
      %v5506 = vsel %vm5415, %v5504, %v5505
      %v5507 = vrot.slane %v4363, 5
      %v5508 = vrot.slane %v5507, 4
      %v5509 = vrot.slane %v4364, 5
      %v5510 = vsel %vm5415, %v5508, %v5509
      %v5511 = vrot.slane %v5509, 4
      %v5512 = vrot.slane %v4365, 5
      %v5513 = vsel %vm5415, %v5511, %v5512
      %v5514 = vrot.slane %v4366, 5
      %v5515 = vrot.slane %v5514, 4
      %v5516 = vrot.slane %v4367, 5
      %v5517 = vsel %vm5415, %v5515, %v5516
      %v5518 = vrot.slane %v5516, 4
      %v5519 = vrot.slane %v4368, 5
      %v5520 = vsel %vm5415, %v5518, %v5519
      %v5521 = vrot.slane %v4369, 5
      %v5522 = vrot.slane %v5521, 4
      %v5523 = vrot.slane %v4370, 5
      %v5524 = vsel %vm5415, %v5522, %v5523
      %v5525 = vrot.slane %v5523, 4
      %v5526 = vrot.slane %v4371, 5
      %v5527 = vsel %vm5415, %v5525, %v5526
      %s5528 = scalar_lea.vmem %s1, 6
      %v5529 = vld [vmem:[%s5528] sm:$0x3]
      %v5530 = vunpack.c.l.b16 %v5419
      %v5531 = vunpack.c.l.b16 %v5422
      %v5532 = vunpack.c.l.b16 %v5426
      %v5533 = vunpack.c.l.b16 %v5429
      %v5534 = vunpack.c.l.b16 %v5433
      %v5535 = vunpack.c.l.b16 %v5436
      %v5536 = vunpack.c.l.b16 %v5440
      %v5537 = vunpack.c.l.b16 %v5443
      %v5538 = vunpack.c.l.b16 %v5447
      %v5539 = vunpack.c.l.b16 %v5450
      %v5540 = vunpack.c.l.b16 %v5454
      %v5541 = vunpack.c.l.b16 %v5457
      %v5542 = vunpack.c.l.b16 %v5461
      %v5543 = vunpack.c.l.b16 %v5464
      %v5544 = vunpack.c.l.b16 %v5468
      %v5545 = vunpack.c.l.b16 %v5471
      %v5546 = vunpack.c.l.b16 %v5475
      %v5547 = vunpack.c.l.b16 %v5478
      %v5548 = vunpack.c.l.b16 %v5482
      %v5549 = vunpack.c.l.b16 %v5485
      %v5550 = vunpack.c.l.b16 %v5489
      %v5551 = vunpack.c.l.b16 %v5492
      %v5552 = vunpack.c.l.b16 %v5496
      %v5553 = vunpack.c.l.b16 %v5499
      %v5554 = vunpack.c.l.b16 %v5503
      %v5555 = vunpack.c.l.b16 %v5506
      %v5556 = vunpack.c.l.b16 %v5510
      %v5557 = vunpack.c.l.b16 %v5513
      %v5558 = vunpack.c.l.b16 %v5517
      %v5559 = vunpack.c.l.b16 %v5520
      %v5560 = vunpack.c.l.b16 %v5524
      %v5561 = vunpack.c.l.b16 %v5527
      %v5562 = vpack.c.b16 %v5531, %v5530
      %v5563 = vpack.c.b16 %v5533, %v5532
      %v5564 = vpack.c.b16 %v5535, %v5534
      %v5565 = vpack.c.b16 %v5537, %v5536
      %v5566 = vpack.c.b16 %v5539, %v5538
      %v5567 = vpack.c.b16 %v5541, %v5540
      %v5568 = vpack.c.b16 %v5543, %v5542
      %v5569 = vpack.c.b16 %v5545, %v5544
      %v5570 = vpack.c.b16 %v5547, %v5546
      %v5571 = vpack.c.b16 %v5549, %v5548
      %v5572 = vpack.c.b16 %v5551, %v5550
      %v5573 = vpack.c.b16 %v5553, %v5552
      %v5574 = vpack.c.b16 %v5555, %v5554
      %v5575 = vpack.c.b16 %v5557, %v5556
      %v5576 = vpack.c.b16 %v5559, %v5558
      %v5577 = vpack.c.b16 %v5561, %v5560
      %v5579 = vsel %vm4618, %v5562, 0
      %v5582 = vsel %vm4618, %v5563, 0
      %v5585 = vsel %vm4618, %v5564, 0
      %v5588 = vsel %vm4618, %v5565, 0
      %v5591 = vsel %vm4618, %v5566, 0
      %v5594 = vsel %vm4618, %v5567, 0
      %v5597 = vsel %vm4618, %v5568, 0
      %v5600 = vsel %vm4618, %v5569, 0
      %v5603 = vsel %vm4618, %v5570, 0
      %v5606 = vsel %vm4618, %v5571, 0
      %v5609 = vsel %vm4618, %v5572, 0
      %v5612 = vsel %vm4618, %v5573, 0
      %v5615 = vsel %vm4618, %v5574, 0
      %v5618 = vsel %vm4618, %v5575, 0
      %v5621 = vsel %vm4618, %v5576, 0
      %v5624 = vsel %vm4618, %v5577, 0
      %v5627 = vsel %vm4667, %v5529, 0
      %5629 = vmatpush.bf16.msra.mxu0 0
      %5630 = vmatpush.bf16.msra.mxu0 0
      %5631 = vmatpush.bf16.msra.mxu0 0
      %5632 = vmatpush.bf16.msra.mxu0 0
      %5633 = vmatpush.bf16.msra.mxu0 0
      %5634 = vmatpush.bf16.msra.mxu0 0
      %5635 = vmatpush.bf16.msra.mxu0 0
      %5636 = vmatpush.bf16.msra.mxu0 %v5627
      %5637 = vmatmul.bf16.gmra.mxu0 %v5579
      %v5638 = vpop.f32.mrf.mxu0
      %v5639 = vadd.f32 0.0, %v5638
      %v5640 = vpop.f32.mrf.mxu0
      %v5641 = vadd.f32 0.0, %v5640
      %5642 = vmatmul.bf16.gmra.mxu0 %v5582
      %v5643 = vpop.f32.mrf.mxu0
      %v5644 = vadd.f32 0.0, %v5643
      %v5645 = vpop.f32.mrf.mxu0
      %v5646 = vadd.f32 0.0, %v5645
      %5647 = vmatmul.bf16.gmra.mxu0 %v5585
      %v5648 = vpop.f32.mrf.mxu0
      %v5649 = vadd.f32 0.0, %v5648
      %v5650 = vpop.f32.mrf.mxu0
      %v5651 = vadd.f32 0.0, %v5650
      %5652 = vmatmul.bf16.gmra.mxu0 %v5588
      %v5653 = vpop.f32.mrf.mxu0
      %v5654 = vadd.f32 0.0, %v5653
      %v5655 = vpop.f32.mrf.mxu0
      %v5656 = vadd.f32 0.0, %v5655
      %5657 = vmatmul.bf16.gmra.mxu0 %v5591
      %v5658 = vpop.f32.mrf.mxu0
      %v5659 = vadd.f32 0.0, %v5658
      %v5660 = vpop.f32.mrf.mxu0
      %v5661 = vadd.f32 0.0, %v5660
      %5662 = vmatmul.bf16.gmra.mxu0 %v5594
      %v5663 = vpop.f32.mrf.mxu0
      %v5664 = vadd.f32 0.0, %v5663
      %v5665 = vpop.f32.mrf.mxu0
      %v5666 = vadd.f32 0.0, %v5665
      %5667 = vmatmul.bf16.gmra.mxu0 %v5597
      %v5668 = vpop.f32.mrf.mxu0
      %v5669 = vadd.f32 0.0, %v5668
      %v5670 = vpop.f32.mrf.mxu0
      %v5671 = vadd.f32 0.0, %v5670
      %5672 = vmatmul.bf16.gmra.mxu0 %v5600
      %v5673 = vpop.f32.mrf.mxu0
      %v5674 = vadd.f32 0.0, %v5673
      %v5675 = vpop.f32.mrf.mxu0
      %v5676 = vadd.f32 0.0, %v5675
      %5677 = vmatmul.bf16.gmra.mxu0 %v5603
      %v5678 = vpop.f32.mrf.mxu0
      %v5679 = vadd.f32 0.0, %v5678
      %v5680 = vpop.f32.mrf.mxu0
      %v5681 = vadd.f32 0.0, %v5680
      %5682 = vmatmul.bf16.gmra.mxu0 %v5606
      %v5683 = vpop.f32.mrf.mxu0
      %v5684 = vadd.f32 0.0, %v5683
      %v5685 = vpop.f32.mrf.mxu0
      %v5686 = vadd.f32 0.0, %v5685
      %5687 = vmatmul.bf16.gmra.mxu0 %v5609
      %v5688 = vpop.f32.mrf.mxu0
      %v5689 = vadd.f32 0.0, %v5688
      %v5690 = vpop.f32.mrf.mxu0
      %v5691 = vadd.f32 0.0, %v5690
      %5692 = vmatmul.bf16.gmra.mxu0 %v5612
      %v5693 = vpop.f32.mrf.mxu0
      %v5694 = vadd.f32 0.0, %v5693
      %v5695 = vpop.f32.mrf.mxu0
      %v5696 = vadd.f32 0.0, %v5695
      %5697 = vmatmul.bf16.gmra.mxu0 %v5615
      %v5698 = vpop.f32.mrf.mxu0
      %v5699 = vadd.f32 0.0, %v5698
      %v5700 = vpop.f32.mrf.mxu0
      %v5701 = vadd.f32 0.0, %v5700
      %5702 = vmatmul.bf16.gmra.mxu0 %v5618
      %v5703 = vpop.f32.mrf.mxu0
      %v5704 = vadd.f32 0.0, %v5703
      %v5705 = vpop.f32.mrf.mxu0
      %v5706 = vadd.f32 0.0, %v5705
      %5707 = vmatmul.bf16.gmra.mxu0 %v5621
      %v5708 = vpop.f32.mrf.mxu0
      %v5709 = vadd.f32 0.0, %v5708
      %v5710 = vpop.f32.mrf.mxu0
      %v5711 = vadd.f32 0.0, %v5710
      %5712 = vmatmul.bf16.gmra.mxu0 %v5624
      %v5713 = vpop.f32.mrf.mxu0
      %v5714 = vadd.f32 0.0, %v5713
      %v5715 = vpop.f32.mrf.mxu0
      %v5716 = vadd.f32 0.0, %v5715
      %5717 = vdwg.mxu0
      %v5718 = vadd.f32 %v5333, %v5639
      %v5719 = vadd.f32 %v5334, %v5641
      %v5720 = vadd.f32 %v5335, %v5644
      %v5721 = vadd.f32 %v5336, %v5646
      %v5722 = vadd.f32 %v5337, %v5649
      %v5723 = vadd.f32 %v5338, %v5651
      %v5724 = vadd.f32 %v5339, %v5654
      %v5725 = vadd.f32 %v5340, %v5656
      %v5726 = vadd.f32 %v5341, %v5659
      %v5727 = vadd.f32 %v5342, %v5661
      %v5728 = vadd.f32 %v5343, %v5664
      %v5729 = vadd.f32 %v5344, %v5666
      %v5730 = vadd.f32 %v5345, %v5669
      %v5731 = vadd.f32 %v5346, %v5671
      %v5732 = vadd.f32 %v5347, %v5674
      %v5733 = vadd.f32 %v5348, %v5676
      %v5734 = vadd.f32 %v5349, %v5679
      %v5735 = vadd.f32 %v5350, %v5681
      %v5736 = vadd.f32 %v5351, %v5684
      %v5737 = vadd.f32 %v5352, %v5686
      %v5738 = vadd.f32 %v5353, %v5689
      %v5739 = vadd.f32 %v5354, %v5691
      %v5740 = vadd.f32 %v5355, %v5694
      %v5741 = vadd.f32 %v5356, %v5696
      %v5742 = vadd.f32 %v5357, %v5699
      %v5743 = vadd.f32 %v5358, %v5701
      %v5744 = vadd.f32 %v5359, %v5704
      %v5745 = vadd.f32 %v5360, %v5706
      %v5746 = vadd.f32 %v5361, %v5709
      %v5747 = vadd.f32 %v5362, %v5711
      %v5748 = vadd.f32 %v5363, %v5714
      %v5749 = vadd.f32 %v5364, %v5716
      %vm5750 = vcmask 64512
      %5751 = vst.msk [vmem:[%s143] sm:$0xff] %vm5750, %v5718
      %5752 = vst.msk [vmem:[%s143 + $0x8] sm:$0xff] %vm5750, %v5719
      %5753 = vst.msk [vmem:[%s143 + $0x10] sm:$0xff] %vm5750, %v5720
      %5754 = vst.msk [vmem:[%s143 + $0x18] sm:$0xff] %vm5750, %v5721
      %5755 = vst.msk [vmem:[%s143 + $0x20] sm:$0xff] %vm5750, %v5722
      %5756 = vst.msk [vmem:[%s143 + $0x28] sm:$0xff] %vm5750, %v5723
      %5757 = vst.msk [vmem:[%s143 + $0x30] sm:$0xff] %vm5750, %v5724
      %5758 = vst.msk [vmem:[%s143 + $0x38] sm:$0xff] %vm5750, %v5725
      %5759 = vst.msk [vmem:[%s143 + $0x40] sm:$0xff] %vm5750, %v5726
      %5760 = vst.msk [vmem:[%s143 + $0x48] sm:$0xff] %vm5750, %v5727
      %5761 = vst.msk [vmem:[%s143 + $0x50] sm:$0xff] %vm5750, %v5728
      %5762 = vst.msk [vmem:[%s143 + $0x58] sm:$0xff] %vm5750, %v5729
      %5763 = vst.msk [vmem:[%s143 + $0x60] sm:$0xff] %vm5750, %v5730
      %5764 = vst.msk [vmem:[%s143 + $0x68] sm:$0xff] %vm5750, %v5731
      %5765 = vst.msk [vmem:[%s143 + $0x70] sm:$0xff] %vm5750, %v5732
      %5766 = vst.msk [vmem:[%s143 + $0x78] sm:$0xff] %vm5750, %v5733
      %5767 = vst.msk [vmem:[%s143 + $0x80] sm:$0xff] %vm5750, %v5734
      %5768 = vst.msk [vmem:[%s143 + $0x88] sm:$0xff] %vm5750, %v5735
      %5769 = vst.msk [vmem:[%s143 + $0x90] sm:$0xff] %vm5750, %v5736
      %5770 = vst.msk [vmem:[%s143 + $0x98] sm:$0xff] %vm5750, %v5737
      %5771 = vst.msk [vmem:[%s143 + $0xa0] sm:$0xff] %vm5750, %v5738
      %5772 = vst.msk [vmem:[%s143 + $0xa8] sm:$0xff] %vm5750, %v5739
      %5773 = vst.msk [vmem:[%s143 + $0xb0] sm:$0xff] %vm5750, %v5740
      %5774 = vst.msk [vmem:[%s143 + $0xb8] sm:$0xff] %vm5750, %v5741
      %5775 = vst.msk [vmem:[%s143 + $0xc0] sm:$0xff] %vm5750, %v5742
      %5776 = vst.msk [vmem:[%s143 + $0xc8] sm:$0xff] %vm5750, %v5743
      %5777 = vst.msk [vmem:[%s143 + $0xd0] sm:$0xff] %vm5750, %v5744
      %5778 = vst.msk [vmem:[%s143 + $0xd8] sm:$0xff] %vm5750, %v5745
      %5779 = vst.msk [vmem:[%s143 + $0xe0] sm:$0xff] %vm5750, %v5746
      %5780 = vst.msk [vmem:[%s143 + $0xe8] sm:$0xff] %vm5750, %v5747
      %5781 = vst.msk [vmem:[%s143 + $0xf0] sm:$0xff] %vm5750, %v5748
      %5782 = vst.msk [vmem:[%s143 + $0xf8] sm:$0xff] %vm5750, %v5749
      %p5783 = scmp.lt.s32.totalorder %s13, 1
      %s5784 = scalar_select %p5783, %s13, 1
      %s5785 = smul.addr %s5784, 32
      %s5786 = smul.addr %s5785, 8
      %s5787 = scalar_lea.vmem %s2, %s5786
      // Predicated region
      $region29: #{tpu_custom_call.1} parent=27 // pred_check
        %p5788 = pneg %p78
      $region30: #{tpu_custom_call.1} parent=27 // pred_check_branch
        %5790 = sbr.rel (%p5788) target = $region32
      $region31: #{tpu_custom_call.1} parent=27 // pred_region
        _
      $region32: #{tpu_custom_call.1} parent=27 // pred_fallthru
        _
    $region28: #{tpu_custom_call.1} parent=5 // pred_fallthru
      _
    %p5791 = scmp.le.s32.totalorder 2, %s8
    // Predicated region
    $region33: #{tpu_custom_call.1} parent=5 // pred_check
      %p5792 = pneg %p5791
    $region34: #{tpu_custom_call.1} parent=5 // pred_check_branch
      %5794 = sbr.rel (%p5792) target = $region36
    $region35: #{tpu_custom_call.1} parent=5 // pred_region
      %s5795 = ssub.s32 %s8, 2
      // Predicated region
      $region37: #{tpu_custom_call.1} parent=35 // pred_check
        %p5796 = pneg %p84
      $region38: #{tpu_custom_call.1} parent=35 // pred_check_branch
        %5798 = sbr.rel (%p5796) target = $region40
      $region39: #{tpu_custom_call.1} parent=35 // pred_region
        %p5799 = scmp.lt.s32.totalorder %s14, 1
        %s5800 = scalar_select %p5799, %s14, 1
        %s5801 = smul.addr %s5800, 32
        %s5802 = smul.addr %s5801, 8
        %s5803 = scalar_lea.vmem %s2, %s5802
      $region40: #{tpu_custom_call.1} parent=35 // pred_fallthru
        _
    $region36: #{tpu_custom_call.1} parent=5 // pred_fallthru
      _
  $region6: #{tpu_custom_call.1} parent=0 // loop_footer
    %s12 = sadd.s32 1, %s8
  $region7: #{tpu_custom_call.1} parent=0 // loop_footer_branch
    %7 = sbr.rel target = $region3
  $region8: #{tpu_custom_call.1} parent=0 // loop_exit
    _

</llo_original>
